<compile_context>
chip_gen: v5e
topology: v5e:2x2
jax: 0.10.0
libtpu: 0.0.40
codegen_flags: <defaults>
</compile_context>

<pallas_src>
import jax
import jax.numpy as jnp
from jax.experimental import pallas as pl
from jax.experimental.pallas import tpu as pltpu


# ----------------------------- shared math helpers -----------------------------

def _erf_f32(x):
    # Abramowitz & Stegun 7.1.26 rational approximation, |err| <= 1.5e-7 (effectively
    # exact at f32) -- keeps nn.GELU's exact-erf semantics using only ops with
    # guaranteed Mosaic lowerings (exp / mul / add / where).
    p = 0.3275911
    a1, a2, a3, a4, a5 = (0.254829592, -0.284496736, 1.421413741,
                          -1.453152027, 1.061405429)
    sign = jnp.where(x < 0.0, -1.0, 1.0)
    ax = jnp.abs(x)
    t = 1.0 / (1.0 + p * ax)
    poly = ((((a5 * t + a4) * t + a3) * t + a2) * t + a1) * t
    return sign * (1.0 - poly * jnp.exp(-ax * ax))


def _gelu_exact(x):
    return 0.5 * x * (1.0 + _erf_f32(x * 0.7071067811865476))


def _layer_norm(x, gamma, beta, eps=1e-5):
    mu = jnp.mean(x, axis=-1, keepdims=True)
    xc = x - mu
    var = jnp.mean(xc * xc, axis=-1, keepdims=True)
    return xc * jax.lax.rsqrt(var + eps) * gamma + beta


# --------------------------------- the kernel ----------------------------------

def _make_block_kernel(with_mask, hidden_chunk):
    """Fused Swin block kernel; specialised for shifted (masked) / unshifted blocks."""

    def kernel(*refs):
        if with_mask:
            (x_ref, ln1g_ref, ln1b_ref, wqkv_ref, bqkv_ref, pos_ref, mask_ref,
             wproj_ref, bproj_ref, ln2g_ref, ln2b_ref,
             w1_ref, b1_ref, w2_ref, b2_ref, o_ref) = refs
        else:
            (x_ref, ln1g_ref, ln1b_ref, wqkv_ref, bqkv_ref, pos_ref,
             wproj_ref, bproj_ref, ln2g_ref, ln2b_ref,
             w1_ref, b1_ref, w2_ref, b2_ref, o_ref) = refs

        rows, dim = x_ref.shape                 # rows = TW * window_size
        n_heads, ws, _ = pos_ref.shape
        tw = rows // ws
        hd = dim // n_heads
        scale = float(hd) ** -0.5               # qk_scale = head_dim ** -0.5

        x = x_ref[...].astype(jnp.float32)

        # ---- LayerNorm 1 (f32 statistics) ----
        h = _layer_norm(x, ln1g_ref[...], ln1b_ref[...])

        # ---- fused QKV projection: one (rows, dim) x (dim, 3*dim) bf16 GEMM ----
        qkv = jnp.dot(h.astype(jnp.bfloat16), wqkv_ref[...],
                      preferred_element_type=jnp.float32) + bqkv_ref[...]

        pos = pos_ref[...].astype(jnp.float32)            # (n_heads, ws, ws)
        if with_mask:
            mask = mask_ref[...].astype(jnp.float32)      # (tw, ws, ws)

        # ---- windowed multi-head attention (bf16 operands, f32 softmax stats) ----
        ctx_heads = []
        for n in range(n_heads):
            q = (qkv[:, n * hd:(n + 1) * hd] * scale).reshape(tw, ws, hd)
            k = qkv[:, dim + n * hd:dim + (n + 1) * hd].reshape(tw, ws, hd)
            v = qkv[:, 2 * dim + n * hd:2 * dim + (n + 1) * hd].reshape(tw, ws, hd)

            logits = jnp.einsum('wqd,wkd->wqk',
                                q.astype(jnp.bfloat16), k.astype(jnp.bfloat16),
                                preferred_element_type=jnp.float32)
            logits = logits + pos[n]
            if with_mask:
                logits = logits + mask
            lmax = jnp.max(logits, axis=-1, keepdims=True)
            p = jnp.exp(logits - lmax)
            p = p * pl.reciprocal(jnp.sum(p, axis=-1, keepdims=True), approx=True)

            ctx = jnp.einsum('wqk,wkd->wqd',
                             p.astype(jnp.bfloat16), v.astype(jnp.bfloat16),
                             preferred_element_type=jnp.float32)
            ctx_heads.append(ctx.reshape(rows, hd))

        # head concat (lane concat) -> ONE K=dim output-projection GEMM
        ctx_all = ctx_heads[0] if n_heads == 1 else jnp.concatenate(ctx_heads, axis=-1)
        attn_out = jnp.dot(ctx_all.astype(jnp.bfloat16), wproj_ref[...],
                           preferred_element_type=jnp.float32) + bproj_ref[...]

        x1 = x + attn_out                        # first residual

        # ---- LayerNorm 2 + MLP (two bf16 GEMMs + exact GELU), second residual ----
        h2 = _layer_norm(x1, ln2g_ref[...], ln2b_ref[...]).astype(jnp.bfloat16)
        hidden = w1_ref.shape[1]
        if hidden_chunk >= hidden:
            z = jnp.dot(h2, w1_ref[...], preferred_element_type=jnp.float32) + b1_ref[...]
            z = _gelu_exact(z).astype(jnp.bfloat16)
            mlp = jnp.dot(z, w2_ref[...], preferred_element_type=jnp.float32)
        else:
            # chunk the hidden axis so the (rows, hidden) activation stays bounded
            mlp = jnp.zeros((rows, dim), jnp.float32)
            for c0 in range(0, hidden, hidden_chunk):
                c1 = c0 + hidden_chunk
                z = jnp.dot(h2, w1_ref[:, c0:c1],
                            preferred_element_type=jnp.float32) + b1_ref[:, c0:c1]
                z = _gelu_exact(z).astype(jnp.bfloat16)
                mlp = mlp + jnp.dot(z, w2_ref[c0:c1, :],
                                    preferred_element_type=jnp.float32)

        o_ref[...] = (x1 + mlp + b2_ref[...]).astype(o_ref.dtype)

    return kernel


# --------------------------------- wrappers -------------------------------------

_SINGLE_BUFFER_WEIGHTS = True   # flipped off at runtime if pl.Buffered(1) is unsupported


def _vmem_capacity_bytes():
    try:
        cap = int(pltpu.get_tpu_info().vmem_capacity_bytes)
    except Exception:
        cap = 64 << 20          # conservative (v7x per-TensorCore VMEM)
    return max(cap, 48 << 20)


def _pick_hidden_chunk(hidden):
    if hidden <= 2048:
        return hidden
    for c in (2048, 1024, 512):
        if hidden % c == 0:
            return c
    return hidden


def _pick_window_tile(n_windows, window_size, dim, hidden_chunk, xbytes, vmem_cap):
    """Largest whole-window row tile that stays sublane aligned and fits a conservative
    fraction of this generation's VMEM.  Falls back to the full sequence (block dim ==
    array dim, always legal) when window_size is not sublane aligned."""
    align = 8 if xbytes >= 4 else (16 if xbytes == 2 else 32)
    per_row = 4.0 * (12 * dim + hidden_chunk) + 2.0 * xbytes * dim   # rough bytes/row
    max_rows = max(window_size, int(0.25 * vmem_cap / per_row))
    best = None
    for cand in range(1, n_windows + 1):
        rows = cand * window_size
        if n_windows % cand or rows > max_rows or rows % align:
            continue
        best = cand
    if best is None:
        best = n_windows
    return best


def _create_attn_mask(length, window_size, shift_size):
    """Mirror of MCSwinlayer.create_mask -> (n_windows, ws, ws) of {0, -100}."""
    idx = jnp.arange(length)
    labels = ((idx >= length - window_size).astype(jnp.float32)
              + (idx >= length - shift_size).astype(jnp.float32))
    mw = labels.reshape(length // window_size, window_size)
    diff = mw[:, :, None] - mw[:, None, :]
    return jnp.where(diff != 0.0, -100.0, 0.0).astype(jnp.float32)


def _swin_block_apply(x, p, mask, shift, tw, vmem_cap):
    global _SINGLE_BUFFER_WEIGHTS
    B, length, dim = x.shape
    n_heads, ws, _ = p['pos'].shape
    hidden = p['w1'].shape[1]
    n_windows = length // ws
    rows = tw * ws
    with_mask = shift > 0
    hidden_chunk = _pick_hidden_chunk(hidden)
    xbytes = jnp.dtype(x.dtype).itemsize

    # The cyclic shift commutes with every per-token op -> run the whole block in
    # shifted coordinates and un-shift once at the end.
    x_in = jnp.roll(x, -shift, axis=1) if shift > 0 else x

    kernel = _make_block_kernel(with_mask, hidden_chunk)

    def x_map(b, w):
        return (b, w, 0)

    def c2(b, w):
        return (0, 0)

    def c3(b, w):
        return (0, 0, 0)

    # rough VMEM budget: bf16 weights (resident once) + f32 temporaries + streamed tiles
    est = (2 * (4 * dim * dim + 2 * dim * hidden)
           + 4 * rows * (12 * dim + hidden_chunk)
           + 2 * 2 * rows * dim * xbytes
           + 4 * (n_heads + 2 * tw) * ws * ws)
    vmem_limit = int(min(max(2 * est + (8 << 20), 32 << 20), vmem_cap - (2 << 20)))

    def run(single_buffer):
        def wspec(shape, index_map):
            if single_buffer:
                return pl.BlockSpec(shape, index_map, pipeline_mode=pl.Buffered(1))
            return pl.BlockSpec(shape, index_map)

        in_specs = [pl.BlockSpec((None, rows, dim), x_map),        # x (shifted coords)
                    wspec((1, dim), c2),                           # ln1 gamma
                    wspec((1, dim), c2),                           # ln1 beta
                    wspec((dim, 3 * dim), c2),                     # W_qkv (bf16)
                    wspec((1, 3 * dim), c2),                       # b_qkv
                    wspec((n_heads, ws, ws), c3)]                  # pos_embedding
        args = [x_in, p['ln1_g'], p['ln1_b'], p['wqkv'], p['bqkv'], p['pos']]
        if with_mask:
            in_specs.append(pl.BlockSpec((tw, ws, ws), lambda b, w: (w, 0, 0)))
            args.append(mask)
        in_specs += [wspec((dim, dim), c2),                        # W_proj (bf16)
                     wspec((1, dim), c2),                          # b_proj
                     wspec((1, dim), c2),                          # ln2 gamma
                     wspec((1, dim), c2),                          # ln2 beta
                     wspec((dim, hidden), c2),                     # W_fc1 (bf16)
                     wspec((1, hidden), c2),                       # b_fc1
                     wspec((hidden, dim), c2),                     # W_fc2 (bf16)
                     wspec((1, dim), c2)]                          # b_fc2
        args += [p['wproj'], p['bproj'], p['ln2_g'], p['ln2_b'],
                 p['w1'], p['b1'], p['w2'], p['b2']]

        return pl.pallas_call(
            kernel,
            out_shape=jax.ShapeDtypeStruct((B, length, dim), x.dtype),
            grid=(B, n_windows // tw),
            in_specs=in_specs,
            out_specs=pl.BlockSpec((None, rows, dim), x_map),
            compiler_params=pltpu.CompilerParams(
                dimension_semantics=("parallel", "parallel"),
                vmem_limit_bytes=vmem_limit),
        )(*args)

    if _SINGLE_BUFFER_WEIGHTS:
        try:
            out = run(True)
        except Exception:
            # pipeline_mode=pl.Buffered(1) unsupported on this jax build -> fall back to
            # default double buffering (correctness unaffected).
            _SINGLE_BUFFER_WEIGHTS = False
            out = run(False)
    else:
        out = run(False)

    if shift > 0:
        out = jnp.roll(out, shift, axis=1)
    return out


def mcswin_layer_forward(x, blocks_params, window_size):
    """Pallas equivalent of MCSwinlayer.forward(x, N) (downsample=False)."""
    B, N, dim = x.shape
    ws = window_size
    shift_size = ws // 2
    assert N % ws == 0, "sequence length must be a multiple of window_size"
    n_windows = N // ws

    vmem_cap = _vmem_capacity_bytes()
    hidden = blocks_params[0]['w1'].shape[1]
    hidden_chunk = _pick_hidden_chunk(hidden)
    xbytes = jnp.dtype(x.dtype).itemsize
    tw = _pick_window_tile(n_windows, ws, dim, hidden_chunk, xbytes, vmem_cap)

    shift_mask = _create_attn_mask(N, ws, shift_size)   # (nW, ws, ws), {0, -100}

    for i, p in enumerate(blocks_params):
        shift = 0 if i % 2 == 0 else shift_size
        # store the matmul weights in HBM as bf16 (MXU-native); biases / LN params /
        # pos / mask and all accumulation stay f32.
        p_dev = dict(p,
                     wqkv=p['wqkv'].astype(jnp.bfloat16),
                     wproj=p['wproj'].astype(jnp.bfloat16),
                     w1=p['w1'].astype(jnp.bfloat16),
                     w2=p['w2'].astype(jnp.bfloat16))
        mask = shift_mask if shift > 0 else None
        x = _swin_block_apply(x, p_dev, mask, shift, tw, vmem_cap)

    # downsample=False -> Identity, N unchanged.
    return x, N


# -------------------------- pure-JAX reference (torch semantics) -----------------

def mcswin_layer_reference(x, blocks_params, window_size):
    B, N, dim = x.shape
    ws = window_size
    shift_size = ws // 2
    n_windows = N // ws
    attn_mask = _create_attn_mask(N, ws, shift_size)
    for i, p in enumerate(blocks_params):
        shift = 0 if i % 2 == 0 else shift_size
        n_heads = p['pos'].shape[0]
        hd = dim // n_heads
        shortcut = x
        h = _layer_norm(x, p['ln1_g'], p['ln1_b'])
        if shift > 0:
            h = jnp.roll(h, -shift, axis=1)
        xw = h.reshape(B * n_windows, ws, dim)
        qkv = xw @ p['wqkv'] + p['bqkv']
        qkv = qkv.reshape(B * n_windows, ws, 3, n_heads, hd).transpose(2, 0, 3, 1, 4)
        q, k, v = qkv[0] * hd ** -0.5, qkv[1], qkv[2]
        attn = q @ jnp.swapaxes(k, -1, -2) + p['pos'][None]
        if shift > 0:
            attn = (attn.reshape(B, n_windows, n_heads, ws, ws)
                    + attn_mask[None, :, None]).reshape(B * n_windows, n_heads, ws, ws)
        attn = jax.nn.softmax(attn, axis=-1)
        ctx = (attn @ v).transpose(0, 2, 1, 3).reshape(B * n_windows, ws, dim)
        ctx = ctx @ p['wproj'] + p['bproj']
        ctx = ctx.reshape(B, N, dim)
        if shift > 0:
            ctx = jnp.roll(ctx, shift, axis=1)
        x = shortcut + ctx
        h2 = _layer_norm(x, p['ln2_g'], p['ln2_b'])
        z = jax.nn.gelu(h2 @ p['w1'] + p['b1'], approximate=False)
        x = x + z @ p['w2'] + p['b2']
    return x, N


# ----------------------------------- demo ----------------------------------------

def make_block_params(key, dim, num_heads, window_size, mlp_ratio=4):
    hidden = dim * mlp_ratio
    k = jax.random.split(key, 13)
    s_in = dim ** -0.5
    s_hid = hidden ** -0.5
    f32 = jnp.float32
    return dict(
        ln1_g=1.0 + 0.2 * jax.random.normal(k[0], (1, dim), f32),
        ln1_b=0.2 * jax.random.normal(k[1], (1, dim), f32),
        wqkv=s_in * jax.random.normal(k[2], (dim, 3 * dim), f32),
        bqkv=0.1 * jax.random.normal(k[3], (1, 3 * dim), f32),
        pos=0.5 * jax.random.normal(k[4], (num_heads, window_size, window_size), f32),
        wproj=s_in * jax.random.normal(k[5], (dim, dim), f32),
        bproj=0.1 * jax.random.normal(k[6], (1, dim), f32),
        ln2_g=1.0 + 0.2 * jax.random.normal(k[7], (1, dim), f32),
        ln2_b=0.2 * jax.random.normal(k[8], (1, dim), f32),
        w1=s_in * jax.random.normal(k[9], (dim, hidden), f32),
        b1=0.1 * jax.random.normal(k[10], (1, hidden), f32),
        w2=s_hid * jax.random.normal(k[11], (hidden, dim), f32),
        b2=0.1 * jax.random.normal(k[12], (1, dim), f32),
    )


if __name__ == "__main__":
    # Small shapes consistent with the module; depth=2 exercises both the plain
    # W-MSA block and the shifted, masked SW-MSA block.
    B, N, dim = 2, 16, 16
    depth, num_heads, window_size = 2, 2, 8

    key = jax.random.PRNGKey(0)
    kx, kp = jax.random.split(key)
    x = jax.random.normal(kx, (B, N, dim), dtype=jnp.float32)
    blocks = [make_block_params(bk, dim, num_heads, window_size)
              for bk in jax.random.split(kp, depth)]

    out, n_out = mcswin_layer_forward(x, blocks, window_size)
    out = jax.block_until_ready(out)

    ref, n_ref = mcswin_layer_reference(x, blocks, window_size)
    ref = jax.block_until_ready(ref)

    assert out.shape == ref.shape, (out.shape, ref.shape)
    assert int(n_out) == int(n_ref)
    # The kernel feeds the MXU bf16 operands (with f32 accumulation and f32 LN/softmax
    # statistics) while the reference is all-f32, so allow ~3% of the output scale.
    # Every structural term (shift mask, pos bias, residuals, biases, LN affine)
    # contributes far more than this by construction, so real bugs are still caught.
    max_err = float(jnp.max(jnp.abs(out - ref)))
    ref_scale = float(jnp.max(jnp.abs(ref)))
    assert max_err < 0.03 * max(ref_scale, 1.0), (max_err, ref_scale)
    print("KERNEL_OK")
</pallas_src>

<mosaic_0001>
module attributes {stable_mosaic.version = 11 : i64} {
  func.func @kernel(%arg0: i32, %arg1: i32, %arg2: memref<1x16x16xf32, #tpu.memory_space<vmem>>, %arg3: memref<1x16xf32, #tpu.memory_space<vmem>>, %arg4: memref<1x16xf32, #tpu.memory_space<vmem>>, %arg5: memref<16x48xbf16, #tpu.memory_space<vmem>>, %arg6: memref<1x48xf32, #tpu.memory_space<vmem>>, %arg7: memref<2x8x8xf32, #tpu.memory_space<vmem>>, %arg8: memref<16x16xbf16, #tpu.memory_space<vmem>>, %arg9: memref<1x16xf32, #tpu.memory_space<vmem>>, %arg10: memref<1x16xf32, #tpu.memory_space<vmem>>, %arg11: memref<1x16xf32, #tpu.memory_space<vmem>>, %arg12: memref<16x64xbf16, #tpu.memory_space<vmem>>, %arg13: memref<1x64xf32, #tpu.memory_space<vmem>>, %arg14: memref<64x16xbf16, #tpu.memory_space<vmem>>, %arg15: memref<1x16xf32, #tpu.memory_space<vmem>>, %arg16: memref<1x16x16xf32, #tpu.memory_space<vmem>>) attributes {dimension_semantics = [#tpu.dimension_semantics<parallel>, #tpu.dimension_semantics<parallel>], iteration_bounds = array<i64: 2, 1>, scalar_prefetch = 0 : i64, scratch_operands = 0 : i64, tpu.core_type = #tpu.core_type<tc>, window_params = [{transform_indices = @transform_0, window_bounds = array<i64: 1, 16, 16>}, {pipeline_mode = #tpu.pipeline_mode<synchronous>, transform_indices = @transform_1, window_bounds = array<i64: 1, 16>}, {pipeline_mode = #tpu.pipeline_mode<synchronous>, transform_indices = @transform_2, window_bounds = array<i64: 1, 16>}, {pipeline_mode = #tpu.pipeline_mode<synchronous>, transform_indices = @transform_3, window_bounds = array<i64: 16, 48>}, {pipeline_mode = #tpu.pipeline_mode<synchronous>, transform_indices = @transform_4, window_bounds = array<i64: 1, 48>}, {pipeline_mode = #tpu.pipeline_mode<synchronous>, transform_indices = @transform_5, window_bounds = array<i64: 2, 8, 8>}, {pipeline_mode = #tpu.pipeline_mode<synchronous>, transform_indices = @transform_6, window_bounds = array<i64: 16, 16>}, {pipeline_mode = #tpu.pipeline_mode<synchronous>, transform_indices = @transform_7, window_bounds = array<i64: 1, 16>}, {pipeline_mode = #tpu.pipeline_mode<synchronous>, transform_indices = @transform_8, window_bounds = array<i64: 1, 16>}, {pipeline_mode = #tpu.pipeline_mode<synchronous>, transform_indices = @transform_9, window_bounds = array<i64: 1, 16>}, {pipeline_mode = #tpu.pipeline_mode<synchronous>, transform_indices = @transform_10, window_bounds = array<i64: 16, 64>}, {pipeline_mode = #tpu.pipeline_mode<synchronous>, transform_indices = @transform_11, window_bounds = array<i64: 1, 64>}, {pipeline_mode = #tpu.pipeline_mode<synchronous>, transform_indices = @transform_12, window_bounds = array<i64: 64, 16>}, {pipeline_mode = #tpu.pipeline_mode<synchronous>, transform_indices = @transform_13, window_bounds = array<i64: 1, 16>}, {transform_indices = @transform_14, window_bounds = array<i64: 1, 16, 16>}]} {
    %c0 = arith.constant 0 : index
    %c0_0 = arith.constant 0 : index
    %c0_1 = arith.constant 0 : index
    %0 = vector.load %arg2[%c0, %c0_0, %c0_1] : memref<1x16x16xf32, #tpu.memory_space<vmem>>, vector<1x16x16xf32>
    %1 = vector.shape_cast %0 : vector<1x16x16xf32> to vector<16x16xf32>
    %c0_2 = arith.constant 0 : index
    %c0_3 = arith.constant 0 : index
    %2 = vector.load %arg3[%c0_2, %c0_3] : memref<1x16xf32, #tpu.memory_space<vmem>>, vector<1x16xf32>
    %c0_4 = arith.constant 0 : index
    %c0_5 = arith.constant 0 : index
    %3 = vector.load %arg4[%c0_4, %c0_5] : memref<1x16xf32, #tpu.memory_space<vmem>>, vector<1x16xf32>
    %cst = arith.constant dense<0.000000e+00> : vector<16xf32>
    %4 = vector.multi_reduction <add>, %1, %cst [1] : vector<16x16xf32> to vector<16xf32>
    %5 = vector.shape_cast %4 : vector<16xf32> to vector<16x1xf32>
    %cst_6 = arith.constant 1.600000e+01 : f32
    %6 = vector.broadcast %cst_6 : f32 to vector<16x1xf32>
    %7 = arith.divf %5, %6 : vector<16x1xf32>
    %8 = vector.broadcast %7 : vector<16x1xf32> to vector<16x16xf32>
    %9 = arith.subf %1, %8 : vector<16x16xf32>
    %10 = arith.mulf %9, %9 : vector<16x16xf32>
    %cst_7 = arith.constant dense<0.000000e+00> : vector<16xf32>
    %11 = vector.multi_reduction <add>, %10, %cst_7 [1] : vector<16x16xf32> to vector<16xf32>
    %12 = vector.shape_cast %11 : vector<16xf32> to vector<16x1xf32>
    %cst_8 = arith.constant 1.600000e+01 : f32
    %13 = vector.broadcast %cst_8 : f32 to vector<16x1xf32>
    %14 = arith.divf %12, %13 : vector<16x1xf32>
    %cst_9 = arith.constant 9.99999974E-6 : f32
    %15 = vector.broadcast %cst_9 : f32 to vector<16x1xf32>
    %16 = arith.addf %14, %15 : vector<16x1xf32>
    %17 = math.rsqrt %16 : vector<16x1xf32>
    %18 = vector.broadcast %17 : vector<16x1xf32> to vector<16x16xf32>
    %19 = arith.mulf %9, %18 : vector<16x16xf32>
    %20 = vector.broadcast %2 : vector<1x16xf32> to vector<16x16xf32>
    %21 = arith.mulf %19, %20 : vector<16x16xf32>
    %22 = vector.broadcast %3 : vector<1x16xf32> to vector<16x16xf32>
    %23 = arith.addf %21, %22 : vector<16x16xf32>
    %24 = arith.truncf %23 : vector<16x16xf32> to vector<16x16xbf16>
    %c0_10 = arith.constant 0 : index
    %c0_11 = arith.constant 0 : index
    %25 = vector.load %arg5[%c0_10, %c0_11] : memref<16x48xbf16, #tpu.memory_space<vmem>>, vector<16x48xbf16>
    %cst_12 = arith.constant dense<0.000000e+00> : vector<16x48xf32>
    %26 = tpu.matmul %24, %25, %cst_12 {dimension_numbers = #tpu.dot_dimension_numbers<[1], [0], [0], [1], [0, 0, 1, 1], [], []>} : vector<16x16xbf16>, vector<16x48xbf16>, vector<16x48xf32> -> vector<16x48xf32>
    %c0_13 = arith.constant 0 : index
    %c0_14 = arith.constant 0 : index
    %27 = vector.load %arg6[%c0_13, %c0_14] : memref<1x48xf32, #tpu.memory_space<vmem>>, vector<1x48xf32>
    %28 = vector.broadcast %27 : vector<1x48xf32> to vector<16x48xf32>
    %29 = arith.addf %26, %28 : vector<16x48xf32>
    %c0_15 = arith.constant 0 : index
    %c0_16 = arith.constant 0 : index
    %c0_17 = arith.constant 0 : index
    %30 = vector.load %arg7[%c0_15, %c0_16, %c0_17] : memref<2x8x8xf32, #tpu.memory_space<vmem>>, vector<2x8x8xf32>
    %31 = vector.extract_strided_slice %29 {offsets = [0, 0], sizes = [16, 8], strides = [1, 1]} : vector<16x48xf32> to vector<16x8xf32>
    %cst_18 = arith.constant 0.353553385 : f32
    %32 = vector.broadcast %cst_18 : f32 to vector<16x8xf32>
    %33 = arith.mulf %31, %32 : vector<16x8xf32>
    %34 = vector.shape_cast %33 : vector<16x8xf32> to vector<2x8x8xf32>
    %35 = vector.extract_strided_slice %29 {offsets = [0, 16], sizes = [16, 8], strides = [1, 1]} : vector<16x48xf32> to vector<16x8xf32>
    %36 = vector.shape_cast %35 : vector<16x8xf32> to vector<2x8x8xf32>
    %37 = vector.extract_strided_slice %29 {offsets = [0, 32], sizes = [16, 8], strides = [1, 1]} : vector<16x48xf32> to vector<16x8xf32>
    %38 = vector.shape_cast %37 : vector<16x8xf32> to vector<2x8x8xf32>
    %39 = arith.truncf %34 : vector<2x8x8xf32> to vector<2x8x8xbf16>
    %40 = arith.truncf %36 : vector<2x8x8xf32> to vector<2x8x8xbf16>
    "tpu.trace_start"() <{level = 10 : i32, message = "wqd,wkd->wqk"}> : () -> ()
    %cst_19 = arith.constant dense<0.000000e+00> : vector<2x8x8xf32>
    %41 = tpu.matmul %39, %40, %cst_19 {dimension_numbers = #tpu.dot_dimension_numbers<[2], [2], [1], [1], [0, 0, 0, 1, 1, 1], [0], [0]>} : vector<2x8x8xbf16>, vector<2x8x8xbf16>, vector<2x8x8xf32> -> vector<2x8x8xf32>
    "tpu.trace_stop"() : () -> ()
    %42 = vector.extract_strided_slice %30 {offsets = [0, 0, 0], sizes = [1, 8, 8], strides = [1, 1, 1]} : vector<2x8x8xf32> to vector<1x8x8xf32>
    %43 = vector.shape_cast %42 : vector<1x8x8xf32> to vector<8x8xf32>
    %44 = vector.shape_cast %43 : vector<8x8xf32> to vector<1x8x8xf32>
    %45 = vector.broadcast %44 : vector<1x8x8xf32> to vector<2x8x8xf32>
    %46 = arith.addf %41, %45 : vector<2x8x8xf32>
    %cst_20 = arith.constant dense<0xFF800000> : vector<2x8xf32>
    %47 = vector.multi_reduction <maximumf>, %46, %cst_20 [2] : vector<2x8x8xf32> to vector<2x8xf32>
    %48 = vector.shape_cast %47 : vector<2x8xf32> to vector<2x8x1xf32>
    %49 = vector.broadcast %48 : vector<2x8x1xf32> to vector<2x8x8xf32>
    %50 = arith.subf %46, %49 : vector<2x8x8xf32>
    %51 = math.exp %50 : vector<2x8x8xf32>
    %cst_21 = arith.constant dense<0.000000e+00> : vector<2x8xf32>
    %52 = vector.multi_reduction <add>, %51, %cst_21 [2] : vector<2x8x8xf32> to vector<2x8xf32>
    %53 = vector.shape_cast %52 : vector<2x8xf32> to vector<2x8x1xf32>
    %54 = tpu.reciprocal %53 {approx = true} : vector<2x8x1xf32> -> vector<2x8x1xf32>
    %55 = vector.broadcast %54 : vector<2x8x1xf32> to vector<2x8x8xf32>
    %56 = arith.mulf %51, %55 : vector<2x8x8xf32>
    %57 = arith.truncf %56 : vector<2x8x8xf32> to vector<2x8x8xbf16>
    %58 = arith.truncf %38 : vector<2x8x8xf32> to vector<2x8x8xbf16>
    "tpu.trace_start"() <{level = 10 : i32, message = "wqk,wkd->wqd"}> : () -> ()
    %cst_22 = arith.constant dense<0.000000e+00> : vector<2x8x8xf32>
    %59 = tpu.matmul %57, %58, %cst_22 {dimension_numbers = #tpu.dot_dimension_numbers<[2], [1], [1], [2], [0, 0, 0, 1, 1, 2], [0], [0]>} : vector<2x8x8xbf16>, vector<2x8x8xbf16>, vector<2x8x8xf32> -> vector<2x8x8xf32>
    "tpu.trace_stop"() : () -> ()
    %60 = vector.shape_cast %59 : vector<2x8x8xf32> to vector<16x8xf32>
    %61 = vector.extract_strided_slice %29 {offsets = [0, 8], sizes = [16, 8], strides = [1, 1]} : vector<16x48xf32> to vector<16x8xf32>
    %cst_23 = arith.constant 0.353553385 : f32
    %62 = vector.broadcast %cst_23 : f32 to vector<16x8xf32>
    %63 = arith.mulf %61, %62 : vector<16x8xf32>
    %64 = vector.shape_cast %63 : vector<16x8xf32> to vector<2x8x8xf32>
    %65 = vector.extract_strided_slice %29 {offsets = [0, 24], sizes = [16, 8], strides = [1, 1]} : vector<16x48xf32> to vector<16x8xf32>
    %66 = vector.shape_cast %65 : vector<16x8xf32> to vector<2x8x8xf32>
    %67 = vector.extract_strided_slice %29 {offsets = [0, 40], sizes = [16, 8], strides = [1, 1]} : vector<16x48xf32> to vector<16x8xf32>
    %68 = vector.shape_cast %67 : vector<16x8xf32> to vector<2x8x8xf32>
    %69 = arith.truncf %64 : vector<2x8x8xf32> to vector<2x8x8xbf16>
    %70 = arith.truncf %66 : vector<2x8x8xf32> to vector<2x8x8xbf16>
    "tpu.trace_start"() <{level = 10 : i32, message = "wqd,wkd->wqk"}> : () -> ()
    %cst_24 = arith.constant dense<0.000000e+00> : vector<2x8x8xf32>
    %71 = tpu.matmul %69, %70, %cst_24 {dimension_numbers = #tpu.dot_dimension_numbers<[2], [2], [1], [1], [0, 0, 0, 1, 1, 1], [0], [0]>} : vector<2x8x8xbf16>, vector<2x8x8xbf16>, vector<2x8x8xf32> -> vector<2x8x8xf32>
    "tpu.trace_stop"() : () -> ()
    %72 = vector.extract_strided_slice %30 {offsets = [1, 0, 0], sizes = [1, 8, 8], strides = [1, 1, 1]} : vector<2x8x8xf32> to vector<1x8x8xf32>
    %73 = vector.shape_cast %72 : vector<1x8x8xf32> to vector<8x8xf32>
    %74 = vector.shape_cast %73 : vector<8x8xf32> to vector<1x8x8xf32>
    %75 = vector.broadcast %74 : vector<1x8x8xf32> to vector<2x8x8xf32>
    %76 = arith.addf %71, %75 : vector<2x8x8xf32>
    %cst_25 = arith.constant dense<0xFF800000> : vector<2x8xf32>
    %77 = vector.multi_reduction <maximumf>, %76, %cst_25 [2] : vector<2x8x8xf32> to vector<2x8xf32>
    %78 = vector.shape_cast %77 : vector<2x8xf32> to vector<2x8x1xf32>
    %79 = vector.broadcast %78 : vector<2x8x1xf32> to vector<2x8x8xf32>
    %80 = arith.subf %76, %79 : vector<2x8x8xf32>
    %81 = math.exp %80 : vector<2x8x8xf32>
    %cst_26 = arith.constant dense<0.000000e+00> : vector<2x8xf32>
    %82 = vector.multi_reduction <add>, %81, %cst_26 [2] : vector<2x8x8xf32> to vector<2x8xf32>
    %83 = vector.shape_cast %82 : vector<2x8xf32> to vector<2x8x1xf32>
    %84 = tpu.reciprocal %83 {approx = true} : vector<2x8x1xf32> -> vector<2x8x1xf32>
    %85 = vector.broadcast %84 : vector<2x8x1xf32> to vector<2x8x8xf32>
    %86 = arith.mulf %81, %85 : vector<2x8x8xf32>
    %87 = arith.truncf %86 : vector<2x8x8xf32> to vector<2x8x8xbf16>
    %88 = arith.truncf %68 : vector<2x8x8xf32> to vector<2x8x8xbf16>
    "tpu.trace_start"() <{level = 10 : i32, message = "wqk,wkd->wqd"}> : () -> ()
    %cst_27 = arith.constant dense<0.000000e+00> : vector<2x8x8xf32>
    %89 = tpu.matmul %87, %88, %cst_27 {dimension_numbers = #tpu.dot_dimension_numbers<[2], [1], [1], [2], [0, 0, 0, 1, 1, 2], [0], [0]>} : vector<2x8x8xbf16>, vector<2x8x8xbf16>, vector<2x8x8xf32> -> vector<2x8x8xf32>
    "tpu.trace_stop"() : () -> ()
    %90 = vector.shape_cast %89 : vector<2x8x8xf32> to vector<16x8xf32>
    %91 = tpu.concatenate %60, %90 in 1 : vector<16x8xf32>, vector<16x8xf32> -> vector<16x16xf32>
    %92 = arith.truncf %91 : vector<16x16xf32> to vector<16x16xbf16>
    %c0_28 = arith.constant 0 : index
    %c0_29 = arith.constant 0 : index
    %93 = vector.load %arg8[%c0_28, %c0_29] : memref<16x16xbf16, #tpu.memory_space<vmem>>, vector<16x16xbf16>
    %cst_30 = arith.constant dense<0.000000e+00> : vector<16x16xf32>
    %94 = tpu.matmul %92, %93, %cst_30 {dimension_numbers = #tpu.dot_dimension_numbers<[1], [0], [0], [1], [0, 0, 1, 1], [], []>} : vector<16x16xbf16>, vector<16x16xbf16>, vector<16x16xf32> -> vector<16x16xf32>
    %c0_31 = arith.constant 0 : index
    %c0_32 = arith.constant 0 : index
    %95 = vector.load %arg9[%c0_31, %c0_32] : memref<1x16xf32, #tpu.memory_space<vmem>>, vector<1x16xf32>
    %96 = vector.broadcast %95 : vector<1x16xf32> to vector<16x16xf32>
    %97 = arith.addf %94, %96 : vector<16x16xf32>
    %98 = arith.addf %1, %97 : vector<16x16xf32>
    %c0_33 = arith.constant 0 : index
    %c0_34 = arith.constant 0 : index
    %99 = vector.load %arg10[%c0_33, %c0_34] : memref<1x16xf32, #tpu.memory_space<vmem>>, vector<1x16xf32>
    %c0_35 = arith.constant 0 : index
    %c0_36 = arith.constant 0 : index
    %100 = vector.load %arg11[%c0_35, %c0_36] : memref<1x16xf32, #tpu.memory_space<vmem>>, vector<1x16xf32>
    %cst_37 = arith.constant dense<0.000000e+00> : vector<16xf32>
    %101 = vector.multi_reduction <add>, %98, %cst_37 [1] : vector<16x16xf32> to vector<16xf32>
    %102 = vector.shape_cast %101 : vector<16xf32> to vector<16x1xf32>
    %cst_38 = arith.constant 1.600000e+01 : f32
    %103 = vector.broadcast %cst_38 : f32 to vector<16x1xf32>
    %104 = arith.divf %102, %103 : vector<16x1xf32>
    %105 = vector.broadcast %104 : vector<16x1xf32> to vector<16x16xf32>
    %106 = arith.subf %98, %105 : vector<16x16xf32>
    %107 = arith.mulf %106, %106 : vector<16x16xf32>
    %cst_39 = arith.constant dense<0.000000e+00> : vector<16xf32>
    %108 = vector.multi_reduction <add>, %107, %cst_39 [1] : vector<16x16xf32> to vector<16xf32>
    %109 = vector.shape_cast %108 : vector<16xf32> to vector<16x1xf32>
    %cst_40 = arith.constant 1.600000e+01 : f32
    %110 = vector.broadcast %cst_40 : f32 to vector<16x1xf32>
    %111 = arith.divf %109, %110 : vector<16x1xf32>
    %cst_41 = arith.constant 9.99999974E-6 : f32
    %112 = vector.broadcast %cst_41 : f32 to vector<16x1xf32>
    %113 = arith.addf %111, %112 : vector<16x1xf32>
    %114 = math.rsqrt %113 : vector<16x1xf32>
    %115 = vector.broadcast %114 : vector<16x1xf32> to vector<16x16xf32>
    %116 = arith.mulf %106, %115 : vector<16x16xf32>
    %117 = vector.broadcast %99 : vector<1x16xf32> to vector<16x16xf32>
    %118 = arith.mulf %116, %117 : vector<16x16xf32>
    %119 = vector.broadcast %100 : vector<1x16xf32> to vector<16x16xf32>
    %120 = arith.addf %118, %119 : vector<16x16xf32>
    %121 = arith.truncf %120 : vector<16x16xf32> to vector<16x16xbf16>
    %c0_42 = arith.constant 0 : index
    %c0_43 = arith.constant 0 : index
    %122 = vector.load %arg12[%c0_42, %c0_43] : memref<16x64xbf16, #tpu.memory_space<vmem>>, vector<16x64xbf16>
    %cst_44 = arith.constant dense<0.000000e+00> : vector<16x64xf32>
    %123 = tpu.matmul %121, %122, %cst_44 {dimension_numbers = #tpu.dot_dimension_numbers<[1], [0], [0], [1], [0, 0, 1, 1], [], []>} : vector<16x16xbf16>, vector<16x64xbf16>, vector<16x64xf32> -> vector<16x64xf32>
    %c0_45 = arith.constant 0 : index
    %c0_46 = arith.constant 0 : index
    %124 = vector.load %arg13[%c0_45, %c0_46] : memref<1x64xf32, #tpu.memory_space<vmem>>, vector<1x64xf32>
    %125 = vector.broadcast %124 : vector<1x64xf32> to vector<16x64xf32>
    %126 = arith.addf %123, %125 : vector<16x64xf32>
    %cst_47 = arith.constant 5.000000e-01 : f32
    %127 = vector.broadcast %cst_47 : f32 to vector<16x64xf32>
    %128 = arith.mulf %127, %126 : vector<16x64xf32>
    %cst_48 = arith.constant 0.707106769 : f32
    %129 = vector.broadcast %cst_48 : f32 to vector<16x64xf32>
    %130 = arith.mulf %126, %129 : vector<16x64xf32>
    %cst_49 = arith.constant 0.000000e+00 : f32
    %131 = vector.broadcast %cst_49 : f32 to vector<16x64xf32>
    %132 = arith.cmpf olt, %130, %131 : vector<16x64xf32>
    %cst_50 = arith.constant -1.000000e+00 : f32
    %cst_51 = arith.constant 1.000000e+00 : f32
    %133 = vector.broadcast %cst_50 : f32 to vector<16x64xf32>
    %134 = vector.broadcast %cst_51 : f32 to vector<16x64xf32>
    %135 = arith.select %132, %133, %134 : vector<16x64xi1>, vector<16x64xf32>
    %136 = math.absf %130 : vector<16x64xf32>
    %cst_52 = arith.constant 0.327591091 : f32
    %137 = vector.broadcast %cst_52 : f32 to vector<16x64xf32>
    %138 = arith.mulf %137, %136 : vector<16x64xf32>
    %cst_53 = arith.constant 1.000000e+00 : f32
    %139 = vector.broadcast %cst_53 : f32 to vector<16x64xf32>
    %140 = arith.addf %139, %138 : vector<16x64xf32>
    %cst_54 = arith.constant 1.000000e+00 : f32
    %141 = vector.broadcast %cst_54 : f32 to vector<16x64xf32>
    %142 = arith.divf %141, %140 : vector<16x64xf32>
    %cst_55 = arith.constant 1.06140542 : f32
    %143 = vector.broadcast %cst_55 : f32 to vector<16x64xf32>
    %144 = arith.mulf %143, %142 : vector<16x64xf32>
    %cst_56 = arith.constant -1.45315206 : f32
    %145 = vector.broadcast %cst_56 : f32 to vector<16x64xf32>
    %146 = arith.addf %144, %145 : vector<16x64xf32>
    %147 = arith.mulf %146, %142 : vector<16x64xf32>
    %cst_57 = arith.constant 1.42141378 : f32
    %148 = vector.broadcast %cst_57 : f32 to vector<16x64xf32>
    %149 = arith.addf %147, %148 : vector<16x64xf32>
    %150 = arith.mulf %149, %142 : vector<16x64xf32>
    %cst_58 = arith.constant -0.284496725 : f32
    %151 = vector.broadcast %cst_58 : f32 to vector<16x64xf32>
    %152 = arith.addf %150, %151 : vector<16x64xf32>
    %153 = arith.mulf %152, %142 : vector<16x64xf32>
    %cst_59 = arith.constant 0.254829586 : f32
    %154 = vector.broadcast %cst_59 : f32 to vector<16x64xf32>
    %155 = arith.addf %153, %154 : vector<16x64xf32>
    %156 = arith.mulf %155, %142 : vector<16x64xf32>
    %cst_60 = arith.constant 0.000000e+00 : f32
    %157 = vector.broadcast %cst_60 : f32 to vector<16x64xf32>
    %158 = arith.subf %157, %136 : vector<16x64xf32>
    %159 = arith.mulf %158, %136 : vector<16x64xf32>
    %160 = math.exp %159 : vector<16x64xf32>
    %161 = arith.mulf %156, %160 : vector<16x64xf32>
    %cst_61 = arith.constant 1.000000e+00 : f32
    %162 = vector.broadcast %cst_61 : f32 to vector<16x64xf32>
    %163 = arith.subf %162, %161 : vector<16x64xf32>
    %164 = arith.mulf %135, %163 : vector<16x64xf32>
    %cst_62 = arith.constant 1.000000e+00 : f32
    %165 = vector.broadcast %cst_62 : f32 to vector<16x64xf32>
    %166 = arith.addf %165, %164 : vector<16x64xf32>
    %167 = arith.mulf %128, %166 : vector<16x64xf32>
    %168 = arith.truncf %167 : vector<16x64xf32> to vector<16x64xbf16>
    %c0_63 = arith.constant 0 : index
    %c0_64 = arith.constant 0 : index
    %169 = vector.load %arg14[%c0_63, %c0_64] : memref<64x16xbf16, #tpu.memory_space<vmem>>, vector<64x16xbf16>
    %cst_65 = arith.constant dense<0.000000e+00> : vector<16x16xf32>
    %170 = tpu.matmul %168, %169, %cst_65 {dimension_numbers = #tpu.dot_dimension_numbers<[1], [0], [0], [1], [0, 0, 1, 1], [], []>} : vector<16x64xbf16>, vector<64x16xbf16>, vector<16x16xf32> -> vector<16x16xf32>
    %171 = arith.addf %98, %170 : vector<16x16xf32>
    %c0_66 = arith.constant 0 : index
    %c0_67 = arith.constant 0 : index
    %172 = vector.load %arg15[%c0_66, %c0_67] : memref<1x16xf32, #tpu.memory_space<vmem>>, vector<1x16xf32>
    %173 = vector.broadcast %172 : vector<1x16xf32> to vector<16x16xf32>
    %174 = arith.addf %171, %173 : vector<16x16xf32>
    %c0_68 = arith.constant 0 : index
    %c0_69 = arith.constant 0 : index
    %c0_70 = arith.constant 0 : index
    %175 = vector.load %arg16[%c0_68, %c0_69, %c0_70] : memref<1x16x16xf32, #tpu.memory_space<vmem>>, vector<1x16x16xf32>
    %176 = vector.shape_cast %175 : vector<1x16x16xf32> to vector<16x16xf32>
    %177 = vector.shape_cast %174 : vector<16x16xf32> to vector<1x16x16xf32>
    tpu.vector_store %arg16[%c0_68, %c0_69, %c0_70], %177 {strides = array<i32>} : memref<1x16x16xf32, #tpu.memory_space<vmem>>, vector<1x16x16xf32>,
    return
  }
  func.func @transform_0(%arg0: i32, %arg1: i32) -> (i32, i32, i32) {
    %c0_i32 = arith.constant 0 : i32
    %c0_i32_0 = arith.constant 0 : i32
    return %arg0, %arg1, %c0_i32 : i32, i32, i32
  }
  func.func @transform_1(%arg0: i32, %arg1: i32) -> (i32, i32) {
    %c0_i32 = arith.constant 0 : i32
    %c0_i32_0 = arith.constant 0 : i32
    %c0_i32_1 = arith.constant 0 : i32
    return %c0_i32, %c0_i32_0 : i32, i32
  }
  func.func @transform_2(%arg0: i32, %arg1: i32) -> (i32, i32) {
    %c0_i32 = arith.constant 0 : i32
    %c0_i32_0 = arith.constant 0 : i32
    %c0_i32_1 = arith.constant 0 : i32
    return %c0_i32, %c0_i32_0 : i32, i32
  }
  func.func @transform_3(%arg0: i32, %arg1: i32) -> (i32, i32) {
    %c0_i32 = arith.constant 0 : i32
    %c0_i32_0 = arith.constant 0 : i32
    %c0_i32_1 = arith.constant 0 : i32
    return %c0_i32, %c0_i32_0 : i32, i32
  }
  func.func @transform_4(%arg0: i32, %arg1: i32) -> (i32, i32) {
    %c0_i32 = arith.constant 0 : i32
    %c0_i32_0 = arith.constant 0 : i32
    %c0_i32_1 = arith.constant 0 : i32
    return %c0_i32, %c0_i32_0 : i32, i32
  }
  func.func @transform_5(%arg0: i32, %arg1: i32) -> (i32, i32, i32) {
    %c0_i32 = arith.constant 0 : i32
    %c0_i32_0 = arith.constant 0 : i32
    %c0_i32_1 = arith.constant 0 : i32
    %c0_i32_2 = arith.constant 0 : i32
    return %c0_i32, %c0_i32_0, %c0_i32_1 : i32, i32, i32
  }
  func.func @transform_6(%arg0: i32, %arg1: i32) -> (i32, i32) {
    %c0_i32 = arith.constant 0 : i32
    %c0_i32_0 = arith.constant 0 : i32
    %c0_i32_1 = arith.constant 0 : i32
    return %c0_i32, %c0_i32_0 : i32, i32
  }
  func.func @transform_7(%arg0: i32, %arg1: i32) -> (i32, i32) {
    %c0_i32 = arith.constant 0 : i32
    %c0_i32_0 = arith.constant 0 : i32
    %c0_i32_1 = arith.constant 0 : i32
    return %c0_i32, %c0_i32_0 : i32, i32
  }
  func.func @transform_8(%arg0: i32, %arg1: i32) -> (i32, i32) {
    %c0_i32 = arith.constant 0 : i32
    %c0_i32_0 = arith.constant 0 : i32
    %c0_i32_1 = arith.constant 0 : i32
    return %c0_i32, %c0_i32_0 : i32, i32
  }
  func.func @transform_9(%arg0: i32, %arg1: i32) -> (i32, i32) {
    %c0_i32 = arith.constant 0 : i32
    %c0_i32_0 = arith.constant 0 : i32
    %c0_i32_1 = arith.constant 0 : i32
    return %c0_i32, %c0_i32_0 : i32, i32
  }
  func.func @transform_10(%arg0: i32, %arg1: i32) -> (i32, i32) {
    %c0_i32 = arith.constant 0 : i32
    %c0_i32_0 = arith.constant 0 : i32
    %c0_i32_1 = arith.constant 0 : i32
    return %c0_i32, %c0_i32_0 : i32, i32
  }
  func.func @transform_11(%arg0: i32, %arg1: i32) -> (i32, i32) {
    %c0_i32 = arith.constant 0 : i32
    %c0_i32_0 = arith.constant 0 : i32
    %c0_i32_1 = arith.constant 0 : i32
    return %c0_i32, %c0_i32_0 : i32, i32
  }
  func.func @transform_12(%arg0: i32, %arg1: i32) -> (i32, i32) {
    %c0_i32 = arith.constant 0 : i32
    %c0_i32_0 = arith.constant 0 : i32
    %c0_i32_1 = arith.constant 0 : i32
    return %c0_i32, %c0_i32_0 : i32, i32
  }
  func.func @transform_13(%arg0: i32, %arg1: i32) -> (i32, i32) {
    %c0_i32 = arith.constant 0 : i32
    %c0_i32_0 = arith.constant 0 : i32
    %c0_i32_1 = arith.constant 0 : i32
    return %c0_i32, %c0_i32_0 : i32, i32
  }
  func.func @transform_14(%arg0: i32, %arg1: i32) -> (i32, i32, i32) {
    %c0_i32 = arith.constant 0 : i32
    %c0_i32_0 = arith.constant 0 : i32
    return %arg0, %arg1, %c0_i32 : i32, i32, i32
  }
}

module attributes {stable_mosaic.version = 11 : i64} {
  func.func @kernel(%arg0: i32, %arg1: i32, %arg2: memref<1x16x16xf32, #tpu.memory_space<vmem>>, %arg3: memref<1x16xf32, #tpu.memory_space<vmem>>, %arg4: memref<1x16xf32, #tpu.memory_space<vmem>>, %arg5: memref<16x48xbf16, #tpu.memory_space<vmem>>, %arg6: memref<1x48xf32, #tpu.memory_space<vmem>>, %arg7: memref<2x8x8xf32, #tpu.memory_space<vmem>>, %arg8: memref<16x16xbf16, #tpu.memory_space<vmem>>, %arg9: memref<1x16xf32, #tpu.memory_space<vmem>>, %arg10: memref<1x16xf32, #tpu.memory_space<vmem>>, %arg11: memref<1x16xf32, #tpu.memory_space<vmem>>, %arg12: memref<16x64xbf16, #tpu.memory_space<vmem>>, %arg13: memref<1x64xf32, #tpu.memory_space<vmem>>, %arg14: memref<64x16xbf16, #tpu.memory_space<vmem>>, %arg15: memref<1x16xf32, #tpu.memory_space<vmem>>, %arg16: memref<1x16x16xf32, #tpu.memory_space<vmem>>) attributes {dimension_semantics = [#tpu.dimension_semantics<parallel>, #tpu.dimension_semantics<parallel>], iteration_bounds = array<i64: 2, 1>, scalar_prefetch = 0 : i64, scratch_operands = 0 : i64, tpu.core_type = #tpu.core_type<tc>, window_params = [{transform_indices = @transform_0, window_bounds = array<i64: 1, 16, 16>}, {pipeline_mode = #tpu.pipeline_mode<synchronous>, transform_indices = @transform_1, window_bounds = array<i64: 1, 16>}, {pipeline_mode = #tpu.pipeline_mode<synchronous>, transform_indices = @transform_2, window_bounds = array<i64: 1, 16>}, {pipeline_mode = #tpu.pipeline_mode<synchronous>, transform_indices = @transform_3, window_bounds = array<i64: 16, 48>}, {pipeline_mode = #tpu.pipeline_mode<synchronous>, transform_indices = @transform_4, window_bounds = array<i64: 1, 48>}, {pipeline_mode = #tpu.pipeline_mode<synchronous>, transform_indices = @transform_5, window_bounds = array<i64: 2, 8, 8>}, {pipeline_mode = #tpu.pipeline_mode<synchronous>, transform_indices = @transform_6, window_bounds = array<i64: 16, 16>}, {pipeline_mode = #tpu.pipeline_mode<synchronous>, transform_indices = @transform_7, window_bounds = array<i64: 1, 16>}, {pipeline_mode = #tpu.pipeline_mode<synchronous>, transform_indices = @transform_8, window_bounds = array<i64: 1, 16>}, {pipeline_mode = #tpu.pipeline_mode<synchronous>, transform_indices = @transform_9, window_bounds = array<i64: 1, 16>}, {pipeline_mode = #tpu.pipeline_mode<synchronous>, transform_indices = @transform_10, window_bounds = array<i64: 16, 64>}, {pipeline_mode = #tpu.pipeline_mode<synchronous>, transform_indices = @transform_11, window_bounds = array<i64: 1, 64>}, {pipeline_mode = #tpu.pipeline_mode<synchronous>, transform_indices = @transform_12, window_bounds = array<i64: 64, 16>}, {pipeline_mode = #tpu.pipeline_mode<synchronous>, transform_indices = @transform_13, window_bounds = array<i64: 1, 16>}, {transform_indices = @transform_14, window_bounds = array<i64: 1, 16, 16>}]} {
    %c0 = arith.constant 0 : index
    %c0_0 = arith.constant 0 : index
    %c0_1 = arith.constant 0 : index
    %0 = vector.load %arg2[%c0, %c0_0, %c0_1] : memref<1x16x16xf32, #tpu.memory_space<vmem>>, vector<1x16x16xf32>
    %1 = vector.shape_cast %0 : vector<1x16x16xf32> to vector<16x16xf32>
    %c0_2 = arith.constant 0 : index
    %c0_3 = arith.constant 0 : index
    %2 = vector.load %arg3[%c0_2, %c0_3] : memref<1x16xf32, #tpu.memory_space<vmem>>, vector<1x16xf32>
    %c0_4 = arith.constant 0 : index
    %c0_5 = arith.constant 0 : index
    %3 = vector.load %arg4[%c0_4, %c0_5] : memref<1x16xf32, #tpu.memory_space<vmem>>, vector<1x16xf32>
    %cst = arith.constant dense<0.000000e+00> : vector<16xf32>
    %4 = vector.multi_reduction <add>, %1, %cst [1] : vector<16x16xf32> to vector<16xf32>
    %5 = vector.shape_cast %4 : vector<16xf32> to vector<16x1xf32>
    %cst_6 = arith.constant 1.600000e+01 : f32
    %6 = vector.broadcast %cst_6 : f32 to vector<16x1xf32>
    %7 = arith.divf %5, %6 : vector<16x1xf32>
    %8 = vector.broadcast %7 : vector<16x1xf32> to vector<16x16xf32>
    %9 = arith.subf %1, %8 : vector<16x16xf32>
    %10 = arith.mulf %9, %9 : vector<16x16xf32>
    %cst_7 = arith.constant dense<0.000000e+00> : vector<16xf32>
    %11 = vector.multi_reduction <add>, %10, %cst_7 [1] : vector<16x16xf32> to vector<16xf32>
    %12 = vector.shape_cast %11 : vector<16xf32> to vector<16x1xf32>
    %cst_8 = arith.constant 1.600000e+01 : f32
    %13 = vector.broadcast %cst_8 : f32 to vector<16x1xf32>
    %14 = arith.divf %12, %13 : vector<16x1xf32>
    %cst_9 = arith.constant 9.99999974E-6 : f32
    %15 = vector.broadcast %cst_9 : f32 to vector<16x1xf32>
    %16 = arith.addf %14, %15 : vector<16x1xf32>
    %17 = math.rsqrt %16 : vector<16x1xf32>
    %18 = vector.broadcast %17 : vector<16x1xf32> to vector<16x16xf32>
    %19 = arith.mulf %9, %18 : vector<16x16xf32>
    %20 = vector.broadcast %2 : vector<1x16xf32> to vector<16x16xf32>
    %21 = arith.mulf %19, %20 : vector<16x16xf32>
    %22 = vector.broadcast %3 : vector<1x16xf32> to vector<16x16xf32>
    %23 = arith.addf %21, %22 : vector<16x16xf32>
    %24 = arith.truncf %23 : vector<16x16xf32> to vector<16x16xbf16>
    %c0_10 = arith.constant 0 : index
    %c0_11 = arith.constant 0 : index
    %25 = vector.load %arg5[%c0_10, %c0_11] : memref<16x48xbf16, #tpu.memory_space<vmem>>, vector<16x48xbf16>
    %cst_12 = arith.constant dense<0.000000e+00> : vector<16x48xf32>
    %26 = tpu.matmul %24, %25, %cst_12 {dimension_numbers = #tpu.dot_dimension_numbers<[1], [0], [0], [1], [0, 0, 1, 1], [], []>} : vector<16x16xbf16>, vector<16x48xbf16>, vector<16x48xf32> -> vector<16x48xf32>
    %c0_13 = arith.constant 0 : index
    %c0_14 = arith.constant 0 : index
    %27 = vector.load %arg6[%c0_13, %c0_14] : memref<1x48xf32, #tpu.memory_space<vmem>>, vector<1x48xf32>
    %28 = vector.broadcast %27 : vector<1x48xf32> to vector<16x48xf32>
    %29 = arith.addf %26, %28 : vector<16x48xf32>
    %c0_15 = arith.constant 0 : index
    %c0_16 = arith.constant 0 : index
    %c0_17 = arith.constant 0 : index
    %30 = vector.load %arg7[%c0_15, %c0_16, %c0_17] : memref<2x8x8xf32, #tpu.memory_space<vmem>>, vector<2x8x8xf32>
    %31 = vector.extract_strided_slice %29 {offsets = [0, 0], sizes = [16, 8], strides = [1, 1]} : vector<16x48xf32> to vector<16x8xf32>
    %cst_18 = arith.constant 0.353553385 : f32
    %32 = vector.broadcast %cst_18 : f32 to vector<16x8xf32>
    %33 = arith.mulf %31, %32 : vector<16x8xf32>
    %34 = vector.shape_cast %33 : vector<16x8xf32> to vector<2x8x8xf32>
    %35 = vector.extract_strided_slice %29 {offsets = [0, 16], sizes = [16, 8], strides = [1, 1]} : vector<16x48xf32> to vector<16x8xf32>
    %36 = vector.shape_cast %35 : vector<16x8xf32> to vector<2x8x8xf32>
    %37 = vector.extract_strided_slice %29 {offsets = [0, 32], sizes = [16, 8], strides = [1, 1]} : vector<16x48xf32> to vector<16x8xf32>
    %38 = vector.shape_cast %37 : vector<16x8xf32> to vector<2x8x8xf32>
    %39 = arith.truncf %34 : vector<2x8x8xf32> to vector<2x8x8xbf16>
    %40 = arith.truncf %36 : vector<2x8x8xf32> to vector<2x8x8xbf16>
    "tpu.trace_start"() <{level = 10 : i32, message = "wqd,wkd->wqk"}> : () -> ()
    %cst_19 = arith.constant dense<0.000000e+00> : vector<2x8x8xf32>
    %41 = tpu.matmul %39, %40, %cst_19 {dimension_numbers = #tpu.dot_dimension_numbers<[2], [2], [1], [1], [0, 0, 0, 1, 1, 1], [0], [0]>} : vector<2x8x8xbf16>, vector<2x8x8xbf16>, vector<2x8x8xf32> -> vector<2x8x8xf32>
    "tpu.trace_stop"() : () -> ()
    %42 = vector.extract_strided_slice %30 {offsets = [0, 0, 0], sizes = [1, 8, 8], strides = [1, 1, 1]} : vector<2x8x8xf32> to vector<1x8x8xf32>
    %43 = vector.shape_cast %42 : vector<1x8x8xf32> to vector<8x8xf32>
    %44 = vector.shape_cast %43 : vector<8x8xf32> to vector<1x8x8xf32>
    %45 = vector.broadcast %44 : vector<1x8x8xf32> to vector<2x8x8xf32>
    %46 = arith.addf %41, %45 : vector<2x8x8xf32>
    %cst_20 = arith.constant dense<0xFF800000> : vector<2x8xf32>
    %47 = vector.multi_reduction <maximumf>, %46, %cst_20 [2] : vector<2x8x8xf32> to vector<2x8xf32>
    %48 = vector.shape_cast %47 : vector<2x8xf32> to vector<2x8x1xf32>
    %49 = vector.broadcast %48 : vector<2x8x1xf32> to vector<2x8x8xf32>
    %50 = arith.subf %46, %49 : vector<2x8x8xf32>
    %51 = math.exp %50 : vector<2x8x8xf32>
    %cst_21 = arith.constant dense<0.000000e+00> : vector<2x8xf32>
    %52 = vector.multi_reduction <add>, %51, %cst_21 [2] : vector<2x8x8xf32> to vector<2x8xf32>
    %53 = vector.shape_cast %52 : vector<2x8xf32> to vector<2x8x1xf32>
    %54 = tpu.reciprocal %53 {approx = true} : vector<2x8x1xf32> -> vector<2x8x1xf32>
    %55 = vector.broadcast %54 : vector<2x8x1xf32> to vector<2x8x8xf32>
    %56 = arith.mulf %51, %55 : vector<2x8x8xf32>
    %57 = arith.truncf %56 : vector<2x8x8xf32> to vector<2x8x8xbf16>
    %58 = arith.truncf %38 : vector<2x8x8xf32> to vector<2x8x8xbf16>
    "tpu.trace_start"() <{level = 10 : i32, message = "wqk,wkd->wqd"}> : () -> ()
    %cst_22 = arith.constant dense<0.000000e+00> : vector<2x8x8xf32>
    %59 = tpu.matmul %57, %58, %cst_22 {dimension_numbers = #tpu.dot_dimension_numbers<[2], [1], [1], [2], [0, 0, 0, 1, 1, 2], [0], [0]>} : vector<2x8x8xbf16>, vector<2x8x8xbf16>, vector<2x8x8xf32> -> vector<2x8x8xf32>
    "tpu.trace_stop"() : () -> ()
    %60 = vector.shape_cast %59 : vector<2x8x8xf32> to vector<16x8xf32>
    %61 = vector.extract_strided_slice %29 {offsets = [0, 8], sizes = [16, 8], strides = [1, 1]} : vector<16x48xf32> to vector<16x8xf32>
    %cst_23 = arith.constant 0.353553385 : f32
    %62 = vector.broadcast %cst_23 : f32 to vector<16x8xf32>
    %63 = arith.mulf %61, %62 : vector<16x8xf32>
    %64 = vector.shape_cast %63 : vector<16x8xf32> to vector<2x8x8xf32>
    %65 = vector.extract_strided_slice %29 {offsets = [0, 24], sizes = [16, 8], strides = [1, 1]} : vector<16x48xf32> to vector<16x8xf32>
    %66 = vector.shape_cast %65 : vector<16x8xf32> to vector<2x8x8xf32>
    %67 = vector.extract_strided_slice %29 {offsets = [0, 40], sizes = [16, 8], strides = [1, 1]} : vector<16x48xf32> to vector<16x8xf32>
    %68 = vector.shape_cast %67 : vector<16x8xf32> to vector<2x8x8xf32>
    %69 = arith.truncf %64 : vector<2x8x8xf32> to vector<2x8x8xbf16>
    %70 = arith.truncf %66 : vector<2x8x8xf32> to vector<2x8x8xbf16>
    "tpu.trace_start"() <{level = 10 : i32, message = "wqd,wkd->wqk"}> : () -> ()
    %cst_24 = arith.constant dense<0.000000e+00> : vector<2x8x8xf32>
    %71 = tpu.matmul %69, %70, %cst_24 {dimension_numbers = #tpu.dot_dimension_numbers<[2], [2], [1], [1], [0, 0, 0, 1, 1, 1], [0], [0]>} : vector<2x8x8xbf16>, vector<2x8x8xbf16>, vector<2x8x8xf32> -> vector<2x8x8xf32>
    "tpu.trace_stop"() : () -> ()
    %72 = vector.extract_strided_slice %30 {offsets = [1, 0, 0], sizes = [1, 8, 8], strides = [1, 1, 1]} : vector<2x8x8xf32> to vector<1x8x8xf32>
    %73 = vector.shape_cast %72 : vector<1x8x8xf32> to vector<8x8xf32>
    %74 = vector.shape_cast %73 : vector<8x8xf32> to vector<1x8x8xf32>
    %75 = vector.broadcast %74 : vector<1x8x8xf32> to vector<2x8x8xf32>
    %76 = arith.addf %71, %75 : vector<2x8x8xf32>
    %cst_25 = arith.constant dense<0xFF800000> : vector<2x8xf32>
    %77 = vector.multi_reduction <maximumf>, %76, %cst_25 [2] : vector<2x8x8xf32> to vector<2x8xf32>
    %78 = vector.shape_cast %77 : vector<2x8xf32> to vector<2x8x1xf32>
    %79 = vector.broadcast %78 : vector<2x8x1xf32> to vector<2x8x8xf32>
    %80 = arith.subf %76, %79 : vector<2x8x8xf32>
    %81 = math.exp %80 : vector<2x8x8xf32>
    %cst_26 = arith.constant dense<0.000000e+00> : vector<2x8xf32>
    %82 = vector.multi_reduction <add>, %81, %cst_26 [2] : vector<2x8x8xf32> to vector<2x8xf32>
    %83 = vector.shape_cast %82 : vector<2x8xf32> to vector<2x8x1xf32>
    %84 = tpu.reciprocal %83 {approx = true} : vector<2x8x1xf32> -> vector<2x8x1xf32>
    %85 = vector.broadcast %84 : vector<2x8x1xf32> to vector<2x8x8xf32>
    %86 = arith.mulf %81, %85 : vector<2x8x8xf32>
    %87 = arith.truncf %86 : vector<2x8x8xf32> to vector<2x8x8xbf16>
    %88 = arith.truncf %68 : vector<2x8x8xf32> to vector<2x8x8xbf16>
    "tpu.trace_start"() <{level = 10 : i32, message = "wqk,wkd->wqd"}> : () -> ()
    %cst_27 = arith.constant dense<0.000000e+00> : vector<2x8x8xf32>
    %89 = tpu.matmul %87, %88, %cst_27 {dimension_numbers = #tpu.dot_dimension_numbers<[2], [1], [1], [2], [0, 0, 0, 1, 1, 2], [0], [0]>} : vector<2x8x8xbf16>, vector<2x8x8xbf16>, vector<2x8x8xf32> -> vector<2x8x8xf32>
    "tpu.trace_stop"() : () -> ()
    %90 = vector.shape_cast %89 : vector<2x8x8xf32> to vector<16x8xf32>
    %91 = tpu.concatenate %60, %90 in 1 : vector<16x8xf32>, vector<16x8xf32> -> vector<16x16xf32>
    %92 = arith.truncf %91 : vector<16x16xf32> to vector<16x16xbf16>
    %c0_28 = arith.constant 0 : index
    %c0_29 = arith.constant 0 : index
    %93 = vector.load %arg8[%c0_28, %c0_29] : memref<16x16xbf16, #tpu.memory_space<vmem>>, vector<16x16xbf16>
    %cst_30 = arith.constant dense<0.000000e+00> : vector<16x16xf32>
    %94 = tpu.matmul %92, %93, %cst_30 {dimension_numbers = #tpu.dot_dimension_numbers<[1], [0], [0], [1], [0, 0, 1, 1], [], []>} : vector<16x16xbf16>, vector<16x16xbf16>, vector<16x16xf32> -> vector<16x16xf32>
    %c0_31 = arith.constant 0 : index
    %c0_32 = arith.constant 0 : index
    %95 = vector.load %arg9[%c0_31, %c0_32] : memref<1x16xf32, #tpu.memory_space<vmem>>, vector<1x16xf32>
    %96 = vector.broadcast %95 : vector<1x16xf32> to vector<16x16xf32>
    %97 = arith.addf %94, %96 : vector<16x16xf32>
    %98 = arith.addf %1, %97 : vector<16x16xf32>
    %c0_33 = arith.constant 0 : index
    %c0_34 = arith.constant 0 : index
    %99 = vector.load %arg10[%c0_33, %c0_34] : memref<1x16xf32, #tpu.memory_space<vmem>>, vector<1x16xf32>
    %c0_35 = arith.constant 0 : index
    %c0_36 = arith.constant 0 : index
    %100 = vector.load %arg11[%c0_35, %c0_36] : memref<1x16xf32, #tpu.memory_space<vmem>>, vector<1x16xf32>
    %cst_37 = arith.constant dense<0.000000e+00> : vector<16xf32>
    %101 = vector.multi_reduction <add>, %98, %cst_37 [1] : vector<16x16xf32> to vector<16xf32>
    %102 = vector.shape_cast %101 : vector<16xf32> to vector<16x1xf32>
    %cst_38 = arith.constant 1.600000e+01 : f32
    %103 = vector.broadcast %cst_38 : f32 to vector<16x1xf32>
    %104 = arith.divf %102, %103 : vector<16x1xf32>
    %105 = vector.broadcast %104 : vector<16x1xf32> to vector<16x16xf32>
    %106 = arith.subf %98, %105 : vector<16x16xf32>
    %107 = arith.mulf %106, %106 : vector<16x16xf32>
    %cst_39 = arith.constant dense<0.000000e+00> : vector<16xf32>
    %108 = vector.multi_reduction <add>, %107, %cst_39 [1] : vector<16x16xf32> to vector<16xf32>
    %109 = vector.shape_cast %108 : vector<16xf32> to vector<16x1xf32>
    %cst_40 = arith.constant 1.600000e+01 : f32
    %110 = vector.broadcast %cst_40 : f32 to vector<16x1xf32>
    %111 = arith.divf %109, %110 : vector<16x1xf32>
    %cst_41 = arith.constant 9.99999974E-6 : f32
    %112 = vector.broadcast %cst_41 : f32 to vector<16x1xf32>
    %113 = arith.addf %111, %112 : vector<16x1xf32>
    %114 = math.rsqrt %113 : vector<16x1xf32>
    %115 = vector.broadcast %114 : vector<16x1xf32> to vector<16x16xf32>
    %116 = arith.mulf %106, %115 : vector<16x16xf32>
    %117 = vector.broadcast %99 : vector<1x16xf32> to vector<16x16xf32>
    %118 = arith.mulf %116, %117 : vector<16x16xf32>
    %119 = vector.broadcast %100 : vector<1x16xf32> to vector<16x16xf32>
    %120 = arith.addf %118, %119 : vector<16x16xf32>
    %121 = arith.truncf %120 : vector<16x16xf32> to vector<16x16xbf16>
    %c0_42 = arith.constant 0 : index
    %c0_43 = arith.constant 0 : index
    %122 = vector.load %arg12[%c0_42, %c0_43] : memref<16x64xbf16, #tpu.memory_space<vmem>>, vector<16x64xbf16>
    %cst_44 = arith.constant dense<0.000000e+00> : vector<16x64xf32>
    %123 = tpu.matmul %121, %122, %cst_44 {dimension_numbers = #tpu.dot_dimension_numbers<[1], [0], [0], [1], [0, 0, 1, 1], [], []>} : vector<16x16xbf16>, vector<16x64xbf16>, vector<16x64xf32> -> vector<16x64xf32>
    %c0_45 = arith.constant 0 : index
    %c0_46 = arith.constant 0 : index
    %124 = vector.load %arg13[%c0_45, %c0_46] : memref<1x64xf32, #tpu.memory_space<vmem>>, vector<1x64xf32>
    %125 = vector.broadcast %124 : vector<1x64xf32> to vector<16x64xf32>
    %126 = arith.addf %123, %125 : vector<16x64xf32>
    %cst_47 = arith.constant 5.000000e-01 : f32
    %127 = vector.broadcast %cst_47 : f32 to vector<16x64xf32>
    %128 = arith.mulf %127, %126 : vector<16x64xf32>
    %cst_48 = arith.constant 0.707106769 : f32
    %129 = vector.broadcast %cst_48 : f32 to vector<16x64xf32>
    %130 = arith.mulf %126, %129 : vector<16x64xf32>
    %cst_49 = arith.constant 0.000000e+00 : f32
    %131 = vector.broadcast %cst_49 : f32 to vector<16x64xf32>
    %132 = arith.cmpf olt, %130, %131 : vector<16x64xf32>
    %cst_50 = arith.constant -1.000000e+00 : f32
    %cst_51 = arith.constant 1.000000e+00 : f32
    %133 = vector.broadcast %cst_50 : f32 to vector<16x64xf32>
    %134 = vector.broadcast %cst_51 : f32 to vector<16x64xf32>
    %135 = arith.select %132, %133, %134 : vector<16x64xi1>, vector<16x64xf32>
    %136 = math.absf %130 : vector<16x64xf32>
    %cst_52 = arith.constant 0.327591091 : f32
    %137 = vector.broadcast %cst_52 : f32 to vector<16x64xf32>
    %138 = arith.mulf %137, %136 : vector<16x64xf32>
    %cst_53 = arith.constant 1.000000e+00 : f32
    %139 = vector.broadcast %cst_53 : f32 to vector<16x64xf32>
    %140 = arith.addf %139, %138 : vector<16x64xf32>
    %cst_54 = arith.constant 1.000000e+00 : f32
    %141 = vector.broadcast %cst_54 : f32 to vector<16x64xf32>
    %142 = arith.divf %141, %140 : vector<16x64xf32>
    %cst_55 = arith.constant 1.06140542 : f32
    %143 = vector.broadcast %cst_55 : f32 to vector<16x64xf32>
    %144 = arith.mulf %143, %142 : vector<16x64xf32>
    %cst_56 = arith.constant -1.45315206 : f32
    %145 = vector.broadcast %cst_56 : f32 to vector<16x64xf32>
    %146 = arith.addf %144, %145 : vector<16x64xf32>
    %147 = arith.mulf %146, %142 : vector<16x64xf32>
    %cst_57 = arith.constant 1.42141378 : f32
    %148 = vector.broadcast %cst_57 : f32 to vector<16x64xf32>
    %149 = arith.addf %147, %148 : vector<16x64xf32>
    %150 = arith.mulf %149, %142 : vector<16x64xf32>
    %cst_58 = arith.constant -0.284496725 : f32
    %151 = vector.broadcast %cst_58 : f32 to vector<16x64xf32>
    %152 = arith.addf %150, %151 : vector<16x64xf32>
    %153 = arith.mulf %152, %142 : vector<16x64xf32>
    %cst_59 = arith.constant 0.254829586 : f32
    %154 = vector.broadcast %cst_59 : f32 to vector<16x64xf32>
    %155 = arith.addf %153, %154 : vector<16x64xf32>
    %156 = arith.mulf %155, %142 : vector<16x64xf32>
    %cst_60 = arith.constant 0.000000e+00 : f32
    %157 = vector.broadcast %cst_60 : f32 to vector<16x64xf32>
    %158 = arith.subf %157, %136 : vector<16x64xf32>
    %159 = arith.mulf %158, %136 : vector<16x64xf32>
    %160 = math.exp %159 : vector<16x64xf32>
    %161 = arith.mulf %156, %160 : vector<16x64xf32>
    %cst_61 = arith.constant 1.000000e+00 : f32
    %162 = vector.broadcast %cst_61 : f32 to vector<16x64xf32>
    %163 = arith.subf %162, %161 : vector<16x64xf32>
    %164 = arith.mulf %135, %163 : vector<16x64xf32>
    %cst_62 = arith.constant 1.000000e+00 : f32
    %165 = vector.broadcast %cst_62 : f32 to vector<16x64xf32>
    %166 = arith.addf %165, %164 : vector<16x64xf32>
    %167 = arith.mulf %128, %166 : vector<16x64xf32>
    %168 = arith.truncf %167 : vector<16x64xf32> to vector<16x64xbf16>
    %c0_63 = arith.constant 0 : index
    %c0_64 = arith.constant 0 : index
    %169 = vector.load %arg14[%c0_63, %c0_64] : memref<64x16xbf16, #tpu.memory_space<vmem>>, vector<64x16xbf16>
    %cst_65 = arith.constant dense<0.000000e+00> : vector<16x16xf32>
    %170 = tpu.matmul %168, %169, %cst_65 {dimension_numbers = #tpu.dot_dimension_numbers<[1], [0], [0], [1], [0, 0, 1, 1], [], []>} : vector<16x64xbf16>, vector<64x16xbf16>, vector<16x16xf32> -> vector<16x16xf32>
    %171 = arith.addf %98, %170 : vector<16x16xf32>
    %c0_66 = arith.constant 0 : index
    %c0_67 = arith.constant 0 : index
    %172 = vector.load %arg15[%c0_66, %c0_67] : memref<1x16xf32, #tpu.memory_space<vmem>>, vector<1x16xf32>
    %173 = vector.broadcast %172 : vector<1x16xf32> to vector<16x16xf32>
    %174 = arith.addf %171, %173 : vector<16x16xf32>
    %c0_68 = arith.constant 0 : index
    %c0_69 = arith.constant 0 : index
    %c0_70 = arith.constant 0 : index
    %175 = vector.load %arg16[%c0_68, %c0_69, %c0_70] : memref<1x16x16xf32, #tpu.memory_space<vmem>>, vector<1x16x16xf32>
    %176 = vector.shape_cast %175 : vector<1x16x16xf32> to vector<16x16xf32>
    %177 = vector.shape_cast %174 : vector<16x16xf32> to vector<1x16x16xf32>
    tpu.vector_store %arg16[%c0_68, %c0_69, %c0_70], %177 {strides = array<i32>} : memref<1x16x16xf32, #tpu.memory_space<vmem>>, vector<1x16x16xf32>,
    return
  }
  func.func @transform_0(%arg0: i32, %arg1: i32) -> (i32, i32, i32) {
    %c0_i32 = arith.constant 0 : i32
    %c0_i32_0 = arith.constant 0 : i32
    return %arg0, %arg1, %c0_i32 : i32, i32, i32
  }
  func.func @transform_1(%arg0: i32, %arg1: i32) -> (i32, i32) {
    %c0_i32 = arith.constant 0 : i32
    %c0_i32_0 = arith.constant 0 : i32
    %c0_i32_1 = arith.constant 0 : i32
    return %c0_i32, %c0_i32_0 : i32, i32
  }
  func.func @transform_2(%arg0: i32, %arg1: i32) -> (i32, i32) {
    %c0_i32 = arith.constant 0 : i32
    %c0_i32_0 = arith.constant 0 : i32
    %c0_i32_1 = arith.constant 0 : i32
    return %c0_i32, %c0_i32_0 : i32, i32
  }
  func.func @transform_3(%arg0: i32, %arg1: i32) -> (i32, i32) {
    %c0_i32 = arith.constant 0 : i32
    %c0_i32_0 = arith.constant 0 : i32
    %c0_i32_1 = arith.constant 0 : i32
    return %c0_i32, %c0_i32_0 : i32, i32
  }
  func.func @transform_4(%arg0: i32, %arg1: i32) -> (i32, i32) {
    %c0_i32 = arith.constant 0 : i32
    %c0_i32_0 = arith.constant 0 : i32
    %c0_i32_1 = arith.constant 0 : i32
    return %c0_i32, %c0_i32_0 : i32, i32
  }
  func.func @transform_5(%arg0: i32, %arg1: i32) -> (i32, i32, i32) {
    %c0_i32 = arith.constant 0 : i32
    %c0_i32_0 = arith.constant 0 : i32
    %c0_i32_1 = arith.constant 0 : i32
    %c0_i32_2 = arith.constant 0 : i32
    return %c0_i32, %c0_i32_0, %c0_i32_1 : i32, i32, i32
  }
  func.func @transform_6(%arg0: i32, %arg1: i32) -> (i32, i32) {
    %c0_i32 = arith.constant 0 : i32
    %c0_i32_0 = arith.constant 0 : i32
    %c0_i32_1 = arith.constant 0 : i32
    return %c0_i32, %c0_i32_0 : i32, i32
  }
  func.func @transform_7(%arg0: i32, %arg1: i32) -> (i32, i32) {
    %c0_i32 = arith.constant 0 : i32
    %c0_i32_0 = arith.constant 0 : i32
    %c0_i32_1 = arith.constant 0 : i32
    return %c0_i32, %c0_i32_0 : i32, i32
  }
  func.func @transform_8(%arg0: i32, %arg1: i32) -> (i32, i32) {
    %c0_i32 = arith.constant 0 : i32
    %c0_i32_0 = arith.constant 0 : i32
    %c0_i32_1 = arith.constant 0 : i32
    return %c0_i32, %c0_i32_0 : i32, i32
  }
  func.func @transform_9(%arg0: i32, %arg1: i32) -> (i32, i32) {
    %c0_i32 = arith.constant 0 : i32
    %c0_i32_0 = arith.constant 0 : i32
    %c0_i32_1 = arith.constant 0 : i32
    return %c0_i32, %c0_i32_0 : i32, i32
  }
  func.func @transform_10(%arg0: i32, %arg1: i32) -> (i32, i32) {
    %c0_i32 = arith.constant 0 : i32
    %c0_i32_0 = arith.constant 0 : i32
    %c0_i32_1 = arith.constant 0 : i32
    return %c0_i32, %c0_i32_0 : i32, i32
  }
  func.func @transform_11(%arg0: i32, %arg1: i32) -> (i32, i32) {
    %c0_i32 = arith.constant 0 : i32
    %c0_i32_0 = arith.constant 0 : i32
    %c0_i32_1 = arith.constant 0 : i32
    return %c0_i32, %c0_i32_0 : i32, i32
  }
  func.func @transform_12(%arg0: i32, %arg1: i32) -> (i32, i32) {
    %c0_i32 = arith.constant 0 : i32
    %c0_i32_0 = arith.constant 0 : i32
    %c0_i32_1 = arith.constant 0 : i32
    return %c0_i32, %c0_i32_0 : i32, i32
  }
  func.func @transform_13(%arg0: i32, %arg1: i32) -> (i32, i32) {
    %c0_i32 = arith.constant 0 : i32
    %c0_i32_0 = arith.constant 0 : i32
    %c0_i32_1 = arith.constant 0 : i32
    return %c0_i32, %c0_i32_0 : i32, i32
  }
  func.func @transform_14(%arg0: i32, %arg1: i32) -> (i32, i32, i32) {
    %c0_i32 = arith.constant 0 : i32
    %c0_i32_0 = arith.constant 0 : i32
    return %arg0, %arg1, %c0_i32 : i32, i32, i32
  }
}

</mosaic_0001>

<llo_original>
// kernel: tpu_custom_call.1
$region0: #{tpu_custom_call.1}
  #allocation0 [shape = 'u32[]', space=smem, size = 0x4, offset = 0x4, fixed_abs, tag = 'smem constant byte address 0x4 - core index']
  #allocation1 [shape = 'u32[72,128]{1,0:T(1,128)}', space=vmem, size = 0x9000, scoped, tag = 'internal scratch']
  %s0 = inlined_call_operand.vmem [shape: f32[2,16,16], index: 0, kind: input, shape index: {}]
  %s1 = inlined_call_operand.hbm [shape: f32[1,16], index: 1, kind: input, shape index: {}]
  %s2 = inlined_call_operand.vmem [shape: f32[1,16], index: 2, kind: input, shape index: {}]
  %s3 = inlined_call_operand.vmem [shape: bf16[16,48], index: 3, kind: input, shape index: {}]
  %s4 = inlined_call_operand.vmem [shape: f32[1,48], index: 4, kind: input, shape index: {}]
  %s5 = inlined_call_operand.hbm [shape: f32[2,8,8], index: 5, kind: input, shape index: {}]
  %s6 = inlined_call_operand.hbm [shape: bf16[16,16], index: 6, kind: input, shape index: {}]
  %s7 = inlined_call_operand.vmem [shape: f32[1,16], index: 7, kind: input, shape index: {}]
  %s8 = inlined_call_operand.hbm [shape: f32[1,16], index: 8, kind: input, shape index: {}]
  %s9 = inlined_call_operand.hbm [shape: f32[1,16], index: 9, kind: input, shape index: {}]
  %s10 = inlined_call_operand.hbm [shape: bf16[16,64], index: 10, kind: input, shape index: {}]
  %s11 = inlined_call_operand.hbm [shape: f32[1,64], index: 11, kind: input, shape index: {}]
  %s12 = inlined_call_operand.vmem [shape: bf16[64,16], index: 12, kind: input, shape index: {}]
  %s13 = inlined_call_operand.vmem [shape: f32[1,16], index: 13, kind: input, shape index: {}]
  %s14 = inlined_call_operand.hbm [shape: f32[2,16,16], index: 14, kind: output, shape index: {}]
  %s15 = sld [smem:[#allocation0]]
  $region117: #{tpu_custom_call.1} parent=0
    _
  %s17 = ssub.s32 1, %s15
  %s18 = scalar_select 0, %s17, %s15
  $region1: #{tpu_custom_call.1} parent=0
    #allocation2 [shape = 'u8[512]{0}', space=vmem, size = 0x400, scoped, tag = 'input window, operand 1, single buffered']
    #allocation3 [shape = 's32[2]{0}', space=sflag, size = 0x8, scoped, tag = 'scoped memory for tpu_custom_call.1']
    #allocation4 [shape = 's32[2]{0}', space=sflag, size = 0x8, scoped, tag = 'scoped memory for tpu_custom_call.1']
    #allocation5 [shape = 'u8[8192]{0}', space=vmem, size = 0x2000, scoped, tag = 'input window, operand 5, single buffered']
    #allocation6 [shape = 's32[1]{0}', space=sflag, size = 0x4, scoped, tag = 'scoped memory for tpu_custom_call.1']
    #allocation7 [shape = 'u8[4096]{0}', space=vmem, size = 0x1000, scoped, tag = 'input window, operand 6, single buffered']
    #allocation8 [shape = 'u8[512]{0}', space=vmem, size = 0x400, scoped, tag = 'input window, operand 8, single buffered']
    #allocation9 [shape = 's32[1]{0}', space=sflag, size = 0x4, scoped, tag = 'scoped memory for tpu_custom_call.1']
    #allocation10 [shape = 'u8[512]{0}', space=vmem, size = 0x400, scoped, tag = 'input window, operand 9, single buffered']
    #allocation11 [shape = 'u8[4096]{0}', space=vmem, size = 0x1000, scoped, tag = 'input window, operand 10, single buffered']
    #allocation12 [shape = 's32[1]{0}', space=sflag, size = 0x4, scoped, tag = 'scoped memory for tpu_custom_call.1']
    #allocation13 [shape = 'u8[512]{0}', space=vmem, size = 0x400, scoped, tag = 'input window, operand 11, single buffered']
    #allocation14 [shape = 'u8[16384]{0}', space=vmem, size = 0x4000, scoped, tag = 'output window, operand 0']
    %19 = vsyncpa [#allocation3], 0
    %20 = vsyncpa [#allocation6], 0
    %21 = vsyncpa [#allocation9], 0
    %22 = vsyncpa [#allocation12], 0
    %23 = vsyncpa [#allocation4], 0
    %s24 = scalar_lea.sflag [#allocation4], 1
    %25 = vsyncpa %s24, 0
    loop: start=0, step=1, limit=4
    $region2: #{tpu_custom_call.1} parent=1 // loop_pre_header
      _
    $region3: #{tpu_custom_call.1} parent=1 // loop_header
      %s27 = sphi 0, %s31
      %p28 = scmp.ge.s32.totalorder %s27, 4
      %s34 = sphi 0, %s46
      %s35 = sphi 0, %s42
      %s36 = sphi 0, %s34
      %s37 = sphi 0, %s35
      %s38 = sphi 0, %s36
      %s39 = sphi 0, %s37
      %s51 = sphi 0, %s53
      %s54 = sphi 0, %s51
      %s55 = sphi 0, %s54
      %s71 = sphi 0, %s55
      %s75 = sphi 0, %s75
      %s77 = sphi 0, %s75
      %s78 = sphi 0, %s77
      %s92 = sphi 0, %s78
      %s96 = sphi 0, %s96
      %s98 = sphi 0, %s96
      %s99 = sphi 0, %s98
      %s113 = sphi 0, %s99
      %s117 = sphi 0, %s117
      %s119 = sphi 0, %s117
      %s120 = sphi 0, %s119
      %s134 = sphi 0, %s120
      %s138 = sphi 0, %s138
      %s140 = sphi 0, %s138
      %s141 = sphi 0, %s140
      %s155 = sphi 0, %s141
      %s159 = sphi 0, %s159
      %s161 = sphi 0, %s159
      %s162 = sphi 0, %s161
      %s176 = sphi 0, %s162
      %s180 = sphi 0, %s180
      %s182 = sphi 0, %s180
      %s183 = sphi 0, %s182
      %s197 = sphi 0, %s183
      %s201 = sphi 0, %s201
      %s203 = sphi 0, %s201
      %s204 = sphi 0, %s203
      %s218 = sphi 0, %s204
      %s222 = sphi 0, %s222
      %s224 = sphi 0, %s222
      %s225 = sphi 0, %s224
      %s239 = sphi 0, %s225
      %s243 = sphi 0, %s243
      %s245 = sphi 0, %s243
      %s246 = sphi 0, %s245
      %s260 = sphi 0, %s246
      %s264 = sphi 0, %s264
      %s266 = sphi 0, %s264
      %s267 = sphi 0, %s266
      %s281 = sphi 0, %s267
      %s285 = sphi 0, %s285
      %s287 = sphi 0, %s285
      %s288 = sphi 0, %s287
      %s302 = sphi 0, %s288
      %s306 = sphi 0, %s306
      %s308 = sphi 0, %s306
      %s309 = sphi 0, %s308
      %s323 = sphi 0, %s309
      %s327 = sphi 0, %s327
      %s329 = sphi 0, %s327
      %s330 = sphi 0, %s329
      %s344 = sphi 0, %s330
      %s352 = sphi 0, %s354
      %s355 = sphi 0, %s352
      %s356 = sphi 0, %s355
      %s372 = sphi 0, %s356
    $region4: #{tpu_custom_call.1} parent=1 // loop_header_branch
      %30 = sbr.rel (%p28) target = $region8
    $region5: #{tpu_custom_call.1} parent=1 // loop_body
      %s32 = ssub.s32 %s27, 1
      %s33 = ssub.s32 %s27, 2
      %s40 = sadd.s32 1, %s35
      %p41 = scmp.ge.s32.totalorder %s40, 1
      %s42 = scalar_select %p41, 0, %s40
      %s43 = sadd.s32 1, %s34
      %s44 = scalar_select %p41, %s43, %s34
      %p45 = scmp.ge.s32.totalorder %s44, 2
      %s46 = scalar_select %p45, 0, %s44
      %s47 = ssub.s32 %s34, %s46
      %s48 = ssub.s32 %s35, %s42
      %s49 = sor.u32 %s47, %s48
      %p50 = scmp.eq.s32.totalorder %s49, 0
      %s52 = sadd.s32 %s51, 1
      %s53 = scalar_select %p50, %s51, %s52
      %p56 = pneg %p50
      %p57 = scmp.eq.s32.totalorder %s27, 1
      %p58 = por %p56, %p57
      %p59 = scmp.ne.s32.totalorder %s51, %s54
      %p60 = scmp.eq.s32.totalorder %s27, 0
      %p61 = por %p59, %p60
      %p62 = scmp.ne.s32.totalorder %s51, %s54
      %p63 = scmp.eq.s32.totalorder %s32, 1
      %p64 = por %p62, %p63
      %p65 = scmp.ne.s32.totalorder %s54, %s55
      %p66 = scmp.eq.s32.totalorder %s32, 0
      %p67 = por %p65, %p66
      %p68 = scmp.ne.s32.totalorder %s54, %s55
      %p69 = scmp.eq.s32.totalorder %s33, 1
      %p70 = por %p68, %p69
      %p72 = scmp.ne.s32.totalorder %s55, %s71
      %p73 = scmp.eq.s32.totalorder %s33, 0
      %p74 = por %p72, %p73
      %s76 = sadd.s32 %s75, 1
      %p79 = scmp.eq.s32.totalorder %s27, 1
      %p80 = scmp.ne.s32.totalorder %s75, %s77
      %p81 = scmp.eq.s32.totalorder %s27, 0
      %p82 = por %p80, %p81
      %p83 = scmp.ne.s32.totalorder %s75, %s77
      %p84 = scmp.eq.s32.totalorder %s32, 1
      %p85 = por %p83, %p84
      %p86 = scmp.ne.s32.totalorder %s77, %s78
      %p87 = scmp.eq.s32.totalorder %s32, 0
      %p88 = por %p86, %p87
      %p89 = scmp.ne.s32.totalorder %s77, %s78
      %p90 = scmp.eq.s32.totalorder %s33, 1
      %p91 = por %p89, %p90
      %p93 = scmp.ne.s32.totalorder %s78, %s92
      %p94 = scmp.eq.s32.totalorder %s33, 0
      %p95 = por %p93, %p94
      %s97 = sadd.s32 %s96, 1
      %p100 = scmp.eq.s32.totalorder %s27, 1
      %p101 = scmp.ne.s32.totalorder %s96, %s98
      %p102 = scmp.eq.s32.totalorder %s27, 0
      %p103 = por %p101, %p102
      %p104 = scmp.ne.s32.totalorder %s96, %s98
      %p105 = scmp.eq.s32.totalorder %s32, 1
      %p106 = por %p104, %p105
      %p107 = scmp.ne.s32.totalorder %s98, %s99
      %p108 = scmp.eq.s32.totalorder %s32, 0
      %p109 = por %p107, %p108
      %p110 = scmp.ne.s32.totalorder %s98, %s99
      %p111 = scmp.eq.s32.totalorder %s33, 1
      %p112 = por %p110, %p111
      %p114 = scmp.ne.s32.totalorder %s99, %s113
      %p115 = scmp.eq.s32.totalorder %s33, 0
      %p116 = por %p114, %p115
      %s118 = sadd.s32 %s117, 1
      %p121 = scmp.eq.s32.totalorder %s27, 1
      %p122 = scmp.ne.s32.totalorder %s117, %s119
      %p123 = scmp.eq.s32.totalorder %s27, 0
      %p124 = por %p122, %p123
      %p125 = scmp.ne.s32.totalorder %s117, %s119
      %p126 = scmp.eq.s32.totalorder %s32, 1
      %p127 = por %p125, %p126
      %p128 = scmp.ne.s32.totalorder %s119, %s120
      %p129 = scmp.eq.s32.totalorder %s32, 0
      %p130 = por %p128, %p129
      %p131 = scmp.ne.s32.totalorder %s119, %s120
      %p132 = scmp.eq.s32.totalorder %s33, 1
      %p133 = por %p131, %p132
      %p135 = scmp.ne.s32.totalorder %s120, %s134
      %p136 = scmp.eq.s32.totalorder %s33, 0
      %p137 = por %p135, %p136
      %s139 = sadd.s32 %s138, 1
      %p142 = scmp.eq.s32.totalorder %s27, 1
      %p143 = scmp.ne.s32.totalorder %s138, %s140
      %p144 = scmp.eq.s32.totalorder %s27, 0
      %p145 = por %p143, %p144
      %p146 = scmp.ne.s32.totalorder %s138, %s140
      %p147 = scmp.eq.s32.totalorder %s32, 1
      %p148 = por %p146, %p147
      %p149 = scmp.ne.s32.totalorder %s140, %s141
      %p150 = scmp.eq.s32.totalorder %s32, 0
      %p151 = por %p149, %p150
      %p152 = scmp.ne.s32.totalorder %s140, %s141
      %p153 = scmp.eq.s32.totalorder %s33, 1
      %p154 = por %p152, %p153
      %p156 = scmp.ne.s32.totalorder %s141, %s155
      %p157 = scmp.eq.s32.totalorder %s33, 0
      %p158 = por %p156, %p157
      %s160 = sadd.s32 %s159, 1
      %p163 = scmp.eq.s32.totalorder %s27, 1
      %p164 = scmp.ne.s32.totalorder %s159, %s161
      %p165 = scmp.eq.s32.totalorder %s27, 0
      %p166 = por %p164, %p165
      %p167 = scmp.ne.s32.totalorder %s159, %s161
      %p168 = scmp.eq.s32.totalorder %s32, 1
      %p169 = por %p167, %p168
      %p170 = scmp.ne.s32.totalorder %s161, %s162
      %p171 = scmp.eq.s32.totalorder %s32, 0
      %p172 = por %p170, %p171
      %p173 = scmp.ne.s32.totalorder %s161, %s162
      %p174 = scmp.eq.s32.totalorder %s33, 1
      %p175 = por %p173, %p174
      %p177 = scmp.ne.s32.totalorder %s162, %s176
      %p178 = scmp.eq.s32.totalorder %s33, 0
      %p179 = por %p177, %p178
      %s181 = sadd.s32 %s180, 1
      %p184 = scmp.eq.s32.totalorder %s27, 1
      %p185 = scmp.ne.s32.totalorder %s180, %s182
      %p186 = scmp.eq.s32.totalorder %s27, 0
      %p187 = por %p185, %p186
      %p188 = scmp.ne.s32.totalorder %s180, %s182
      %p189 = scmp.eq.s32.totalorder %s32, 1
      %p190 = por %p188, %p189
      %p191 = scmp.ne.s32.totalorder %s182, %s183
      %p192 = scmp.eq.s32.totalorder %s32, 0
      %p193 = por %p191, %p192
      %p194 = scmp.ne.s32.totalorder %s182, %s183
      %p195 = scmp.eq.s32.totalorder %s33, 1
      %p196 = por %p194, %p195
      %p198 = scmp.ne.s32.totalorder %s183, %s197
      %p199 = scmp.eq.s32.totalorder %s33, 0
      %p200 = por %p198, %p199
      %s202 = sadd.s32 %s201, 1
      %p205 = scmp.eq.s32.totalorder %s27, 1
      %p206 = scmp.ne.s32.totalorder %s201, %s203
      %p207 = scmp.eq.s32.totalorder %s27, 0
      %p208 = por %p206, %p207
      %p209 = scmp.ne.s32.totalorder %s201, %s203
      %p210 = scmp.eq.s32.totalorder %s32, 1
      %p211 = por %p209, %p210
      %p212 = scmp.ne.s32.totalorder %s203, %s204
      %p213 = scmp.eq.s32.totalorder %s32, 0
      %p214 = por %p212, %p213
      %p215 = scmp.ne.s32.totalorder %s203, %s204
      %p216 = scmp.eq.s32.totalorder %s33, 1
      %p217 = por %p215, %p216
      %p219 = scmp.ne.s32.totalorder %s204, %s218
      %p220 = scmp.eq.s32.totalorder %s33, 0
      %p221 = por %p219, %p220
      %s223 = sadd.s32 %s222, 1
      %p226 = scmp.eq.s32.totalorder %s27, 1
      %p227 = scmp.ne.s32.totalorder %s222, %s224
      %p228 = scmp.eq.s32.totalorder %s27, 0
      %p229 = por %p227, %p228
      %p230 = scmp.ne.s32.totalorder %s222, %s224
      %p231 = scmp.eq.s32.totalorder %s32, 1
      %p232 = por %p230, %p231
      %p233 = scmp.ne.s32.totalorder %s224, %s225
      %p234 = scmp.eq.s32.totalorder %s32, 0
      %p235 = por %p233, %p234
      %p236 = scmp.ne.s32.totalorder %s224, %s225
      %p237 = scmp.eq.s32.totalorder %s33, 1
      %p238 = por %p236, %p237
      %p240 = scmp.ne.s32.totalorder %s225, %s239
      %p241 = scmp.eq.s32.totalorder %s33, 0
      %p242 = por %p240, %p241
      %s244 = sadd.s32 %s243, 1
      %p247 = scmp.eq.s32.totalorder %s27, 1
      %p248 = scmp.ne.s32.totalorder %s243, %s245
      %p249 = scmp.eq.s32.totalorder %s27, 0
      %p250 = por %p248, %p249
      %p251 = scmp.ne.s32.totalorder %s243, %s245
      %p252 = scmp.eq.s32.totalorder %s32, 1
      %p253 = por %p251, %p252
      %p254 = scmp.ne.s32.totalorder %s245, %s246
      %p255 = scmp.eq.s32.totalorder %s32, 0
      %p256 = por %p254, %p255
      %p257 = scmp.ne.s32.totalorder %s245, %s246
      %p258 = scmp.eq.s32.totalorder %s33, 1
      %p259 = por %p257, %p258
      %p261 = scmp.ne.s32.totalorder %s246, %s260
      %p262 = scmp.eq.s32.totalorder %s33, 0
      %p263 = por %p261, %p262
      %s265 = sadd.s32 %s264, 1
      %p268 = scmp.eq.s32.totalorder %s27, 1
      %p269 = scmp.ne.s32.totalorder %s264, %s266
      %p270 = scmp.eq.s32.totalorder %s27, 0
      %p271 = por %p269, %p270
      %p272 = scmp.ne.s32.totalorder %s264, %s266
      %p273 = scmp.eq.s32.totalorder %s32, 1
      %p274 = por %p272, %p273
      %p275 = scmp.ne.s32.totalorder %s266, %s267
      %p276 = scmp.eq.s32.totalorder %s32, 0
      %p277 = por %p275, %p276
      %p278 = scmp.ne.s32.totalorder %s266, %s267
      %p279 = scmp.eq.s32.totalorder %s33, 1
      %p280 = por %p278, %p279
      %p282 = scmp.ne.s32.totalorder %s267, %s281
      %p283 = scmp.eq.s32.totalorder %s33, 0
      %p284 = por %p282, %p283
      %s286 = sadd.s32 %s285, 1
      %p289 = scmp.eq.s32.totalorder %s27, 1
      %p290 = scmp.ne.s32.totalorder %s285, %s287
      %p291 = scmp.eq.s32.totalorder %s27, 0
      %p292 = por %p290, %p291
      %p293 = scmp.ne.s32.totalorder %s285, %s287
      %p294 = scmp.eq.s32.totalorder %s32, 1
      %p295 = por %p293, %p294
      %p296 = scmp.ne.s32.totalorder %s287, %s288
      %p297 = scmp.eq.s32.totalorder %s32, 0
      %p298 = por %p296, %p297
      %p299 = scmp.ne.s32.totalorder %s287, %s288
      %p300 = scmp.eq.s32.totalorder %s33, 1
      %p301 = por %p299, %p300
      %p303 = scmp.ne.s32.totalorder %s288, %s302
      %p304 = scmp.eq.s32.totalorder %s33, 0
      %p305 = por %p303, %p304
      %s307 = sadd.s32 %s306, 1
      %p310 = scmp.eq.s32.totalorder %s27, 1
      %p311 = scmp.ne.s32.totalorder %s306, %s308
      %p312 = scmp.eq.s32.totalorder %s27, 0
      %p313 = por %p311, %p312
      %p314 = scmp.ne.s32.totalorder %s306, %s308
      %p315 = scmp.eq.s32.totalorder %s32, 1
      %p316 = por %p314, %p315
      %p317 = scmp.ne.s32.totalorder %s308, %s309
      %p318 = scmp.eq.s32.totalorder %s32, 0
      %p319 = por %p317, %p318
      %p320 = scmp.ne.s32.totalorder %s308, %s309
      %p321 = scmp.eq.s32.totalorder %s33, 1
      %p322 = por %p320, %p321
      %p324 = scmp.ne.s32.totalorder %s309, %s323
      %p325 = scmp.eq.s32.totalorder %s33, 0
      %p326 = por %p324, %p325
      %s328 = sadd.s32 %s327, 1
      %p331 = scmp.eq.s32.totalorder %s27, 1
      %p332 = scmp.ne.s32.totalorder %s327, %s329
      %p333 = scmp.eq.s32.totalorder %s27, 0
      %p334 = por %p332, %p333
      %p335 = scmp.ne.s32.totalorder %s327, %s329
      %p336 = scmp.eq.s32.totalorder %s32, 1
      %p337 = por %p335, %p336
      %p338 = scmp.ne.s32.totalorder %s329, %s330
      %p339 = scmp.eq.s32.totalorder %s32, 0
      %p340 = por %p338, %p339
      %p341 = scmp.ne.s32.totalorder %s329, %s330
      %p342 = scmp.eq.s32.totalorder %s33, 1
      %p343 = por %p341, %p342
      %p345 = scmp.ne.s32.totalorder %s330, %s344
      %p346 = scmp.eq.s32.totalorder %s33, 0
      %p347 = por %p345, %p346
      %s348 = ssub.s32 %s34, %s46
      %s349 = ssub.s32 %s35, %s42
      %s350 = sor.u32 %s348, %s349
      %p351 = scmp.eq.s32.totalorder %s350, 0
      %s353 = sadd.s32 %s352, 1
      %s354 = scalar_select %p351, %s352, %s353
      %p357 = pneg %p351
      %p358 = scmp.eq.s32.totalorder %s27, 1
      %p359 = por %p357, %p358
      %p360 = scmp.ne.s32.totalorder %s352, %s355
      %p361 = scmp.eq.s32.totalorder %s27, 0
      %p362 = por %p360, %p361
      %p363 = scmp.ne.s32.totalorder %s352, %s355
      %p364 = scmp.eq.s32.totalorder %s32, 1
      %p365 = por %p363, %p364
      %p366 = scmp.ne.s32.totalorder %s355, %s356
      %p367 = scmp.eq.s32.totalorder %s32, 0
      %p368 = por %p366, %p367
      %p369 = scmp.ne.s32.totalorder %s355, %s356
      %p370 = scmp.eq.s32.totalorder %s33, 1
      %p371 = por %p369, %p370
      %p373 = scmp.ne.s32.totalorder %s356, %s372
      %p374 = scmp.eq.s32.totalorder %s33, 0
      %p375 = por %p373, %p374
      %p376 = scmp.le.s32.totalorder 1, %s27
      %p377 = scmp.lt.s32.totalorder %s27, 3
      %p378 = pnand %p376, %p377
      %p379 = pneg %p378
      // Predicated region
      $region9: #{tpu_custom_call.1} parent=5 // pred_check
        _
      $region10: #{tpu_custom_call.1} parent=5 // pred_check_branch
        %381 = sbr.rel (%p378) target = $region12
      $region11: #{tpu_custom_call.1} parent=5 // pred_region
        %s382 = ssub.s32 %s27, 1
        // Predicated region
        $region13: #{tpu_custom_call.1} parent=11 // pred_check
          %p383 = pneg %p88
        $region14: #{tpu_custom_call.1} parent=11 // pred_check_branch
          %385 = sbr.rel (%p383) target = $region16
        $region15: #{tpu_custom_call.1} parent=11 // pred_region
          %387 = vsyncadd [#allocation3], 0
          %s389 = sshll.u32 %s1, 4
          %s390 = int_to_ptr.hbm [resolvable:$true] %s389
          %s391 = sshll.u32 [#allocation2], 4
          %s392 = int_to_ptr.vmem [resolvable:$true] %s391
          %394 = dma.hbm_to_vmem [thread:$0]  %s390, 16, %s392, [#allocation3]
        $region16: #{tpu_custom_call.1} parent=11 // pred_fallthru
          _
        // Predicated region
        $region17: #{tpu_custom_call.1} parent=11 // pred_check
          %p395 = pneg %p109
        $region18: #{tpu_custom_call.1} parent=11 // pred_check_branch
          %397 = sbr.rel (%p395) target = $region20
        $region19: #{tpu_custom_call.1} parent=11 // pred_region
          _
        $region20: #{tpu_custom_call.1} parent=11 // pred_fallthru
          _
        // Predicated region
        $region21: #{tpu_custom_call.1} parent=11 // pred_check
          %p398 = pneg %p130
        $region22: #{tpu_custom_call.1} parent=11 // pred_check_branch
          %400 = sbr.rel (%p398) target = $region24
        $region23: #{tpu_custom_call.1} parent=11 // pred_region
          _
        $region24: #{tpu_custom_call.1} parent=11 // pred_fallthru
          _
        // Predicated region
        $region25: #{tpu_custom_call.1} parent=11 // pred_check
          %p401 = pneg %p151
        $region26: #{tpu_custom_call.1} parent=11 // pred_check_branch
          %403 = sbr.rel (%p401) target = $region28
        $region27: #{tpu_custom_call.1} parent=11 // pred_region
          _
        $region28: #{tpu_custom_call.1} parent=11 // pred_fallthru
          _
        // Predicated region
        $region29: #{tpu_custom_call.1} parent=11 // pred_check
          %p404 = pneg %p172
        $region30: #{tpu_custom_call.1} parent=11 // pred_check_branch
          %406 = sbr.rel (%p404) target = $region32
        $region31: #{tpu_custom_call.1} parent=11 // pred_region
          %408 = vsyncadd [#allocation6], 0
          %s409 = sshll.u32 %s5, 4
          %s410 = int_to_ptr.hbm [resolvable:$true] %s409
          %s411 = sshll.u32 [#allocation5], 4
          %s412 = int_to_ptr.vmem [resolvable:$true] %s411
          %417 = dma.hbm_to_vmem [thread:$0]  %s410, 256, %s412, [#allocation6], 128, 128, 8
        $region32: #{tpu_custom_call.1} parent=11 // pred_fallthru
          _
        // Predicated region
        $region33: #{tpu_custom_call.1} parent=11 // pred_check
          %p418 = pneg %p193
        $region34: #{tpu_custom_call.1} parent=11 // pred_check_branch
          %420 = sbr.rel (%p418) target = $region36
        $region35: #{tpu_custom_call.1} parent=11 // pred_region
          %422 = vsyncadd [#allocation6], 0
          %s423 = sshll.u32 %s6, 4
          %s424 = int_to_ptr.hbm [resolvable:$true] %s423
          %s425 = sshll.u32 [#allocation7], 4
          %s426 = int_to_ptr.vmem [resolvable:$true] %s425
          %431 = dma.hbm_to_vmem [thread:$0]  %s424, 128, %s426, [#allocation6], 64, 64, 4
        $region36: #{tpu_custom_call.1} parent=11 // pred_fallthru
          _
        // Predicated region
        $region37: #{tpu_custom_call.1} parent=11 // pred_check
          %p432 = pneg %p214
        $region38: #{tpu_custom_call.1} parent=11 // pred_check_branch
          %434 = sbr.rel (%p432) target = $region40
        $region39: #{tpu_custom_call.1} parent=11 // pred_region
          _
        $region40: #{tpu_custom_call.1} parent=11 // pred_fallthru
          _
        // Predicated region
        $region41: #{tpu_custom_call.1} parent=11 // pred_check
          %p435 = pneg %p235
        $region42: #{tpu_custom_call.1} parent=11 // pred_check_branch
          %437 = sbr.rel (%p435) target = $region44
        $region43: #{tpu_custom_call.1} parent=11 // pred_region
          %439 = vsyncadd [#allocation9], 0
          %s441 = sshll.u32 %s8, 4
          %s442 = int_to_ptr.hbm [resolvable:$true] %s441
          %s443 = sshll.u32 [#allocation8], 4
          %s444 = int_to_ptr.vmem [resolvable:$true] %s443
          %446 = dma.hbm_to_vmem [thread:$0]  %s442, 16, %s444, [#allocation9]
        $region44: #{tpu_custom_call.1} parent=11 // pred_fallthru
          _
        // Predicated region
        $region45: #{tpu_custom_call.1} parent=11 // pred_check
          %p447 = pneg %p256
        $region46: #{tpu_custom_call.1} parent=11 // pred_check_branch
          %449 = sbr.rel (%p447) target = $region48
        $region47: #{tpu_custom_call.1} parent=11 // pred_region
          %451 = vsyncadd [#allocation9], 0
          %s453 = sshll.u32 %s9, 4
          %s454 = int_to_ptr.hbm [resolvable:$true] %s453
          %s455 = sshll.u32 [#allocation10], 4
          %s456 = int_to_ptr.vmem [resolvable:$true] %s455
          %458 = dma.hbm_to_vmem [thread:$0]  %s454, 16, %s456, [#allocation9]
        $region48: #{tpu_custom_call.1} parent=11 // pred_fallthru
          _
        // Predicated region
        $region49: #{tpu_custom_call.1} parent=11 // pred_check
          %p459 = pneg %p277
        $region50: #{tpu_custom_call.1} parent=11 // pred_check_branch
          %461 = sbr.rel (%p459) target = $region52
        $region51: #{tpu_custom_call.1} parent=11 // pred_region
          %463 = vsyncadd [#allocation12], 0
          %s464 = sshll.u32 %s10, 4
          %s465 = int_to_ptr.hbm [resolvable:$true] %s464
          %s466 = sshll.u32 [#allocation11], 4
          %s467 = int_to_ptr.vmem [resolvable:$true] %s466
          %472 = dma.hbm_to_vmem [thread:$0]  %s465, 128, %s467, [#allocation12], 64, 64, 4
        $region52: #{tpu_custom_call.1} parent=11 // pred_fallthru
          _
        // Predicated region
        $region53: #{tpu_custom_call.1} parent=11 // pred_check
          %p473 = pneg %p298
        $region54: #{tpu_custom_call.1} parent=11 // pred_check_branch
          %475 = sbr.rel (%p473) target = $region56
        $region55: #{tpu_custom_call.1} parent=11 // pred_region
          %477 = vsyncadd [#allocation12], 0
          %s479 = sshll.u32 %s11, 4
          %s480 = int_to_ptr.hbm [resolvable:$true] %s479
          %s481 = sshll.u32 [#allocation13], 4
          %s482 = int_to_ptr.vmem [resolvable:$true] %s481
          %484 = dma.hbm_to_vmem [thread:$0]  %s480, 16, %s482, [#allocation12]
        $region56: #{tpu_custom_call.1} parent=11 // pred_fallthru
          _
        // Predicated region
        $region57: #{tpu_custom_call.1} parent=11 // pred_check
          %p485 = pneg %p319
        $region58: #{tpu_custom_call.1} parent=11 // pred_check_branch
          %487 = sbr.rel (%p485) target = $region60
        $region59: #{tpu_custom_call.1} parent=11 // pred_region
          _
        $region60: #{tpu_custom_call.1} parent=11 // pred_fallthru
          _
        // Predicated region
        $region61: #{tpu_custom_call.1} parent=11 // pred_check
          %p488 = pneg %p340
        $region62: #{tpu_custom_call.1} parent=11 // pred_check_branch
          %490 = sbr.rel (%p488) target = $region64
        $region63: #{tpu_custom_call.1} parent=11 // pred_region
          _
        $region64: #{tpu_custom_call.1} parent=11 // pred_fallthru
          _
      $region12: #{tpu_custom_call.1} parent=5 // pred_fallthru
        _
      %p491 = scmp.lt.s32.totalorder %s27, 2
      // Predicated region
      $region65: #{tpu_custom_call.1} parent=5 // pred_check
        %p492 = pneg %p491
      $region66: #{tpu_custom_call.1} parent=5 // pred_check_branch
        %494 = sbr.rel (%p492) target = $region68
      $region67: #{tpu_custom_call.1} parent=5 // pred_region
        // Predicated region
        $region69: #{tpu_custom_call.1} parent=67 // pred_check
          %p495 = pneg %p61
        $region70: #{tpu_custom_call.1} parent=67 // pred_check_branch
          %497 = sbr.rel (%p495) target = $region72
        $region71: #{tpu_custom_call.1} parent=67 // pred_region
          %s498 = smul.u32 2, %s35
          %p499 = scmp.lt.s32.totalorder %s34, 1
          %s500 = scalar_select %p499, %s34, 1
          %p501 = scmp.lt.s32.totalorder %s498, 1
          %s502 = scalar_select %p501, %s498, 1
          %s503 = smul.addr %s500, 2
          %s504 = sadd.s32 %s502, %s503
          %s505 = smul.addr %s504, 8
          %s506 = scalar_lea.vmem %s0, %s505
          %s507 = smul.u32 2, %s35
        $region72: #{tpu_custom_call.1} parent=67 // pred_fallthru
          _
      $region68: #{tpu_custom_call.1} parent=5 // pred_fallthru
        _
      %p508 = scmp.le.s32.totalorder 1, %s27
      %p509 = scmp.lt.s32.totalorder %s27, 3
      %p510 = pnand %p508, %p509
      %p511 = pneg %p510
      // Predicated region
      $region73: #{tpu_custom_call.1} parent=5 // pred_check
        _
      $region74: #{tpu_custom_call.1} parent=5 // pred_check_branch
        %513 = sbr.rel (%p510) target = $region76
      $region75: #{tpu_custom_call.1} parent=5 // pred_region
        %s514 = ssub.s32 %s27, 1
        // Predicated region
        $region77: #{tpu_custom_call.1} parent=75 // pred_check
          %p515 = pneg %p88
        $region78: #{tpu_custom_call.1} parent=75 // pred_check_branch
          %517 = sbr.rel (%p515) target = $region80
        $region79: #{tpu_custom_call.1} parent=75 // pred_region
          %519 = dma.done [#allocation3], 16
        $region80: #{tpu_custom_call.1} parent=75 // pred_fallthru
          _
        // Predicated region
        $region81: #{tpu_custom_call.1} parent=75 // pred_check
          %p520 = pneg %p172
        $region82: #{tpu_custom_call.1} parent=75 // pred_check_branch
          %522 = sbr.rel (%p520) target = $region84
        $region83: #{tpu_custom_call.1} parent=75 // pred_region
          %524 = dma.done [#allocation6], 256
        $region84: #{tpu_custom_call.1} parent=75 // pred_fallthru
          _
        // Predicated region
        $region85: #{tpu_custom_call.1} parent=75 // pred_check
          %p525 = pneg %p193
        $region86: #{tpu_custom_call.1} parent=75 // pred_check_branch
          %527 = sbr.rel (%p525) target = $region88
        $region87: #{tpu_custom_call.1} parent=75 // pred_region
          %529 = dma.done [#allocation6], 128
        $region88: #{tpu_custom_call.1} parent=75 // pred_fallthru
          _
        // Predicated region
        $region89: #{tpu_custom_call.1} parent=75 // pred_check
          %p530 = pneg %p235
        $region90: #{tpu_custom_call.1} parent=75 // pred_check_branch
          %532 = sbr.rel (%p530) target = $region92
        $region91: #{tpu_custom_call.1} parent=75 // pred_region
          %534 = dma.done [#allocation9], 16
        $region92: #{tpu_custom_call.1} parent=75 // pred_fallthru
          _
        // Predicated region
        $region93: #{tpu_custom_call.1} parent=75 // pred_check
          %p535 = pneg %p256
        $region94: #{tpu_custom_call.1} parent=75 // pred_check_branch
          %537 = sbr.rel (%p535) target = $region96
        $region95: #{tpu_custom_call.1} parent=75 // pred_region
          %539 = dma.done [#allocation9], 16
        $region96: #{tpu_custom_call.1} parent=75 // pred_fallthru
          _
        // Predicated region
        $region97: #{tpu_custom_call.1} parent=75 // pred_check
          %p540 = pneg %p277
        $region98: #{tpu_custom_call.1} parent=75 // pred_check_branch
          %542 = sbr.rel (%p540) target = $region100
        $region99: #{tpu_custom_call.1} parent=75 // pred_region
          %544 = dma.done [#allocation12], 128
        $region100: #{tpu_custom_call.1} parent=75 // pred_fallthru
          _
        // Predicated region
        $region101: #{tpu_custom_call.1} parent=75 // pred_check
          %p545 = pneg %p298
        $region102: #{tpu_custom_call.1} parent=75 // pred_check_branch
          %547 = sbr.rel (%p545) target = $region104
        $region103: #{tpu_custom_call.1} parent=75 // pred_region
          %549 = dma.done [#allocation12], 16
        $region104: #{tpu_custom_call.1} parent=75 // pred_fallthru
          _
        %s550 = smul.u32 2, %s37
        %p551 = scmp.lt.s32.totalorder %s36, 1
        %s552 = scalar_select %p551, %s36, 1
        %p553 = scmp.lt.s32.totalorder %s550, 1
        %s554 = scalar_select %p553, %s550, 1
        %s555 = smul.addr %s552, 2
        %s556 = sadd.s32 %s554, %s555
        %s557 = smul.addr %s556, 8
        %s558 = scalar_lea.vmem %s0, %s557
        %p559 = pneg %p67
        %p560 = pneg %p64
        %p561 = pneg %p88
        %p562 = pneg %p85
        %p563 = pneg %p109
        %p564 = pneg %p106
        %p565 = pneg %p130
        %p566 = pneg %p127
        %p567 = pneg %p151
        %p568 = pneg %p148
        %p569 = pneg %p172
        %p570 = pneg %p169
        %p571 = pneg %p193
        %p572 = pneg %p190
        %p573 = pneg %p214
        %p574 = pneg %p211
        %p575 = pneg %p235
        %p576 = pneg %p232
        %p577 = pneg %p256
        %p578 = pneg %p253
        %p579 = pneg %p277
        %p580 = pneg %p274
        %p581 = pneg %p298
        %p582 = pneg %p295
        %p583 = pneg %p319
        %p584 = pneg %p316
        %p585 = pneg %p340
        %p586 = pneg %p337
        %p587 = pneg %p368
        %p588 = pneg %p365
        %s589 = sand.u32 %s355, 1
        %s590 = scalar_lea.sflag [#allocation4], %s589
        %s591 = sand.u32 %s355, 1
        %s592 = smul.addr %s591, 16
        %s593 = scalar_lea.vmem [#allocation14], %s592
        %s594 = smul.u32 2, %s37
        %p595 = scmp.lt.s32.totalorder %s36, 1
        %s596 = scalar_select %p595, %s36, 1
        %p597 = scmp.lt.s32.totalorder %s594, 1
        %s598 = scalar_select %p597, %s594, 1
        %s599 = smul.addr %s596, 2
        %s600 = sadd.s32 %s598, %s599
        %s601 = smul.addr %s600, 8
        %s602 = scalar_lea.vmem %s0, %s601
        %s603 = smul.u32 2, %s37
        %s604 = smul.u32 2, %s37
        %v606 = vld [vmem:[%s602] sm:$0xff]
        %v607 = vld [vmem:[%s602 + $0x8] sm:$0xff]
        %v608 = vld [vmem:[#allocation2] sm:$0x1]
        %v609 = vld [vmem:[%s2] sm:$0x1]
        %vm610 = vcmask 130048
        %v611 = vsel %vm610, %v606, 0.0
        %612 = vadd.xlane.f32.xlu0 %v611
        %v613 = vpop.xlane.xlu0 %612
        %v614 = vsel %vm610, %v607, 0.0
        %615 = vadd.xlane.f32.xlu0 %v614
        %v616 = vpop.xlane.xlu0 %615
        %v617 = vrcp.pop 16.0
        %v618 = vmul.f32 16.0, %v617
        %v619 = vsub.f32 1.0, %v618
        %v620 = vmul.f32 %v617, %v619
        %v621 = vadd.f32 %v617, %v620
        %vm622 = vweird.f32 %v617
        %v623 = vsel %vm622, %v617, %v621
        %v624 = vmul.f32 %v613, %v623
        %v625 = vmul.f32 %v616, %v623
        %v626 = vsub.f32 %v606, %v624
        %v627 = vsub.f32 %v607, %v625
        %v628 = vmul.f32 %v626, %v626
        %v629 = vmul.f32 %v627, %v627
        %v630 = vsel %vm610, %v628, 0.0
        %631 = vadd.xlane.f32.xlu0 %v630
        %v632 = vpop.xlane.xlu0 %631
        %v633 = vsel %vm610, %v629, 0.0
        %634 = vadd.xlane.f32.xlu0 %v633
        %v635 = vpop.xlane.xlu0 %634
        %v636 = vmul.f32 %v632, %v623
        %v637 = vmul.f32 %v635, %v623
        %v638 = vadd.f32 %v636, 1e-05
        %v639 = vadd.f32 %v637, 1e-05
        %v640 = vrsqrt.pop %v638
        %v641 = vmul.f32 %v640, %v638
        %v642 = vmul.f32 %v641, %v640
        %v643 = vmul.f32 0.5, %v642
        %v644 = vsub.f32 1.5, %v643
        %v645 = vmul.f32 %v640, %v644
        %vm646 = vweird.f32 %v638
        %vm647 = vweird.f32 %v640
        %vm648 = vmor %vm646, %vm647
        %v649 = vsel %vm648, %v640, %v645
        %v650 = vrsqrt.pop %v639
        %v651 = vmul.f32 %v650, %v639
        %v652 = vmul.f32 %v651, %v650
        %v653 = vmul.f32 0.5, %v652
        %v654 = vsub.f32 1.5, %v653
        %v655 = vmul.f32 %v650, %v654
        %vm656 = vweird.f32 %v639
        %vm657 = vweird.f32 %v650
        %vm658 = vmor %vm656, %vm657
        %v659 = vsel %vm658, %v650, %v655
        %v660 = vmul.f32 %v626, %v649
        %v661 = vmul.f32 %v627, %v659
        %v663 = vperm.slane %v608, 0
        %v665 = vmul.f32 %v660, %v663
        %v666 = vmul.f32 %v661, %v663
        %v668 = vperm.slane %v609, 0
        %v670 = vadd.f32 %v665, %v668
        %v671 = vadd.f32 %v666, %v668
        %v672 = vpack.c.bf16 %v671, %v670
        %v673 = vld [vmem:[%s3] sm:$0xf]
        %v674 = vld [vmem:[%s3 + $0x4] sm:$0xf]
        %v675 = vld [vmem:[%s4] sm:$0x1]
        %v677 = vperm.slane %v675, 0
        %v681 = vunpack.c.l.b16 %v673
        %v682 = vunpack.c.l.b16 %v674
        %v683 = vpack.c.b16 %v682, %v681
        %v686 = vsel %vm610, %v672, 0
        %688 = vmatpush.bf16.msra.mxu0 0
        %689 = vmatpush.bf16.msra.mxu0 0
        %690 = vmatpush.bf16.msra.mxu0 0
        %691 = vmatpush.bf16.msra.mxu0 0
        %692 = vmatpush.bf16.msra.mxu0 0
        %693 = vmatpush.bf16.msra.mxu0 0
        %694 = vmatpush.bf16.msra.mxu0 0
        %695 = vmatpush.bf16.msra.mxu0 %v683
        %696 = vmatmul.bf16.gmra.mxu0 %v686
        %v697 = vpop.f32.mrf.mxu0
        %v698 = vadd.f32 %v677, %v697
        %v699 = vpop.f32.mrf.mxu0
        %v700 = vadd.f32 %v677, %v699
        %701 = vdwg.mxu0
        %v702 = vld [vmem:[#allocation5] sm:$0xff]
        %v703 = vld [vmem:[#allocation5 + $0x8] sm:$0xff]
        %v704 = vmul.f32 %v698, 0.35355338
        %v705 = vmul.f32 %v700, 0.35355338
        %v706 = vpack.c.bf16 %v704, %v704
        %v707 = vpack.c.bf16 %v705, %v705
        %v708 = vpack.c.bf16 %v698, %v698
        %v709 = vpack.c.bf16 %v700, %v700
        %v711 = vunpack.c.l.b16 %v708
        %v712 = vpack.c.b16 %v711, %v711
        %713 = vrot.lane.b32.xlu0 %v712, 112
        %v714 = vpop.permute.xlu0 %713
        %vm715 = vcmask 64512
        %v717 = vsel %vm715, %v706, 0
        %v720 = vsel %vm715, %v714, 0
        %722 = vmatpush.bf16.xpose.msra.mxu0 0
        %723 = vmatpush.bf16.xpose.msra.mxu0 0
        %724 = vmatpush.bf16.xpose.msra.mxu0 0
        %725 = vmatpush.bf16.xpose.msra.mxu0 0
        %726 = vmatpush.bf16.xpose.msra.mxu0 0
        %727 = vmatpush.bf16.xpose.msra.mxu0 0
        %728 = vmatpush.bf16.xpose.msra.mxu0 0
        %729 = vmatpush.bf16.xpose.msra.mxu0 %v720
        %730 = vmatmul.bf16.gmra.mxu0 %v717
        %v731 = vpop.f32.mrf.mxu0
        %v732 = vadd.f32 %v702, %v731
        %v733 = vpop.f32.mrf.mxu0
        %734 = vdwg.mxu0
        %v736 = vunpack.c.l.b16 %v709
        %v737 = vpack.c.b16 %v736, %v736
        %738 = vrot.lane.b32.xlu0 %v737, 112
        %v739 = vpop.permute.xlu0 %738
        %v741 = vsel %vm715, %v707, 0
        %v744 = vsel %vm715, %v739, 0
        %746 = vmatpush.bf16.xpose.msra.mxu0 0
        %747 = vmatpush.bf16.xpose.msra.mxu0 0
        %748 = vmatpush.bf16.xpose.msra.mxu0 0
        %749 = vmatpush.bf16.xpose.msra.mxu0 0
        %750 = vmatpush.bf16.xpose.msra.mxu0 0
        %751 = vmatpush.bf16.xpose.msra.mxu0 0
        %752 = vmatpush.bf16.xpose.msra.mxu0 0
        %753 = vmatpush.bf16.xpose.msra.mxu0 %v744
        %754 = vmatmul.bf16.gmra.mxu0 %v741
        %v755 = vpop.f32.mrf.mxu0
        %v756 = vadd.f32 %v702, %v755
        %v757 = vpop.f32.mrf.mxu0
        %758 = vdwg.mxu0
        %v759 = vsel %vm715, %v732, -inf
        %760 = vmax.xlane.f32.xlu0 %v759
        %v761 = vpop.xlane.xlu0 %760
        %v762 = vsel %vm715, %v756, -inf
        %763 = vmax.xlane.f32.xlu0 %v762
        %v764 = vpop.xlane.xlu0 %763
        %v765 = vsub.f32 %v732, %v761
        %v766 = vsub.f32 %v756, %v764
        %v767 = vmul.f32 %v765, 1.442695
        %v768 = vpow.pop %v767
        %v769 = vmul.f32 %v766, 1.442695
        %v770 = vpow.pop %v769
        %v771 = vsel %vm715, %v768, 0.0
        %772 = vadd.xlane.f32.xlu0 %v771
        %v773 = vpop.xlane.xlu0 %772
        %v774 = vsel %vm715, %v770, 0.0
        %775 = vadd.xlane.f32.xlu0 %v774
        %v776 = vpop.xlane.xlu0 %775
        %v777 = vrcp.pop %v773
        %v778 = vrcp.pop %v776
        %v779 = vmul.f32 %v768, %v777
        %v780 = vmul.f32 %v770, %v778
        %v781 = vpack.c.bf16 %v779, %v779
        %v782 = vpack.c.bf16 %v780, %v780
        %783 = vrot.lane.b32.xlu0 %v712, 96
        %v784 = vpop.permute.xlu0 %783
        %v786 = vsel %vm715, %v781, 0
        %vm788 = vcmask 1043456
        %v790 = vsel %vm788, %v784, 0
        %792 = vmatpush.bf16.msra.mxu0 0
        %793 = vmatpush.bf16.msra.mxu0 0
        %794 = vmatpush.bf16.msra.mxu0 0
        %795 = vmatpush.bf16.msra.mxu0 0
        %796 = vmatpush.bf16.msra.mxu0 0
        %797 = vmatpush.bf16.msra.mxu0 0
        %798 = vmatpush.bf16.msra.mxu0 0
        %799 = vmatpush.bf16.msra.mxu0 %v790
        %800 = vmatmul.bf16.gmra.mxu0 %v786
        %v801 = vpop.f32.mrf.mxu0
        %v802 = vadd.f32 0.0, %v801
        %v803 = vpop.f32.mrf.mxu0
        %804 = vdwg.mxu0
        %805 = vrot.lane.b32.xlu0 %v737, 96
        %v806 = vpop.permute.xlu0 %805
        %v808 = vsel %vm715, %v782, 0
        %v811 = vsel %vm788, %v806, 0
        %813 = vmatpush.bf16.msra.mxu0 0
        %814 = vmatpush.bf16.msra.mxu0 0
        %815 = vmatpush.bf16.msra.mxu0 0
        %816 = vmatpush.bf16.msra.mxu0 0
        %817 = vmatpush.bf16.msra.mxu0 0
        %818 = vmatpush.bf16.msra.mxu0 0
        %819 = vmatpush.bf16.msra.mxu0 0
        %820 = vmatpush.bf16.msra.mxu0 %v811
        %821 = vmatmul.bf16.gmra.mxu0 %v808
        %v822 = vpop.f32.mrf.mxu0
        %v823 = vadd.f32 0.0, %v822
        %v824 = vpop.f32.mrf.mxu0
        %825 = vdwg.mxu0
        %v827 = vunpack.c.l.b16 %v706
        %v828 = vpack.c.b16 %v827, %v827
        %829 = vrot.lane.b32.xlu0 %v828, 120
        %v830 = vpop.permute.xlu0 %829
        %831 = vrot.lane.b32.xlu0 %v712, 104
        %v832 = vpop.permute.xlu0 %831
        %v834 = vsel %vm715, %v830, 0
        %v837 = vsel %vm715, %v832, 0
        %839 = vmatpush.bf16.xpose.msra.mxu0 0
        %840 = vmatpush.bf16.xpose.msra.mxu0 0
        %841 = vmatpush.bf16.xpose.msra.mxu0 0
        %842 = vmatpush.bf16.xpose.msra.mxu0 0
        %843 = vmatpush.bf16.xpose.msra.mxu0 0
        %844 = vmatpush.bf16.xpose.msra.mxu0 0
        %845 = vmatpush.bf16.xpose.msra.mxu0 0
        %846 = vmatpush.bf16.xpose.msra.mxu0 %v837
        %847 = vmatmul.bf16.gmra.mxu0 %v834
        %v848 = vpop.f32.mrf.mxu0
        %v849 = vadd.f32 %v703, %v848
        %v850 = vpop.f32.mrf.mxu0
        %851 = vdwg.mxu0
        %v853 = vunpack.c.l.b16 %v707
        %v854 = vpack.c.b16 %v853, %v853
        %855 = vrot.lane.b32.xlu0 %v854, 120
        %v856 = vpop.permute.xlu0 %855
        %857 = vrot.lane.b32.xlu0 %v737, 104
        %v858 = vpop.permute.xlu0 %857
        %v860 = vsel %vm715, %v856, 0
        %v863 = vsel %vm715, %v858, 0
        %865 = vmatpush.bf16.xpose.msra.mxu0 0
        %866 = vmatpush.bf16.xpose.msra.mxu0 0
        %867 = vmatpush.bf16.xpose.msra.mxu0 0
        %868 = vmatpush.bf16.xpose.msra.mxu0 0
        %869 = vmatpush.bf16.xpose.msra.mxu0 0
        %870 = vmatpush.bf16.xpose.msra.mxu0 0
        %871 = vmatpush.bf16.xpose.msra.mxu0 0
        %872 = vmatpush.bf16.xpose.msra.mxu0 %v863
        %873 = vmatmul.bf16.gmra.mxu0 %v860
        %v874 = vpop.f32.mrf.mxu0
        %v875 = vadd.f32 %v703, %v874
        %v876 = vpop.f32.mrf.mxu0
        %877 = vdwg.mxu0
        %v878 = vsel %vm715, %v849, -inf
        %879 = vmax.xlane.f32.xlu0 %v878
        %v880 = vpop.xlane.xlu0 %879
        %v881 = vsel %vm715, %v875, -inf
        %882 = vmax.xlane.f32.xlu0 %v881
        %v883 = vpop.xlane.xlu0 %882
        %v884 = vsub.f32 %v849, %v880
        %v885 = vsub.f32 %v875, %v883
        %v886 = vmul.f32 %v884, 1.442695
        %v887 = vpow.pop %v886
        %v888 = vmul.f32 %v885, 1.442695
        %v889 = vpow.pop %v888
        %v890 = vsel %vm715, %v887, 0.0
        %891 = vadd.xlane.f32.xlu0 %v890
        %v892 = vpop.xlane.xlu0 %891
        %v893 = vsel %vm715, %v889, 0.0
        %894 = vadd.xlane.f32.xlu0 %v893
        %v895 = vpop.xlane.xlu0 %894
        %v896 = vrcp.pop %v892
        %v897 = vrcp.pop %v895
        %v898 = vmul.f32 %v887, %v896
        %v899 = vmul.f32 %v889, %v897
        %v900 = vpack.c.bf16 %v898, %v898
        %v901 = vpack.c.bf16 %v899, %v899
        %902 = vrot.lane.b32.xlu0 %v712, 88
        %v903 = vpop.permute.xlu0 %902
        %v905 = vsel %vm715, %v900, 0
        %v908 = vsel %vm788, %v903, 0
        %910 = vmatpush.bf16.msra.mxu0 0
        %911 = vmatpush.bf16.msra.mxu0 0
        %912 = vmatpush.bf16.msra.mxu0 0
        %913 = vmatpush.bf16.msra.mxu0 0
        %914 = vmatpush.bf16.msra.mxu0 0
        %915 = vmatpush.bf16.msra.mxu0 0
        %916 = vmatpush.bf16.msra.mxu0 0
        %917 = vmatpush.bf16.msra.mxu0 %v908
        %918 = vmatmul.bf16.gmra.mxu0 %v905
        %v919 = vpop.f32.mrf.mxu0
        %v920 = vadd.f32 0.0, %v919
        %v921 = vpop.f32.mrf.mxu0
        %922 = vdwg.mxu0
        %923 = vrot.lane.b32.xlu0 %v737, 88
        %v924 = vpop.permute.xlu0 %923
        %v926 = vsel %vm715, %v901, 0
        %v929 = vsel %vm788, %v924, 0
        %931 = vmatpush.bf16.msra.mxu0 0
        %932 = vmatpush.bf16.msra.mxu0 0
        %933 = vmatpush.bf16.msra.mxu0 0
        %934 = vmatpush.bf16.msra.mxu0 0
        %935 = vmatpush.bf16.msra.mxu0 0
        %936 = vmatpush.bf16.msra.mxu0 0
        %937 = vmatpush.bf16.msra.mxu0 0
        %938 = vmatpush.bf16.msra.mxu0 %v929
        %939 = vmatmul.bf16.gmra.mxu0 %v926
        %v940 = vpop.f32.mrf.mxu0
        %v941 = vadd.f32 0.0, %v940
        %v942 = vpop.f32.mrf.mxu0
        %943 = vdwg.mxu0
        %946 = vrot.lane.b32.xlu0 %v920, 8
        %v947 = vpop.permute.xlu0 %946
        %948 = vrot.lane.b32.xlu0 %v941, 8
        %v949 = vpop.permute.xlu0 %948
        %v952 = vsel %vm715, %v802, %v947
        %v953 = vsel %vm715, %v823, %v949
        %v954 = vpack.c.bf16 %v953, %v952
        %v955 = vld [vmem:[#allocation7] sm:$0xf]
        %v956 = vld [vmem:[#allocation7 + $0x4] sm:$0xf]
        %v957 = vld [vmem:[%s7] sm:$0x1]
        %v959 = vperm.slane %v957, 0
        %v963 = vunpack.c.l.b16 %v955
        %v964 = vunpack.c.l.b16 %v956
        %v965 = vpack.c.b16 %v964, %v963
        %v968 = vsel %vm610, %v954, 0
        %970 = vmatpush.bf16.msra.mxu0 0
        %971 = vmatpush.bf16.msra.mxu0 0
        %972 = vmatpush.bf16.msra.mxu0 0
        %973 = vmatpush.bf16.msra.mxu0 0
        %974 = vmatpush.bf16.msra.mxu0 0
        %975 = vmatpush.bf16.msra.mxu0 0
        %976 = vmatpush.bf16.msra.mxu0 0
        %977 = vmatpush.bf16.msra.mxu0 %v965
        %978 = vmatmul.bf16.gmra.mxu0 %v968
        %v979 = vpop.f32.mrf.mxu0
        %v980 = vadd.f32 %v959, %v979
        %v981 = vpop.f32.mrf.mxu0
        %v982 = vadd.f32 %v959, %v981
        %983 = vdwg.mxu0
        %v984 = vadd.f32 %v606, %v980
        %v985 = vadd.f32 %v607, %v982
        %v986 = vld [vmem:[#allocation8] sm:$0x1]
        %v987 = vld [vmem:[#allocation10] sm:$0x1]
        %v988 = vsel %vm610, %v984, 0.0
        %989 = vadd.xlane.f32.xlu0 %v988
        %v990 = vpop.xlane.xlu0 %989
        %v991 = vsel %vm610, %v985, 0.0
        %992 = vadd.xlane.f32.xlu0 %v991
        %v993 = vpop.xlane.xlu0 %992
        %v994 = vmul.f32 %v990, %v623
        %v995 = vmul.f32 %v993, %v623
        %v996 = vsub.f32 %v984, %v994
        %v997 = vsub.f32 %v985, %v995
        %v998 = vmul.f32 %v996, %v996
        %v999 = vmul.f32 %v997, %v997
        %v1000 = vsel %vm610, %v998, 0.0
        %1001 = vadd.xlane.f32.xlu0 %v1000
        %v1002 = vpop.xlane.xlu0 %1001
        %v1003 = vsel %vm610, %v999, 0.0
        %1004 = vadd.xlane.f32.xlu0 %v1003
        %v1005 = vpop.xlane.xlu0 %1004
        %v1006 = vmul.f32 %v1002, %v623
        %v1007 = vmul.f32 %v1005, %v623
        %v1008 = vadd.f32 %v1006, 1e-05
        %v1009 = vadd.f32 %v1007, 1e-05
        %v1010 = vrsqrt.pop %v1008
        %v1011 = vmul.f32 %v1010, %v1008
        %v1012 = vmul.f32 %v1011, %v1010
        %v1013 = vmul.f32 0.5, %v1012
        %v1014 = vsub.f32 1.5, %v1013
        %v1015 = vmul.f32 %v1010, %v1014
        %vm1016 = vweird.f32 %v1008
        %vm1017 = vweird.f32 %v1010
        %vm1018 = vmor %vm1016, %vm1017
        %v1019 = vsel %vm1018, %v1010, %v1015
        %v1020 = vrsqrt.pop %v1009
        %v1021 = vmul.f32 %v1020, %v1009
        %v1022 = vmul.f32 %v1021, %v1020
        %v1023 = vmul.f32 0.5, %v1022
        %v1024 = vsub.f32 1.5, %v1023
        %v1025 = vmul.f32 %v1020, %v1024
        %vm1026 = vweird.f32 %v1009
        %vm1027 = vweird.f32 %v1020
        %vm1028 = vmor %vm1026, %vm1027
        %v1029 = vsel %vm1028, %v1020, %v1025
        %v1030 = vmul.f32 %v996, %v1019
        %v1031 = vmul.f32 %v997, %v1029
        %v1033 = vperm.slane %v986, 0
        %v1035 = vmul.f32 %v1030, %v1033
        %v1036 = vmul.f32 %v1031, %v1033
        %v1038 = vperm.slane %v987, 0
        %v1040 = vadd.f32 %v1035, %v1038
        %v1041 = vadd.f32 %v1036, %v1038
        %v1042 = vpack.c.bf16 %v1041, %v1040
        %v1043 = vld [vmem:[#allocation11] sm:$0xf]
        %v1044 = vld [vmem:[#allocation11 + $0x4] sm:$0xf]
        %v1045 = vld [vmem:[#allocation13] sm:$0x1]
        %v1047 = vperm.slane %v1045, 0
        %v1051 = vunpack.c.l.b16 %v1043
        %v1052 = vunpack.c.l.b16 %v1044
        %v1053 = vpack.c.b16 %v1052, %v1051
        %v1056 = vsel %vm610, %v1042, 0
        %1058 = vmatpush.bf16.msra.mxu0 0
        %1059 = vmatpush.bf16.msra.mxu0 0
        %1060 = vmatpush.bf16.msra.mxu0 0
        %1061 = vmatpush.bf16.msra.mxu0 0
        %1062 = vmatpush.bf16.msra.mxu0 0
        %1063 = vmatpush.bf16.msra.mxu0 0
        %1064 = vmatpush.bf16.msra.mxu0 0
        %1065 = vmatpush.bf16.msra.mxu0 %v1053
        %1066 = vmatmul.bf16.gmra.mxu0 %v1056
        %v1067 = vpop.f32.mrf.mxu0
        %v1068 = vadd.f32 %v1047, %v1067
        %v1069 = vpop.f32.mrf.mxu0
        %v1070 = vadd.f32 %v1047, %v1069
        %1071 = vdwg.mxu0
        %v1072 = vmul.f32 %v1068, 0.5
        %v1073 = vmul.f32 %v1070, 0.5
        %v1074 = vmul.f32 %v1068, 0.70710677
        %v1075 = vmul.f32 %v1070, 0.70710677
        %vm1076 = vcmp.lt.f32.partialorder %v1074, 0.0
        %vm1077 = vcmp.lt.f32.partialorder %v1075, 0.0
        %v1078 = vsel %vm1076, -1.0, 1.0
        %v1079 = vsel %vm1077, -1.0, 1.0
        %v1080 = vand.u32 2147483647, %v1074
        %v1081 = vand.u32 2147483647, %v1075
        %v1082 = vmul.f32 %v1080, 0.3275911
        %v1083 = vmul.f32 %v1081, 0.3275911
        %v1084 = vadd.f32 %v1082, 1.0
        %v1085 = vadd.f32 %v1083, 1.0
        %v1086 = vrcp.pop %v1084
        %v1087 = vmul.f32 %v1084, %v1086
        %v1088 = vsub.f32 1.0, %v1087
        %v1089 = vmul.f32 %v1086, %v1088
        %v1090 = vadd.f32 %v1086, %v1089
        %vm1091 = vweird.f32 %v1084
        %vm1092 = vweird.f32 %v1086
        %vm1093 = vmor %vm1091, %vm1092
        %v1094 = vsel %vm1093, %v1086, %v1090
        %v1095 = vand.u32 2147483647, %v1084
        %vm1096 = vcmp.eq.f32.partialorder %v1095, 8.507059e+37
        %v1097 = vand.u32 %v1084, 2147483648
        %v1098 = vor.u32 1.1754944e-38, %v1097
        %v1099 = vsel %vm1096, %v1098, %v1094
        %v1100 = vmul.f32 1.0, %v1099
        %v1101 = vrcp.pop %v1085
        %v1102 = vmul.f32 %v1085, %v1101
        %v1103 = vsub.f32 1.0, %v1102
        %v1104 = vmul.f32 %v1101, %v1103
        %v1105 = vadd.f32 %v1101, %v1104
        %vm1106 = vweird.f32 %v1085
        %vm1107 = vweird.f32 %v1101
        %vm1108 = vmor %vm1106, %vm1107
        %v1109 = vsel %vm1108, %v1101, %v1105
        %v1110 = vand.u32 2147483647, %v1085
        %vm1111 = vcmp.eq.f32.partialorder %v1110, 8.507059e+37
        %v1112 = vand.u32 %v1085, 2147483648
        %v1113 = vor.u32 1.1754944e-38, %v1112
        %v1114 = vsel %vm1111, %v1113, %v1109
        %v1115 = vmul.f32 1.0, %v1114
        %v1116 = vmul.f32 %v1100, 1.0614054
        %v1117 = vmul.f32 %v1115, 1.0614054
        %v1118 = vadd.f32 %v1116, -1.4531521
        %v1119 = vadd.f32 %v1117, -1.4531521
        %v1120 = vmul.f32 %v1118, %v1100
        %v1121 = vmul.f32 %v1119, %v1115
        %v1122 = vadd.f32 %v1120, 1.4214138
        %v1123 = vadd.f32 %v1121, 1.4214138
        %v1124 = vmul.f32 %v1122, %v1100
        %v1125 = vmul.f32 %v1123, %v1115
        %v1126 = vadd.f32 %v1124, -0.28449672
        %v1127 = vadd.f32 %v1125, -0.28449672
        %v1128 = vmul.f32 %v1126, %v1100
        %v1129 = vmul.f32 %v1127, %v1115
        %v1130 = vadd.f32 %v1128, 0.2548296
        %v1131 = vadd.f32 %v1129, 0.2548296
        %v1132 = vmul.f32 %v1130, %v1100
        %v1133 = vmul.f32 %v1131, %v1115
        %v1134 = vsub.f32 0.0, %v1080
        %v1135 = vsub.f32 0.0, %v1081
        %v1136 = vmul.f32 %v1134, %v1080
        %v1137 = vmul.f32 %v1135, %v1081
        %v1138 = vmul.f32 %v1136, 1.442695
        %v1139 = vpow.pop %v1138
        %v1140 = vmul.f32 %v1137, 1.442695
        %v1141 = vpow.pop %v1140
        %v1142 = vmul.f32 %v1132, %v1139
        %v1143 = vmul.f32 %v1133, %v1141
        %v1144 = vsub.f32 1.0, %v1142
        %v1145 = vsub.f32 1.0, %v1143
        %v1146 = vmul.f32 %v1078, %v1144
        %v1147 = vmul.f32 %v1079, %v1145
        %v1148 = vadd.f32 %v1146, 1.0
        %v1149 = vadd.f32 %v1147, 1.0
        %v1150 = vmul.f32 %v1072, %v1148
        %v1151 = vmul.f32 %v1073, %v1149
        %v1152 = vpack.c.bf16 %v1151, %v1150
        %v1153 = vld [vmem:[%s12] sm:$0xf]
        %v1154 = vld [vmem:[%s12 + $0x4] sm:$0xf]
        %v1155 = vld [vmem:[%s12 + $0x8] sm:$0xf]
        %v1156 = vld [vmem:[%s12 + $0xc] sm:$0xf]
        %v1157 = vld [vmem:[%s12 + $0x10] sm:$0xf]
        %v1158 = vld [vmem:[%s12 + $0x14] sm:$0xf]
        %v1159 = vld [vmem:[%s12 + $0x18] sm:$0xf]
        %v1160 = vld [vmem:[%s12 + $0x1c] sm:$0xf]
        %v1169 = vunpack.c.l.b16 %v1153
        %v1170 = vunpack.c.l.b16 %v1154
        %v1171 = vunpack.c.l.b16 %v1155
        %v1172 = vunpack.c.l.b16 %v1156
        %v1173 = vunpack.c.l.b16 %v1157
        %v1174 = vunpack.c.l.b16 %v1158
        %v1175 = vunpack.c.l.b16 %v1159
        %v1176 = vunpack.c.l.b16 %v1160
        %v1177 = vpack.c.b16 %v1170, %v1169
        %v1178 = vpack.c.b16 %v1172, %v1171
        %v1179 = vpack.c.b16 %v1174, %v1173
        %v1180 = vpack.c.b16 %v1176, %v1175
        %vm1185 = vcmask 523264
        %v1187 = vsel %vm1185, %v1152, 0
        %1189 = vmatpush.bf16.msra.mxu0 0
        %1190 = vmatpush.bf16.msra.mxu0 0
        %1191 = vmatpush.bf16.msra.mxu0 0
        %1192 = vmatpush.bf16.msra.mxu0 0
        %1193 = vmatpush.bf16.msra.mxu0 %v1180
        %1194 = vmatpush.bf16.msra.mxu0 %v1179
        %1195 = vmatpush.bf16.msra.mxu0 %v1178
        %1196 = vmatpush.bf16.msra.mxu0 %v1177
        %1197 = vmatmul.bf16.gmra.mxu0 %v1187
        %v1198 = vpop.f32.mrf.mxu0
        %v1199 = vadd.f32 0.0, %v1198
        %v1200 = vpop.f32.mrf.mxu0
        %v1201 = vadd.f32 0.0, %v1200
        %1202 = vdwg.mxu0
        %v1203 = vadd.f32 %v984, %v1199
        %v1204 = vadd.f32 %v985, %v1201
        %v1205 = vld [vmem:[%s13] sm:$0x1]
        %v1207 = vperm.slane %v1205, 0
        %v1209 = vadd.f32 %v1203, %v1207
        %v1210 = vadd.f32 %v1204, %v1207
        %1211 = vst.msk [vmem:[%s593] sm:$0xff] %vm610, %v1209
        %1212 = vst.msk [vmem:[%s593 + $0x8] sm:$0xff] %vm610, %v1210
        %s1213 = sand.u32 %s355, 1
        %s1214 = scalar_lea.sflag [#allocation4], %s1213
        %s1215 = sand.u32 %s355, 1
        %s1216 = smul.addr %s1215, 16
        %s1217 = scalar_lea.vmem [#allocation14], %s1216
        // Predicated region
        $region105: #{tpu_custom_call.1} parent=75 // pred_check
          %p1218 = pneg %p365
        $region106: #{tpu_custom_call.1} parent=75 // pred_check_branch
          %1220 = sbr.rel (%p1218) target = $region108
        $region107: #{tpu_custom_call.1} parent=75 // pred_region
          %s1221 = smul.u32 2, %s37
          %1223 = vsyncadd %s1214, 0
          %s1224 = smul.addr %s36, 2
          %s1225 = sadd.s32 %s1221, %s1224
          %s1226 = smul.addr %s1225, 8
          %s1227 = scalar_lea.hbm %s14, %s1226
          %s1228 = sshll.u32 %s1217, 4
          %s1229 = int_to_ptr.vmem [resolvable:$true] %s1228
          %s1230 = sshll.u32 %s1227, 4
          %s1231 = int_to_ptr.hbm [resolvable:$true] %s1230
          %1236 = dma.vmem_to_hbm [thread:$0]  %s1229, 256, %s1231, %s1214, 128, 128, 8
        $region108: #{tpu_custom_call.1} parent=75 // pred_fallthru
          _
      $region76: #{tpu_custom_call.1} parent=5 // pred_fallthru
        _
      %p1237 = scmp.le.s32.totalorder 2, %s27
      // Predicated region
      $region109: #{tpu_custom_call.1} parent=5 // pred_check
        %p1238 = pneg %p1237
      $region110: #{tpu_custom_call.1} parent=5 // pred_check_branch
        %1240 = sbr.rel (%p1238) target = $region112
      $region111: #{tpu_custom_call.1} parent=5 // pred_region
        %s1241 = ssub.s32 %s27, 2
        // Predicated region
        $region113: #{tpu_custom_call.1} parent=111 // pred_check
          %p1242 = pneg %p371
        $region114: #{tpu_custom_call.1} parent=111 // pred_check_branch
          %1244 = sbr.rel (%p1242) target = $region116
        $region115: #{tpu_custom_call.1} parent=111 // pred_region
          %s1245 = sand.u32 %s356, 1
          %s1246 = scalar_lea.sflag [#allocation4], %s1245
          %s1247 = sand.u32 %s356, 1
          %s1248 = smul.addr %s1247, 16
          %s1249 = scalar_lea.vmem [#allocation14], %s1248
          %1251 = dma.done %s1246, 256
        $region116: #{tpu_custom_call.1} parent=111 // pred_fallthru
          _
      $region112: #{tpu_custom_call.1} parent=5 // pred_fallthru
        _
    $region6: #{tpu_custom_call.1} parent=1 // loop_footer
      %s31 = sadd.s32 1, %s27
    $region7: #{tpu_custom_call.1} parent=1 // loop_footer_branch
      %26 = sbr.rel target = $region3
    $region8: #{tpu_custom_call.1} parent=1 // loop_exit
      _
    %1252 = vsyncpa [#allocation3], 1
    %s1253 = scalar_lea.sflag [#allocation3], 1
    %1254 = vsyncpa %s1253, 1
    %1255 = vsyncpa [#allocation6], 1
    %1256 = vsyncpa [#allocation9], 1
    %1257 = vsyncpa [#allocation12], 1
    %1258 = vsyncpa [#allocation4], 1
    %s1259 = scalar_lea.sflag [#allocation4], 1
    %1260 = vsyncpa %s1259, 1

// kernel: tpu_custom_call.1
$region0: #{tpu_custom_call.1}
  #allocation0 [shape = 'u32[]', space=smem, size = 0x4, offset = 0x4, fixed_abs, tag = 'smem constant byte address 0x4 - core index']
  #allocation1 [shape = 'u32[72,128]{1,0:T(1,128)}', space=vmem, size = 0x9000, scoped, tag = 'internal scratch']
  %s0 = inlined_call_operand.vmem [shape: f32[2,16,16], index: 0, kind: input, shape index: {}]
  %s1 = inlined_call_operand.hbm [shape: f32[1,16], index: 1, kind: input, shape index: {}]
  %s2 = inlined_call_operand.vmem [shape: f32[1,16], index: 2, kind: input, shape index: {}]
  %s3 = inlined_call_operand.vmem [shape: bf16[16,48], index: 3, kind: input, shape index: {}]
  %s4 = inlined_call_operand.vmem [shape: f32[1,48], index: 4, kind: input, shape index: {}]
  %s5 = inlined_call_operand.hbm [shape: f32[2,8,8], index: 5, kind: input, shape index: {}]
  %s6 = inlined_call_operand.hbm [shape: bf16[16,16], index: 6, kind: input, shape index: {}]
  %s7 = inlined_call_operand.vmem [shape: f32[1,16], index: 7, kind: input, shape index: {}]
  %s8 = inlined_call_operand.hbm [shape: f32[1,16], index: 8, kind: input, shape index: {}]
  %s9 = inlined_call_operand.hbm [shape: f32[1,16], index: 9, kind: input, shape index: {}]
  %s10 = inlined_call_operand.hbm [shape: bf16[16,64], index: 10, kind: input, shape index: {}]
  %s11 = inlined_call_operand.hbm [shape: f32[1,64], index: 11, kind: input, shape index: {}]
  %s12 = inlined_call_operand.vmem [shape: bf16[64,16], index: 12, kind: input, shape index: {}]
  %s13 = inlined_call_operand.vmem [shape: f32[1,16], index: 13, kind: input, shape index: {}]
  %s14 = inlined_call_operand.hbm [shape: f32[2,16,16], index: 14, kind: output, shape index: {}]
  %s15 = sld [smem:[#allocation0]]
  $region117: #{tpu_custom_call.1} parent=0
    _
  %s17 = ssub.s32 1, %s15
  %s18 = scalar_select 0, %s17, %s15
  $region1: #{tpu_custom_call.1} parent=0
    #allocation2 [shape = 'u8[512]{0}', space=vmem, size = 0x400, scoped, tag = 'input window, operand 1, single buffered']
    #allocation3 [shape = 's32[2]{0}', space=sflag, size = 0x8, scoped, tag = 'scoped memory for tpu_custom_call.1']
    #allocation4 [shape = 's32[2]{0}', space=sflag, size = 0x8, scoped, tag = 'scoped memory for tpu_custom_call.1']
    #allocation5 [shape = 'u8[8192]{0}', space=vmem, size = 0x2000, scoped, tag = 'input window, operand 5, single buffered']
    #allocation6 [shape = 's32[1]{0}', space=sflag, size = 0x4, scoped, tag = 'scoped memory for tpu_custom_call.1']
    #allocation7 [shape = 'u8[4096]{0}', space=vmem, size = 0x1000, scoped, tag = 'input window, operand 6, single buffered']
    #allocation8 [shape = 'u8[512]{0}', space=vmem, size = 0x400, scoped, tag = 'input window, operand 8, single buffered']
    #allocation9 [shape = 's32[1]{0}', space=sflag, size = 0x4, scoped, tag = 'scoped memory for tpu_custom_call.1']
    #allocation10 [shape = 'u8[512]{0}', space=vmem, size = 0x400, scoped, tag = 'input window, operand 9, single buffered']
    #allocation11 [shape = 'u8[4096]{0}', space=vmem, size = 0x1000, scoped, tag = 'input window, operand 10, single buffered']
    #allocation12 [shape = 's32[1]{0}', space=sflag, size = 0x4, scoped, tag = 'scoped memory for tpu_custom_call.1']
    #allocation13 [shape = 'u8[512]{0}', space=vmem, size = 0x400, scoped, tag = 'input window, operand 11, single buffered']
    #allocation14 [shape = 'u8[16384]{0}', space=vmem, size = 0x4000, scoped, tag = 'output window, operand 0']
    %19 = vsyncpa [#allocation3], 0
    %20 = vsyncpa [#allocation6], 0
    %21 = vsyncpa [#allocation9], 0
    %22 = vsyncpa [#allocation12], 0
    %23 = vsyncpa [#allocation4], 0
    %s24 = scalar_lea.sflag [#allocation4], 1
    %25 = vsyncpa %s24, 0
    loop: start=0, step=1, limit=4
    $region2: #{tpu_custom_call.1} parent=1 // loop_pre_header
      _
    $region3: #{tpu_custom_call.1} parent=1 // loop_header
      %s27 = sphi 0, %s31
      %p28 = scmp.ge.s32.totalorder %s27, 4
      %s34 = sphi 0, %s46
      %s35 = sphi 0, %s42
      %s36 = sphi 0, %s34
      %s37 = sphi 0, %s35
      %s38 = sphi 0, %s36
      %s39 = sphi 0, %s37
      %s51 = sphi 0, %s53
      %s54 = sphi 0, %s51
      %s55 = sphi 0, %s54
      %s71 = sphi 0, %s55
      %s75 = sphi 0, %s75
      %s77 = sphi 0, %s75
      %s78 = sphi 0, %s77
      %s92 = sphi 0, %s78
      %s96 = sphi 0, %s96
      %s98 = sphi 0, %s96
      %s99 = sphi 0, %s98
      %s113 = sphi 0, %s99
      %s117 = sphi 0, %s117
      %s119 = sphi 0, %s117
      %s120 = sphi 0, %s119
      %s134 = sphi 0, %s120
      %s138 = sphi 0, %s138
      %s140 = sphi 0, %s138
      %s141 = sphi 0, %s140
      %s155 = sphi 0, %s141
      %s159 = sphi 0, %s159
      %s161 = sphi 0, %s159
      %s162 = sphi 0, %s161
      %s176 = sphi 0, %s162
      %s180 = sphi 0, %s180
      %s182 = sphi 0, %s180
      %s183 = sphi 0, %s182
      %s197 = sphi 0, %s183
      %s201 = sphi 0, %s201
      %s203 = sphi 0, %s201
      %s204 = sphi 0, %s203
      %s218 = sphi 0, %s204
      %s222 = sphi 0, %s222
      %s224 = sphi 0, %s222
      %s225 = sphi 0, %s224
      %s239 = sphi 0, %s225
      %s243 = sphi 0, %s243
      %s245 = sphi 0, %s243
      %s246 = sphi 0, %s245
      %s260 = sphi 0, %s246
      %s264 = sphi 0, %s264
      %s266 = sphi 0, %s264
      %s267 = sphi 0, %s266
      %s281 = sphi 0, %s267
      %s285 = sphi 0, %s285
      %s287 = sphi 0, %s285
      %s288 = sphi 0, %s287
      %s302 = sphi 0, %s288
      %s306 = sphi 0, %s306
      %s308 = sphi 0, %s306
      %s309 = sphi 0, %s308
      %s323 = sphi 0, %s309
      %s327 = sphi 0, %s327
      %s329 = sphi 0, %s327
      %s330 = sphi 0, %s329
      %s344 = sphi 0, %s330
      %s352 = sphi 0, %s354
      %s355 = sphi 0, %s352
      %s356 = sphi 0, %s355
      %s372 = sphi 0, %s356
    $region4: #{tpu_custom_call.1} parent=1 // loop_header_branch
      %30 = sbr.rel (%p28) target = $region8
    $region5: #{tpu_custom_call.1} parent=1 // loop_body
      %s32 = ssub.s32 %s27, 1
      %s33 = ssub.s32 %s27, 2
      %s40 = sadd.s32 1, %s35
      %p41 = scmp.ge.s32.totalorder %s40, 1
      %s42 = scalar_select %p41, 0, %s40
      %s43 = sadd.s32 1, %s34
      %s44 = scalar_select %p41, %s43, %s34
      %p45 = scmp.ge.s32.totalorder %s44, 2
      %s46 = scalar_select %p45, 0, %s44
      %s47 = ssub.s32 %s34, %s46
      %s48 = ssub.s32 %s35, %s42
      %s49 = sor.u32 %s47, %s48
      %p50 = scmp.eq.s32.totalorder %s49, 0
      %s52 = sadd.s32 %s51, 1
      %s53 = scalar_select %p50, %s51, %s52
      %p56 = pneg %p50
      %p57 = scmp.eq.s32.totalorder %s27, 1
      %p58 = por %p56, %p57
      %p59 = scmp.ne.s32.totalorder %s51, %s54
      %p60 = scmp.eq.s32.totalorder %s27, 0
      %p61 = por %p59, %p60
      %p62 = scmp.ne.s32.totalorder %s51, %s54
      %p63 = scmp.eq.s32.totalorder %s32, 1
      %p64 = por %p62, %p63
      %p65 = scmp.ne.s32.totalorder %s54, %s55
      %p66 = scmp.eq.s32.totalorder %s32, 0
      %p67 = por %p65, %p66
      %p68 = scmp.ne.s32.totalorder %s54, %s55
      %p69 = scmp.eq.s32.totalorder %s33, 1
      %p70 = por %p68, %p69
      %p72 = scmp.ne.s32.totalorder %s55, %s71
      %p73 = scmp.eq.s32.totalorder %s33, 0
      %p74 = por %p72, %p73
      %s76 = sadd.s32 %s75, 1
      %p79 = scmp.eq.s32.totalorder %s27, 1
      %p80 = scmp.ne.s32.totalorder %s75, %s77
      %p81 = scmp.eq.s32.totalorder %s27, 0
      %p82 = por %p80, %p81
      %p83 = scmp.ne.s32.totalorder %s75, %s77
      %p84 = scmp.eq.s32.totalorder %s32, 1
      %p85 = por %p83, %p84
      %p86 = scmp.ne.s32.totalorder %s77, %s78
      %p87 = scmp.eq.s32.totalorder %s32, 0
      %p88 = por %p86, %p87
      %p89 = scmp.ne.s32.totalorder %s77, %s78
      %p90 = scmp.eq.s32.totalorder %s33, 1
      %p91 = por %p89, %p90
      %p93 = scmp.ne.s32.totalorder %s78, %s92
      %p94 = scmp.eq.s32.totalorder %s33, 0
      %p95 = por %p93, %p94
      %s97 = sadd.s32 %s96, 1
      %p100 = scmp.eq.s32.totalorder %s27, 1
      %p101 = scmp.ne.s32.totalorder %s96, %s98
      %p102 = scmp.eq.s32.totalorder %s27, 0
      %p103 = por %p101, %p102
      %p104 = scmp.ne.s32.totalorder %s96, %s98
      %p105 = scmp.eq.s32.totalorder %s32, 1
      %p106 = por %p104, %p105
      %p107 = scmp.ne.s32.totalorder %s98, %s99
      %p108 = scmp.eq.s32.totalorder %s32, 0
      %p109 = por %p107, %p108
      %p110 = scmp.ne.s32.totalorder %s98, %s99
      %p111 = scmp.eq.s32.totalorder %s33, 1
      %p112 = por %p110, %p111
      %p114 = scmp.ne.s32.totalorder %s99, %s113
      %p115 = scmp.eq.s32.totalorder %s33, 0
      %p116 = por %p114, %p115
      %s118 = sadd.s32 %s117, 1
      %p121 = scmp.eq.s32.totalorder %s27, 1
      %p122 = scmp.ne.s32.totalorder %s117, %s119
      %p123 = scmp.eq.s32.totalorder %s27, 0
      %p124 = por %p122, %p123
      %p125 = scmp.ne.s32.totalorder %s117, %s119
      %p126 = scmp.eq.s32.totalorder %s32, 1
      %p127 = por %p125, %p126
      %p128 = scmp.ne.s32.totalorder %s119, %s120
      %p129 = scmp.eq.s32.totalorder %s32, 0
      %p130 = por %p128, %p129
      %p131 = scmp.ne.s32.totalorder %s119, %s120
      %p132 = scmp.eq.s32.totalorder %s33, 1
      %p133 = por %p131, %p132
      %p135 = scmp.ne.s32.totalorder %s120, %s134
      %p136 = scmp.eq.s32.totalorder %s33, 0
      %p137 = por %p135, %p136
      %s139 = sadd.s32 %s138, 1
      %p142 = scmp.eq.s32.totalorder %s27, 1
      %p143 = scmp.ne.s32.totalorder %s138, %s140
      %p144 = scmp.eq.s32.totalorder %s27, 0
      %p145 = por %p143, %p144
      %p146 = scmp.ne.s32.totalorder %s138, %s140
      %p147 = scmp.eq.s32.totalorder %s32, 1
      %p148 = por %p146, %p147
      %p149 = scmp.ne.s32.totalorder %s140, %s141
      %p150 = scmp.eq.s32.totalorder %s32, 0
      %p151 = por %p149, %p150
      %p152 = scmp.ne.s32.totalorder %s140, %s141
      %p153 = scmp.eq.s32.totalorder %s33, 1
      %p154 = por %p152, %p153
      %p156 = scmp.ne.s32.totalorder %s141, %s155
      %p157 = scmp.eq.s32.totalorder %s33, 0
      %p158 = por %p156, %p157
      %s160 = sadd.s32 %s159, 1
      %p163 = scmp.eq.s32.totalorder %s27, 1
      %p164 = scmp.ne.s32.totalorder %s159, %s161
      %p165 = scmp.eq.s32.totalorder %s27, 0
      %p166 = por %p164, %p165
      %p167 = scmp.ne.s32.totalorder %s159, %s161
      %p168 = scmp.eq.s32.totalorder %s32, 1
      %p169 = por %p167, %p168
      %p170 = scmp.ne.s32.totalorder %s161, %s162
      %p171 = scmp.eq.s32.totalorder %s32, 0
      %p172 = por %p170, %p171
      %p173 = scmp.ne.s32.totalorder %s161, %s162
      %p174 = scmp.eq.s32.totalorder %s33, 1
      %p175 = por %p173, %p174
      %p177 = scmp.ne.s32.totalorder %s162, %s176
      %p178 = scmp.eq.s32.totalorder %s33, 0
      %p179 = por %p177, %p178
      %s181 = sadd.s32 %s180, 1
      %p184 = scmp.eq.s32.totalorder %s27, 1
      %p185 = scmp.ne.s32.totalorder %s180, %s182
      %p186 = scmp.eq.s32.totalorder %s27, 0
      %p187 = por %p185, %p186
      %p188 = scmp.ne.s32.totalorder %s180, %s182
      %p189 = scmp.eq.s32.totalorder %s32, 1
      %p190 = por %p188, %p189
      %p191 = scmp.ne.s32.totalorder %s182, %s183
      %p192 = scmp.eq.s32.totalorder %s32, 0
      %p193 = por %p191, %p192
      %p194 = scmp.ne.s32.totalorder %s182, %s183
      %p195 = scmp.eq.s32.totalorder %s33, 1
      %p196 = por %p194, %p195
      %p198 = scmp.ne.s32.totalorder %s183, %s197
      %p199 = scmp.eq.s32.totalorder %s33, 0
      %p200 = por %p198, %p199
      %s202 = sadd.s32 %s201, 1
      %p205 = scmp.eq.s32.totalorder %s27, 1
      %p206 = scmp.ne.s32.totalorder %s201, %s203
      %p207 = scmp.eq.s32.totalorder %s27, 0
      %p208 = por %p206, %p207
      %p209 = scmp.ne.s32.totalorder %s201, %s203
      %p210 = scmp.eq.s32.totalorder %s32, 1
      %p211 = por %p209, %p210
      %p212 = scmp.ne.s32.totalorder %s203, %s204
      %p213 = scmp.eq.s32.totalorder %s32, 0
      %p214 = por %p212, %p213
      %p215 = scmp.ne.s32.totalorder %s203, %s204
      %p216 = scmp.eq.s32.totalorder %s33, 1
      %p217 = por %p215, %p216
      %p219 = scmp.ne.s32.totalorder %s204, %s218
      %p220 = scmp.eq.s32.totalorder %s33, 0
      %p221 = por %p219, %p220
      %s223 = sadd.s32 %s222, 1
      %p226 = scmp.eq.s32.totalorder %s27, 1
      %p227 = scmp.ne.s32.totalorder %s222, %s224
      %p228 = scmp.eq.s32.totalorder %s27, 0
      %p229 = por %p227, %p228
      %p230 = scmp.ne.s32.totalorder %s222, %s224
      %p231 = scmp.eq.s32.totalorder %s32, 1
      %p232 = por %p230, %p231
      %p233 = scmp.ne.s32.totalorder %s224, %s225
      %p234 = scmp.eq.s32.totalorder %s32, 0
      %p235 = por %p233, %p234
      %p236 = scmp.ne.s32.totalorder %s224, %s225
      %p237 = scmp.eq.s32.totalorder %s33, 1
      %p238 = por %p236, %p237
      %p240 = scmp.ne.s32.totalorder %s225, %s239
      %p241 = scmp.eq.s32.totalorder %s33, 0
      %p242 = por %p240, %p241
      %s244 = sadd.s32 %s243, 1
      %p247 = scmp.eq.s32.totalorder %s27, 1
      %p248 = scmp.ne.s32.totalorder %s243, %s245
      %p249 = scmp.eq.s32.totalorder %s27, 0
      %p250 = por %p248, %p249
      %p251 = scmp.ne.s32.totalorder %s243, %s245
      %p252 = scmp.eq.s32.totalorder %s32, 1
      %p253 = por %p251, %p252
      %p254 = scmp.ne.s32.totalorder %s245, %s246
      %p255 = scmp.eq.s32.totalorder %s32, 0
      %p256 = por %p254, %p255
      %p257 = scmp.ne.s32.totalorder %s245, %s246
      %p258 = scmp.eq.s32.totalorder %s33, 1
      %p259 = por %p257, %p258
      %p261 = scmp.ne.s32.totalorder %s246, %s260
      %p262 = scmp.eq.s32.totalorder %s33, 0
      %p263 = por %p261, %p262
      %s265 = sadd.s32 %s264, 1
      %p268 = scmp.eq.s32.totalorder %s27, 1
      %p269 = scmp.ne.s32.totalorder %s264, %s266
      %p270 = scmp.eq.s32.totalorder %s27, 0
      %p271 = por %p269, %p270
      %p272 = scmp.ne.s32.totalorder %s264, %s266
      %p273 = scmp.eq.s32.totalorder %s32, 1
      %p274 = por %p272, %p273
      %p275 = scmp.ne.s32.totalorder %s266, %s267
      %p276 = scmp.eq.s32.totalorder %s32, 0
      %p277 = por %p275, %p276
      %p278 = scmp.ne.s32.totalorder %s266, %s267
      %p279 = scmp.eq.s32.totalorder %s33, 1
      %p280 = por %p278, %p279
      %p282 = scmp.ne.s32.totalorder %s267, %s281
      %p283 = scmp.eq.s32.totalorder %s33, 0
      %p284 = por %p282, %p283
      %s286 = sadd.s32 %s285, 1
      %p289 = scmp.eq.s32.totalorder %s27, 1
      %p290 = scmp.ne.s32.totalorder %s285, %s287
      %p291 = scmp.eq.s32.totalorder %s27, 0
      %p292 = por %p290, %p291
      %p293 = scmp.ne.s32.totalorder %s285, %s287
      %p294 = scmp.eq.s32.totalorder %s32, 1
      %p295 = por %p293, %p294
      %p296 = scmp.ne.s32.totalorder %s287, %s288
      %p297 = scmp.eq.s32.totalorder %s32, 0
      %p298 = por %p296, %p297
      %p299 = scmp.ne.s32.totalorder %s287, %s288
      %p300 = scmp.eq.s32.totalorder %s33, 1
      %p301 = por %p299, %p300
      %p303 = scmp.ne.s32.totalorder %s288, %s302
      %p304 = scmp.eq.s32.totalorder %s33, 0
      %p305 = por %p303, %p304
      %s307 = sadd.s32 %s306, 1
      %p310 = scmp.eq.s32.totalorder %s27, 1
      %p311 = scmp.ne.s32.totalorder %s306, %s308
      %p312 = scmp.eq.s32.totalorder %s27, 0
      %p313 = por %p311, %p312
      %p314 = scmp.ne.s32.totalorder %s306, %s308
      %p315 = scmp.eq.s32.totalorder %s32, 1
      %p316 = por %p314, %p315
      %p317 = scmp.ne.s32.totalorder %s308, %s309
      %p318 = scmp.eq.s32.totalorder %s32, 0
      %p319 = por %p317, %p318
      %p320 = scmp.ne.s32.totalorder %s308, %s309
      %p321 = scmp.eq.s32.totalorder %s33, 1
      %p322 = por %p320, %p321
      %p324 = scmp.ne.s32.totalorder %s309, %s323
      %p325 = scmp.eq.s32.totalorder %s33, 0
      %p326 = por %p324, %p325
      %s328 = sadd.s32 %s327, 1
      %p331 = scmp.eq.s32.totalorder %s27, 1
      %p332 = scmp.ne.s32.totalorder %s327, %s329
      %p333 = scmp.eq.s32.totalorder %s27, 0
      %p334 = por %p332, %p333
      %p335 = scmp.ne.s32.totalorder %s327, %s329
      %p336 = scmp.eq.s32.totalorder %s32, 1
      %p337 = por %p335, %p336
      %p338 = scmp.ne.s32.totalorder %s329, %s330
      %p339 = scmp.eq.s32.totalorder %s32, 0
      %p340 = por %p338, %p339
      %p341 = scmp.ne.s32.totalorder %s329, %s330
      %p342 = scmp.eq.s32.totalorder %s33, 1
      %p343 = por %p341, %p342
      %p345 = scmp.ne.s32.totalorder %s330, %s344
      %p346 = scmp.eq.s32.totalorder %s33, 0
      %p347 = por %p345, %p346
      %s348 = ssub.s32 %s34, %s46
      %s349 = ssub.s32 %s35, %s42
      %s350 = sor.u32 %s348, %s349
      %p351 = scmp.eq.s32.totalorder %s350, 0
      %s353 = sadd.s32 %s352, 1
      %s354 = scalar_select %p351, %s352, %s353
      %p357 = pneg %p351
      %p358 = scmp.eq.s32.totalorder %s27, 1
      %p359 = por %p357, %p358
      %p360 = scmp.ne.s32.totalorder %s352, %s355
      %p361 = scmp.eq.s32.totalorder %s27, 0
      %p362 = por %p360, %p361
      %p363 = scmp.ne.s32.totalorder %s352, %s355
      %p364 = scmp.eq.s32.totalorder %s32, 1
      %p365 = por %p363, %p364
      %p366 = scmp.ne.s32.totalorder %s355, %s356
      %p367 = scmp.eq.s32.totalorder %s32, 0
      %p368 = por %p366, %p367
      %p369 = scmp.ne.s32.totalorder %s355, %s356
      %p370 = scmp.eq.s32.totalorder %s33, 1
      %p371 = por %p369, %p370
      %p373 = scmp.ne.s32.totalorder %s356, %s372
      %p374 = scmp.eq.s32.totalorder %s33, 0
      %p375 = por %p373, %p374
      %p376 = scmp.le.s32.totalorder 1, %s27
      %p377 = scmp.lt.s32.totalorder %s27, 3
      %p378 = pnand %p376, %p377
      %p379 = pneg %p378
      // Predicated region
      $region9: #{tpu_custom_call.1} parent=5 // pred_check
        _
      $region10: #{tpu_custom_call.1} parent=5 // pred_check_branch
        %381 = sbr.rel (%p378) target = $region12
      $region11: #{tpu_custom_call.1} parent=5 // pred_region
        %s382 = ssub.s32 %s27, 1
        // Predicated region
        $region13: #{tpu_custom_call.1} parent=11 // pred_check
          %p383 = pneg %p88
        $region14: #{tpu_custom_call.1} parent=11 // pred_check_branch
          %385 = sbr.rel (%p383) target = $region16
        $region15: #{tpu_custom_call.1} parent=11 // pred_region
          %387 = vsyncadd [#allocation3], 0
          %s389 = sshll.u32 %s1, 4
          %s390 = int_to_ptr.hbm [resolvable:$true] %s389
          %s391 = sshll.u32 [#allocation2], 4
          %s392 = int_to_ptr.vmem [resolvable:$true] %s391
          %394 = dma.hbm_to_vmem [thread:$0]  %s390, 16, %s392, [#allocation3]
        $region16: #{tpu_custom_call.1} parent=11 // pred_fallthru
          _
        // Predicated region
        $region17: #{tpu_custom_call.1} parent=11 // pred_check
          %p395 = pneg %p109
        $region18: #{tpu_custom_call.1} parent=11 // pred_check_branch
          %397 = sbr.rel (%p395) target = $region20
        $region19: #{tpu_custom_call.1} parent=11 // pred_region
          _
        $region20: #{tpu_custom_call.1} parent=11 // pred_fallthru
          _
        // Predicated region
        $region21: #{tpu_custom_call.1} parent=11 // pred_check
          %p398 = pneg %p130
        $region22: #{tpu_custom_call.1} parent=11 // pred_check_branch
          %400 = sbr.rel (%p398) target = $region24
        $region23: #{tpu_custom_call.1} parent=11 // pred_region
          _
        $region24: #{tpu_custom_call.1} parent=11 // pred_fallthru
          _
        // Predicated region
        $region25: #{tpu_custom_call.1} parent=11 // pred_check
          %p401 = pneg %p151
        $region26: #{tpu_custom_call.1} parent=11 // pred_check_branch
          %403 = sbr.rel (%p401) target = $region28
        $region27: #{tpu_custom_call.1} parent=11 // pred_region
          _
        $region28: #{tpu_custom_call.1} parent=11 // pred_fallthru
          _
        // Predicated region
        $region29: #{tpu_custom_call.1} parent=11 // pred_check
          %p404 = pneg %p172
        $region30: #{tpu_custom_call.1} parent=11 // pred_check_branch
          %406 = sbr.rel (%p404) target = $region32
        $region31: #{tpu_custom_call.1} parent=11 // pred_region
          %408 = vsyncadd [#allocation6], 0
          %s409 = sshll.u32 %s5, 4
          %s410 = int_to_ptr.hbm [resolvable:$true] %s409
          %s411 = sshll.u32 [#allocation5], 4
          %s412 = int_to_ptr.vmem [resolvable:$true] %s411
          %417 = dma.hbm_to_vmem [thread:$0]  %s410, 256, %s412, [#allocation6], 128, 128, 8
        $region32: #{tpu_custom_call.1} parent=11 // pred_fallthru
          _
        // Predicated region
        $region33: #{tpu_custom_call.1} parent=11 // pred_check
          %p418 = pneg %p193
        $region34: #{tpu_custom_call.1} parent=11 // pred_check_branch
          %420 = sbr.rel (%p418) target = $region36
        $region35: #{tpu_custom_call.1} parent=11 // pred_region
          %422 = vsyncadd [#allocation6], 0
          %s423 = sshll.u32 %s6, 4
          %s424 = int_to_ptr.hbm [resolvable:$true] %s423
          %s425 = sshll.u32 [#allocation7], 4
          %s426 = int_to_ptr.vmem [resolvable:$true] %s425
          %431 = dma.hbm_to_vmem [thread:$0]  %s424, 128, %s426, [#allocation6], 64, 64, 4
        $region36: #{tpu_custom_call.1} parent=11 // pred_fallthru
          _
        // Predicated region
        $region37: #{tpu_custom_call.1} parent=11 // pred_check
          %p432 = pneg %p214
        $region38: #{tpu_custom_call.1} parent=11 // pred_check_branch
          %434 = sbr.rel (%p432) target = $region40
        $region39: #{tpu_custom_call.1} parent=11 // pred_region
          _
        $region40: #{tpu_custom_call.1} parent=11 // pred_fallthru
          _
        // Predicated region
        $region41: #{tpu_custom_call.1} parent=11 // pred_check
          %p435 = pneg %p235
        $region42: #{tpu_custom_call.1} parent=11 // pred_check_branch
          %437 = sbr.rel (%p435) target = $region44
        $region43: #{tpu_custom_call.1} parent=11 // pred_region
          %439 = vsyncadd [#allocation9], 0
          %s441 = sshll.u32 %s8, 4
          %s442 = int_to_ptr.hbm [resolvable:$true] %s441
          %s443 = sshll.u32 [#allocation8], 4
          %s444 = int_to_ptr.vmem [resolvable:$true] %s443
          %446 = dma.hbm_to_vmem [thread:$0]  %s442, 16, %s444, [#allocation9]
        $region44: #{tpu_custom_call.1} parent=11 // pred_fallthru
          _
        // Predicated region
        $region45: #{tpu_custom_call.1} parent=11 // pred_check
          %p447 = pneg %p256
        $region46: #{tpu_custom_call.1} parent=11 // pred_check_branch
          %449 = sbr.rel (%p447) target = $region48
        $region47: #{tpu_custom_call.1} parent=11 // pred_region
          %451 = vsyncadd [#allocation9], 0
          %s453 = sshll.u32 %s9, 4
          %s454 = int_to_ptr.hbm [resolvable:$true] %s453
          %s455 = sshll.u32 [#allocation10], 4
          %s456 = int_to_ptr.vmem [resolvable:$true] %s455
          %458 = dma.hbm_to_vmem [thread:$0]  %s454, 16, %s456, [#allocation9]
        $region48: #{tpu_custom_call.1} parent=11 // pred_fallthru
          _
        // Predicated region
        $region49: #{tpu_custom_call.1} parent=11 // pred_check
          %p459 = pneg %p277
        $region50: #{tpu_custom_call.1} parent=11 // pred_check_branch
          %461 = sbr.rel (%p459) target = $region52
        $region51: #{tpu_custom_call.1} parent=11 // pred_region
          %463 = vsyncadd [#allocation12], 0
          %s464 = sshll.u32 %s10, 4
          %s465 = int_to_ptr.hbm [resolvable:$true] %s464
          %s466 = sshll.u32 [#allocation11], 4
          %s467 = int_to_ptr.vmem [resolvable:$true] %s466
          %472 = dma.hbm_to_vmem [thread:$0]  %s465, 128, %s467, [#allocation12], 64, 64, 4
        $region52: #{tpu_custom_call.1} parent=11 // pred_fallthru
          _
        // Predicated region
        $region53: #{tpu_custom_call.1} parent=11 // pred_check
          %p473 = pneg %p298
        $region54: #{tpu_custom_call.1} parent=11 // pred_check_branch
          %475 = sbr.rel (%p473) target = $region56
        $region55: #{tpu_custom_call.1} parent=11 // pred_region
          %477 = vsyncadd [#allocation12], 0
          %s479 = sshll.u32 %s11, 4
          %s480 = int_to_ptr.hbm [resolvable:$true] %s479
          %s481 = sshll.u32 [#allocation13], 4
          %s482 = int_to_ptr.vmem [resolvable:$true] %s481
          %484 = dma.hbm_to_vmem [thread:$0]  %s480, 16, %s482, [#allocation12]
        $region56: #{tpu_custom_call.1} parent=11 // pred_fallthru
          _
        // Predicated region
        $region57: #{tpu_custom_call.1} parent=11 // pred_check
          %p485 = pneg %p319
        $region58: #{tpu_custom_call.1} parent=11 // pred_check_branch
          %487 = sbr.rel (%p485) target = $region60
        $region59: #{tpu_custom_call.1} parent=11 // pred_region
          _
        $region60: #{tpu_custom_call.1} parent=11 // pred_fallthru
          _
        // Predicated region
        $region61: #{tpu_custom_call.1} parent=11 // pred_check
          %p488 = pneg %p340
        $region62: #{tpu_custom_call.1} parent=11 // pred_check_branch
          %490 = sbr.rel (%p488) target = $region64
        $region63: #{tpu_custom_call.1} parent=11 // pred_region
          _
        $region64: #{tpu_custom_call.1} parent=11 // pred_fallthru
          _
      $region12: #{tpu_custom_call.1} parent=5 // pred_fallthru
        _
      %p491 = scmp.lt.s32.totalorder %s27, 2
      // Predicated region
      $region65: #{tpu_custom_call.1} parent=5 // pred_check
        %p492 = pneg %p491
      $region66: #{tpu_custom_call.1} parent=5 // pred_check_branch
        %494 = sbr.rel (%p492) target = $region68
      $region67: #{tpu_custom_call.1} parent=5 // pred_region
        // Predicated region
        $region69: #{tpu_custom_call.1} parent=67 // pred_check
          %p495 = pneg %p61
        $region70: #{tpu_custom_call.1} parent=67 // pred_check_branch
          %497 = sbr.rel (%p495) target = $region72
        $region71: #{tpu_custom_call.1} parent=67 // pred_region
          %s498 = smul.u32 2, %s35
          %p499 = scmp.lt.s32.totalorder %s34, 1
          %s500 = scalar_select %p499, %s34, 1
          %p501 = scmp.lt.s32.totalorder %s498, 1
          %s502 = scalar_select %p501, %s498, 1
          %s503 = smul.addr %s500, 2
          %s504 = sadd.s32 %s502, %s503
          %s505 = smul.addr %s504, 8
          %s506 = scalar_lea.vmem %s0, %s505
          %s507 = smul.u32 2, %s35
        $region72: #{tpu_custom_call.1} parent=67 // pred_fallthru
          _
      $region68: #{tpu_custom_call.1} parent=5 // pred_fallthru
        _
      %p508 = scmp.le.s32.totalorder 1, %s27
      %p509 = scmp.lt.s32.totalorder %s27, 3
      %p510 = pnand %p508, %p509
      %p511 = pneg %p510
      // Predicated region
      $region73: #{tpu_custom_call.1} parent=5 // pred_check
        _
      $region74: #{tpu_custom_call.1} parent=5 // pred_check_branch
        %513 = sbr.rel (%p510) target = $region76
      $region75: #{tpu_custom_call.1} parent=5 // pred_region
        %s514 = ssub.s32 %s27, 1
        // Predicated region
        $region77: #{tpu_custom_call.1} parent=75 // pred_check
          %p515 = pneg %p88
        $region78: #{tpu_custom_call.1} parent=75 // pred_check_branch
          %517 = sbr.rel (%p515) target = $region80
        $region79: #{tpu_custom_call.1} parent=75 // pred_region
          %519 = dma.done [#allocation3], 16
        $region80: #{tpu_custom_call.1} parent=75 // pred_fallthru
          _
        // Predicated region
        $region81: #{tpu_custom_call.1} parent=75 // pred_check
          %p520 = pneg %p172
        $region82: #{tpu_custom_call.1} parent=75 // pred_check_branch
          %522 = sbr.rel (%p520) target = $region84
        $region83: #{tpu_custom_call.1} parent=75 // pred_region
          %524 = dma.done [#allocation6], 256
        $region84: #{tpu_custom_call.1} parent=75 // pred_fallthru
          _
        // Predicated region
        $region85: #{tpu_custom_call.1} parent=75 // pred_check
          %p525 = pneg %p193
        $region86: #{tpu_custom_call.1} parent=75 // pred_check_branch
          %527 = sbr.rel (%p525) target = $region88
        $region87: #{tpu_custom_call.1} parent=75 // pred_region
          %529 = dma.done [#allocation6], 128
        $region88: #{tpu_custom_call.1} parent=75 // pred_fallthru
          _
        // Predicated region
        $region89: #{tpu_custom_call.1} parent=75 // pred_check
          %p530 = pneg %p235
        $region90: #{tpu_custom_call.1} parent=75 // pred_check_branch
          %532 = sbr.rel (%p530) target = $region92
        $region91: #{tpu_custom_call.1} parent=75 // pred_region
          %534 = dma.done [#allocation9], 16
        $region92: #{tpu_custom_call.1} parent=75 // pred_fallthru
          _
        // Predicated region
        $region93: #{tpu_custom_call.1} parent=75 // pred_check
          %p535 = pneg %p256
        $region94: #{tpu_custom_call.1} parent=75 // pred_check_branch
          %537 = sbr.rel (%p535) target = $region96
        $region95: #{tpu_custom_call.1} parent=75 // pred_region
          %539 = dma.done [#allocation9], 16
        $region96: #{tpu_custom_call.1} parent=75 // pred_fallthru
          _
        // Predicated region
        $region97: #{tpu_custom_call.1} parent=75 // pred_check
          %p540 = pneg %p277
        $region98: #{tpu_custom_call.1} parent=75 // pred_check_branch
          %542 = sbr.rel (%p540) target = $region100
        $region99: #{tpu_custom_call.1} parent=75 // pred_region
          %544 = dma.done [#allocation12], 128
        $region100: #{tpu_custom_call.1} parent=75 // pred_fallthru
          _
        // Predicated region
        $region101: #{tpu_custom_call.1} parent=75 // pred_check
          %p545 = pneg %p298
        $region102: #{tpu_custom_call.1} parent=75 // pred_check_branch
          %547 = sbr.rel (%p545) target = $region104
        $region103: #{tpu_custom_call.1} parent=75 // pred_region
          %549 = dma.done [#allocation12], 16
        $region104: #{tpu_custom_call.1} parent=75 // pred_fallthru
          _
        %s550 = smul.u32 2, %s37
        %p551 = scmp.lt.s32.totalorder %s36, 1
        %s552 = scalar_select %p551, %s36, 1
        %p553 = scmp.lt.s32.totalorder %s550, 1
        %s554 = scalar_select %p553, %s550, 1
        %s555 = smul.addr %s552, 2
        %s556 = sadd.s32 %s554, %s555
        %s557 = smul.addr %s556, 8
        %s558 = scalar_lea.vmem %s0, %s557
        %p559 = pneg %p67
        %p560 = pneg %p64
        %p561 = pneg %p88
        %p562 = pneg %p85
        %p563 = pneg %p109
        %p564 = pneg %p106
        %p565 = pneg %p130
        %p566 = pneg %p127
        %p567 = pneg %p151
        %p568 = pneg %p148
        %p569 = pneg %p172
        %p570 = pneg %p169
        %p571 = pneg %p193
        %p572 = pneg %p190
        %p573 = pneg %p214
        %p574 = pneg %p211
        %p575 = pneg %p235
        %p576 = pneg %p232
        %p577 = pneg %p256
        %p578 = pneg %p253
        %p579 = pneg %p277
        %p580 = pneg %p274
        %p581 = pneg %p298
        %p582 = pneg %p295
        %p583 = pneg %p319
        %p584 = pneg %p316
        %p585 = pneg %p340
        %p586 = pneg %p337
        %p587 = pneg %p368
        %p588 = pneg %p365
        %s589 = sand.u32 %s355, 1
        %s590 = scalar_lea.sflag [#allocation4], %s589
        %s591 = sand.u32 %s355, 1
        %s592 = smul.addr %s591, 16
        %s593 = scalar_lea.vmem [#allocation14], %s592
        %s594 = smul.u32 2, %s37
        %p595 = scmp.lt.s32.totalorder %s36, 1
        %s596 = scalar_select %p595, %s36, 1
        %p597 = scmp.lt.s32.totalorder %s594, 1
        %s598 = scalar_select %p597, %s594, 1
        %s599 = smul.addr %s596, 2
        %s600 = sadd.s32 %s598, %s599
        %s601 = smul.addr %s600, 8
        %s602 = scalar_lea.vmem %s0, %s601
        %s603 = smul.u32 2, %s37
        %s604 = smul.u32 2, %s37
        %v606 = vld [vmem:[%s602] sm:$0xff]
        %v607 = vld [vmem:[%s602 + $0x8] sm:$0xff]
        %v608 = vld [vmem:[#allocation2] sm:$0x1]
        %v609 = vld [vmem:[%s2] sm:$0x1]
        %vm610 = vcmask 130048
        %v611 = vsel %vm610, %v606, 0.0
        %612 = vadd.xlane.f32.xlu0 %v611
        %v613 = vpop.xlane.xlu0 %612
        %v614 = vsel %vm610, %v607, 0.0
        %615 = vadd.xlane.f32.xlu0 %v614
        %v616 = vpop.xlane.xlu0 %615
        %v617 = vrcp.pop 16.0
        %v618 = vmul.f32 16.0, %v617
        %v619 = vsub.f32 1.0, %v618
        %v620 = vmul.f32 %v617, %v619
        %v621 = vadd.f32 %v617, %v620
        %vm622 = vweird.f32 %v617
        %v623 = vsel %vm622, %v617, %v621
        %v624 = vmul.f32 %v613, %v623
        %v625 = vmul.f32 %v616, %v623
        %v626 = vsub.f32 %v606, %v624
        %v627 = vsub.f32 %v607, %v625
        %v628 = vmul.f32 %v626, %v626
        %v629 = vmul.f32 %v627, %v627
        %v630 = vsel %vm610, %v628, 0.0
        %631 = vadd.xlane.f32.xlu0 %v630
        %v632 = vpop.xlane.xlu0 %631
        %v633 = vsel %vm610, %v629, 0.0
        %634 = vadd.xlane.f32.xlu0 %v633
        %v635 = vpop.xlane.xlu0 %634
        %v636 = vmul.f32 %v632, %v623
        %v637 = vmul.f32 %v635, %v623
        %v638 = vadd.f32 %v636, 1e-05
        %v639 = vadd.f32 %v637, 1e-05
        %v640 = vrsqrt.pop %v638
        %v641 = vmul.f32 %v640, %v638
        %v642 = vmul.f32 %v641, %v640
        %v643 = vmul.f32 0.5, %v642
        %v644 = vsub.f32 1.5, %v643
        %v645 = vmul.f32 %v640, %v644
        %vm646 = vweird.f32 %v638
        %vm647 = vweird.f32 %v640
        %vm648 = vmor %vm646, %vm647
        %v649 = vsel %vm648, %v640, %v645
        %v650 = vrsqrt.pop %v639
        %v651 = vmul.f32 %v650, %v639
        %v652 = vmul.f32 %v651, %v650
        %v653 = vmul.f32 0.5, %v652
        %v654 = vsub.f32 1.5, %v653
        %v655 = vmul.f32 %v650, %v654
        %vm656 = vweird.f32 %v639
        %vm657 = vweird.f32 %v650
        %vm658 = vmor %vm656, %vm657
        %v659 = vsel %vm658, %v650, %v655
        %v660 = vmul.f32 %v626, %v649
        %v661 = vmul.f32 %v627, %v659
        %v663 = vperm.slane %v608, 0
        %v665 = vmul.f32 %v660, %v663
        %v666 = vmul.f32 %v661, %v663
        %v668 = vperm.slane %v609, 0
        %v670 = vadd.f32 %v665, %v668
        %v671 = vadd.f32 %v666, %v668
        %v672 = vpack.c.bf16 %v671, %v670
        %v673 = vld [vmem:[%s3] sm:$0xf]
        %v674 = vld [vmem:[%s3 + $0x4] sm:$0xf]
        %v675 = vld [vmem:[%s4] sm:$0x1]
        %v677 = vperm.slane %v675, 0
        %v681 = vunpack.c.l.b16 %v673
        %v682 = vunpack.c.l.b16 %v674
        %v683 = vpack.c.b16 %v682, %v681
        %v686 = vsel %vm610, %v672, 0
        %688 = vmatpush.bf16.msra.mxu0 0
        %689 = vmatpush.bf16.msra.mxu0 0
        %690 = vmatpush.bf16.msra.mxu0 0
        %691 = vmatpush.bf16.msra.mxu0 0
        %692 = vmatpush.bf16.msra.mxu0 0
        %693 = vmatpush.bf16.msra.mxu0 0
        %694 = vmatpush.bf16.msra.mxu0 0
        %695 = vmatpush.bf16.msra.mxu0 %v683
        %696 = vmatmul.bf16.gmra.mxu0 %v686
        %v697 = vpop.f32.mrf.mxu0
        %v698 = vadd.f32 %v677, %v697
        %v699 = vpop.f32.mrf.mxu0
        %v700 = vadd.f32 %v677, %v699
        %701 = vdwg.mxu0
        %v702 = vld [vmem:[#allocation5] sm:$0xff]
        %v703 = vld [vmem:[#allocation5 + $0x8] sm:$0xff]
        %v704 = vmul.f32 %v698, 0.35355338
        %v705 = vmul.f32 %v700, 0.35355338
        %v706 = vpack.c.bf16 %v704, %v704
        %v707 = vpack.c.bf16 %v705, %v705
        %v708 = vpack.c.bf16 %v698, %v698
        %v709 = vpack.c.bf16 %v700, %v700
        %v711 = vunpack.c.l.b16 %v708
        %v712 = vpack.c.b16 %v711, %v711
        %713 = vrot.lane.b32.xlu0 %v712, 112
        %v714 = vpop.permute.xlu0 %713
        %vm715 = vcmask 64512
        %v717 = vsel %vm715, %v706, 0
        %v720 = vsel %vm715, %v714, 0
        %722 = vmatpush.bf16.xpose.msra.mxu0 0
        %723 = vmatpush.bf16.xpose.msra.mxu0 0
        %724 = vmatpush.bf16.xpose.msra.mxu0 0
        %725 = vmatpush.bf16.xpose.msra.mxu0 0
        %726 = vmatpush.bf16.xpose.msra.mxu0 0
        %727 = vmatpush.bf16.xpose.msra.mxu0 0
        %728 = vmatpush.bf16.xpose.msra.mxu0 0
        %729 = vmatpush.bf16.xpose.msra.mxu0 %v720
        %730 = vmatmul.bf16.gmra.mxu0 %v717
        %v731 = vpop.f32.mrf.mxu0
        %v732 = vadd.f32 %v702, %v731
        %v733 = vpop.f32.mrf.mxu0
        %734 = vdwg.mxu0
        %v736 = vunpack.c.l.b16 %v709
        %v737 = vpack.c.b16 %v736, %v736
        %738 = vrot.lane.b32.xlu0 %v737, 112
        %v739 = vpop.permute.xlu0 %738
        %v741 = vsel %vm715, %v707, 0
        %v744 = vsel %vm715, %v739, 0
        %746 = vmatpush.bf16.xpose.msra.mxu0 0
        %747 = vmatpush.bf16.xpose.msra.mxu0 0
        %748 = vmatpush.bf16.xpose.msra.mxu0 0
        %749 = vmatpush.bf16.xpose.msra.mxu0 0
        %750 = vmatpush.bf16.xpose.msra.mxu0 0
        %751 = vmatpush.bf16.xpose.msra.mxu0 0
        %752 = vmatpush.bf16.xpose.msra.mxu0 0
        %753 = vmatpush.bf16.xpose.msra.mxu0 %v744
        %754 = vmatmul.bf16.gmra.mxu0 %v741
        %v755 = vpop.f32.mrf.mxu0
        %v756 = vadd.f32 %v702, %v755
        %v757 = vpop.f32.mrf.mxu0
        %758 = vdwg.mxu0
        %v759 = vsel %vm715, %v732, -inf
        %760 = vmax.xlane.f32.xlu0 %v759
        %v761 = vpop.xlane.xlu0 %760
        %v762 = vsel %vm715, %v756, -inf
        %763 = vmax.xlane.f32.xlu0 %v762
        %v764 = vpop.xlane.xlu0 %763
        %v765 = vsub.f32 %v732, %v761
        %v766 = vsub.f32 %v756, %v764
        %v767 = vmul.f32 %v765, 1.442695
        %v768 = vpow.pop %v767
        %v769 = vmul.f32 %v766, 1.442695
        %v770 = vpow.pop %v769
        %v771 = vsel %vm715, %v768, 0.0
        %772 = vadd.xlane.f32.xlu0 %v771
        %v773 = vpop.xlane.xlu0 %772
        %v774 = vsel %vm715, %v770, 0.0
        %775 = vadd.xlane.f32.xlu0 %v774
        %v776 = vpop.xlane.xlu0 %775
        %v777 = vrcp.pop %v773
        %v778 = vrcp.pop %v776
        %v779 = vmul.f32 %v768, %v777
        %v780 = vmul.f32 %v770, %v778
        %v781 = vpack.c.bf16 %v779, %v779
        %v782 = vpack.c.bf16 %v780, %v780
        %783 = vrot.lane.b32.xlu0 %v712, 96
        %v784 = vpop.permute.xlu0 %783
        %v786 = vsel %vm715, %v781, 0
        %vm788 = vcmask 1043456
        %v790 = vsel %vm788, %v784, 0
        %792 = vmatpush.bf16.msra.mxu0 0
        %793 = vmatpush.bf16.msra.mxu0 0
        %794 = vmatpush.bf16.msra.mxu0 0
        %795 = vmatpush.bf16.msra.mxu0 0
        %796 = vmatpush.bf16.msra.mxu0 0
        %797 = vmatpush.bf16.msra.mxu0 0
        %798 = vmatpush.bf16.msra.mxu0 0
        %799 = vmatpush.bf16.msra.mxu0 %v790
        %800 = vmatmul.bf16.gmra.mxu0 %v786
        %v801 = vpop.f32.mrf.mxu0
        %v802 = vadd.f32 0.0, %v801
        %v803 = vpop.f32.mrf.mxu0
        %804 = vdwg.mxu0
        %805 = vrot.lane.b32.xlu0 %v737, 96
        %v806 = vpop.permute.xlu0 %805
        %v808 = vsel %vm715, %v782, 0
        %v811 = vsel %vm788, %v806, 0
        %813 = vmatpush.bf16.msra.mxu0 0
        %814 = vmatpush.bf16.msra.mxu0 0
        %815 = vmatpush.bf16.msra.mxu0 0
        %816 = vmatpush.bf16.msra.mxu0 0
        %817 = vmatpush.bf16.msra.mxu0 0
        %818 = vmatpush.bf16.msra.mxu0 0
        %819 = vmatpush.bf16.msra.mxu0 0
        %820 = vmatpush.bf16.msra.mxu0 %v811
        %821 = vmatmul.bf16.gmra.mxu0 %v808
        %v822 = vpop.f32.mrf.mxu0
        %v823 = vadd.f32 0.0, %v822
        %v824 = vpop.f32.mrf.mxu0
        %825 = vdwg.mxu0
        %v827 = vunpack.c.l.b16 %v706
        %v828 = vpack.c.b16 %v827, %v827
        %829 = vrot.lane.b32.xlu0 %v828, 120
        %v830 = vpop.permute.xlu0 %829
        %831 = vrot.lane.b32.xlu0 %v712, 104
        %v832 = vpop.permute.xlu0 %831
        %v834 = vsel %vm715, %v830, 0
        %v837 = vsel %vm715, %v832, 0
        %839 = vmatpush.bf16.xpose.msra.mxu0 0
        %840 = vmatpush.bf16.xpose.msra.mxu0 0
        %841 = vmatpush.bf16.xpose.msra.mxu0 0
        %842 = vmatpush.bf16.xpose.msra.mxu0 0
        %843 = vmatpush.bf16.xpose.msra.mxu0 0
        %844 = vmatpush.bf16.xpose.msra.mxu0 0
        %845 = vmatpush.bf16.xpose.msra.mxu0 0
        %846 = vmatpush.bf16.xpose.msra.mxu0 %v837
        %847 = vmatmul.bf16.gmra.mxu0 %v834
        %v848 = vpop.f32.mrf.mxu0
        %v849 = vadd.f32 %v703, %v848
        %v850 = vpop.f32.mrf.mxu0
        %851 = vdwg.mxu0
        %v853 = vunpack.c.l.b16 %v707
        %v854 = vpack.c.b16 %v853, %v853
        %855 = vrot.lane.b32.xlu0 %v854, 120
        %v856 = vpop.permute.xlu0 %855
        %857 = vrot.lane.b32.xlu0 %v737, 104
        %v858 = vpop.permute.xlu0 %857
        %v860 = vsel %vm715, %v856, 0
        %v863 = vsel %vm715, %v858, 0
        %865 = vmatpush.bf16.xpose.msra.mxu0 0
        %866 = vmatpush.bf16.xpose.msra.mxu0 0
        %867 = vmatpush.bf16.xpose.msra.mxu0 0
        %868 = vmatpush.bf16.xpose.msra.mxu0 0
        %869 = vmatpush.bf16.xpose.msra.mxu0 0
        %870 = vmatpush.bf16.xpose.msra.mxu0 0
        %871 = vmatpush.bf16.xpose.msra.mxu0 0
        %872 = vmatpush.bf16.xpose.msra.mxu0 %v863
        %873 = vmatmul.bf16.gmra.mxu0 %v860
        %v874 = vpop.f32.mrf.mxu0
        %v875 = vadd.f32 %v703, %v874
        %v876 = vpop.f32.mrf.mxu0
        %877 = vdwg.mxu0
        %v878 = vsel %vm715, %v849, -inf
        %879 = vmax.xlane.f32.xlu0 %v878
        %v880 = vpop.xlane.xlu0 %879
        %v881 = vsel %vm715, %v875, -inf
        %882 = vmax.xlane.f32.xlu0 %v881
        %v883 = vpop.xlane.xlu0 %882
        %v884 = vsub.f32 %v849, %v880
        %v885 = vsub.f32 %v875, %v883
        %v886 = vmul.f32 %v884, 1.442695
        %v887 = vpow.pop %v886
        %v888 = vmul.f32 %v885, 1.442695
        %v889 = vpow.pop %v888
        %v890 = vsel %vm715, %v887, 0.0
        %891 = vadd.xlane.f32.xlu0 %v890
        %v892 = vpop.xlane.xlu0 %891
        %v893 = vsel %vm715, %v889, 0.0
        %894 = vadd.xlane.f32.xlu0 %v893
        %v895 = vpop.xlane.xlu0 %894
        %v896 = vrcp.pop %v892
        %v897 = vrcp.pop %v895
        %v898 = vmul.f32 %v887, %v896
        %v899 = vmul.f32 %v889, %v897
        %v900 = vpack.c.bf16 %v898, %v898
        %v901 = vpack.c.bf16 %v899, %v899
        %902 = vrot.lane.b32.xlu0 %v712, 88
        %v903 = vpop.permute.xlu0 %902
        %v905 = vsel %vm715, %v900, 0
        %v908 = vsel %vm788, %v903, 0
        %910 = vmatpush.bf16.msra.mxu0 0
        %911 = vmatpush.bf16.msra.mxu0 0
        %912 = vmatpush.bf16.msra.mxu0 0
        %913 = vmatpush.bf16.msra.mxu0 0
        %914 = vmatpush.bf16.msra.mxu0 0
        %915 = vmatpush.bf16.msra.mxu0 0
        %916 = vmatpush.bf16.msra.mxu0 0
        %917 = vmatpush.bf16.msra.mxu0 %v908
        %918 = vmatmul.bf16.gmra.mxu0 %v905
        %v919 = vpop.f32.mrf.mxu0
        %v920 = vadd.f32 0.0, %v919
        %v921 = vpop.f32.mrf.mxu0
        %922 = vdwg.mxu0
        %923 = vrot.lane.b32.xlu0 %v737, 88
        %v924 = vpop.permute.xlu0 %923
        %v926 = vsel %vm715, %v901, 0
        %v929 = vsel %vm788, %v924, 0
        %931 = vmatpush.bf16.msra.mxu0 0
        %932 = vmatpush.bf16.msra.mxu0 0
        %933 = vmatpush.bf16.msra.mxu0 0
        %934 = vmatpush.bf16.msra.mxu0 0
        %935 = vmatpush.bf16.msra.mxu0 0
        %936 = vmatpush.bf16.msra.mxu0 0
        %937 = vmatpush.bf16.msra.mxu0 0
        %938 = vmatpush.bf16.msra.mxu0 %v929
        %939 = vmatmul.bf16.gmra.mxu0 %v926
        %v940 = vpop.f32.mrf.mxu0
        %v941 = vadd.f32 0.0, %v940
        %v942 = vpop.f32.mrf.mxu0
        %943 = vdwg.mxu0
        %946 = vrot.lane.b32.xlu0 %v920, 8
        %v947 = vpop.permute.xlu0 %946
        %948 = vrot.lane.b32.xlu0 %v941, 8
        %v949 = vpop.permute.xlu0 %948
        %v952 = vsel %vm715, %v802, %v947
        %v953 = vsel %vm715, %v823, %v949
        %v954 = vpack.c.bf16 %v953, %v952
        %v955 = vld [vmem:[#allocation7] sm:$0xf]
        %v956 = vld [vmem:[#allocation7 + $0x4] sm:$0xf]
        %v957 = vld [vmem:[%s7] sm:$0x1]
        %v959 = vperm.slane %v957, 0
        %v963 = vunpack.c.l.b16 %v955
        %v964 = vunpack.c.l.b16 %v956
        %v965 = vpack.c.b16 %v964, %v963
        %v968 = vsel %vm610, %v954, 0
        %970 = vmatpush.bf16.msra.mxu0 0
        %971 = vmatpush.bf16.msra.mxu0 0
        %972 = vmatpush.bf16.msra.mxu0 0
        %973 = vmatpush.bf16.msra.mxu0 0
        %974 = vmatpush.bf16.msra.mxu0 0
        %975 = vmatpush.bf16.msra.mxu0 0
        %976 = vmatpush.bf16.msra.mxu0 0
        %977 = vmatpush.bf16.msra.mxu0 %v965
        %978 = vmatmul.bf16.gmra.mxu0 %v968
        %v979 = vpop.f32.mrf.mxu0
        %v980 = vadd.f32 %v959, %v979
        %v981 = vpop.f32.mrf.mxu0
        %v982 = vadd.f32 %v959, %v981
        %983 = vdwg.mxu0
        %v984 = vadd.f32 %v606, %v980
        %v985 = vadd.f32 %v607, %v982
        %v986 = vld [vmem:[#allocation8] sm:$0x1]
        %v987 = vld [vmem:[#allocation10] sm:$0x1]
        %v988 = vsel %vm610, %v984, 0.0
        %989 = vadd.xlane.f32.xlu0 %v988
        %v990 = vpop.xlane.xlu0 %989
        %v991 = vsel %vm610, %v985, 0.0
        %992 = vadd.xlane.f32.xlu0 %v991
        %v993 = vpop.xlane.xlu0 %992
        %v994 = vmul.f32 %v990, %v623
        %v995 = vmul.f32 %v993, %v623
        %v996 = vsub.f32 %v984, %v994
        %v997 = vsub.f32 %v985, %v995
        %v998 = vmul.f32 %v996, %v996
        %v999 = vmul.f32 %v997, %v997
        %v1000 = vsel %vm610, %v998, 0.0
        %1001 = vadd.xlane.f32.xlu0 %v1000
        %v1002 = vpop.xlane.xlu0 %1001
        %v1003 = vsel %vm610, %v999, 0.0
        %1004 = vadd.xlane.f32.xlu0 %v1003
        %v1005 = vpop.xlane.xlu0 %1004
        %v1006 = vmul.f32 %v1002, %v623
        %v1007 = vmul.f32 %v1005, %v623
        %v1008 = vadd.f32 %v1006, 1e-05
        %v1009 = vadd.f32 %v1007, 1e-05
        %v1010 = vrsqrt.pop %v1008
        %v1011 = vmul.f32 %v1010, %v1008
        %v1012 = vmul.f32 %v1011, %v1010
        %v1013 = vmul.f32 0.5, %v1012
        %v1014 = vsub.f32 1.5, %v1013
        %v1015 = vmul.f32 %v1010, %v1014
        %vm1016 = vweird.f32 %v1008
        %vm1017 = vweird.f32 %v1010
        %vm1018 = vmor %vm1016, %vm1017
        %v1019 = vsel %vm1018, %v1010, %v1015
        %v1020 = vrsqrt.pop %v1009
        %v1021 = vmul.f32 %v1020, %v1009
        %v1022 = vmul.f32 %v1021, %v1020
        %v1023 = vmul.f32 0.5, %v1022
        %v1024 = vsub.f32 1.5, %v1023
        %v1025 = vmul.f32 %v1020, %v1024
        %vm1026 = vweird.f32 %v1009
        %vm1027 = vweird.f32 %v1020
        %vm1028 = vmor %vm1026, %vm1027
        %v1029 = vsel %vm1028, %v1020, %v1025
        %v1030 = vmul.f32 %v996, %v1019
        %v1031 = vmul.f32 %v997, %v1029
        %v1033 = vperm.slane %v986, 0
        %v1035 = vmul.f32 %v1030, %v1033
        %v1036 = vmul.f32 %v1031, %v1033
        %v1038 = vperm.slane %v987, 0
        %v1040 = vadd.f32 %v1035, %v1038
        %v1041 = vadd.f32 %v1036, %v1038
        %v1042 = vpack.c.bf16 %v1041, %v1040
        %v1043 = vld [vmem:[#allocation11] sm:$0xf]
        %v1044 = vld [vmem:[#allocation11 + $0x4] sm:$0xf]
        %v1045 = vld [vmem:[#allocation13] sm:$0x1]
        %v1047 = vperm.slane %v1045, 0
        %v1051 = vunpack.c.l.b16 %v1043
        %v1052 = vunpack.c.l.b16 %v1044
        %v1053 = vpack.c.b16 %v1052, %v1051
        %v1056 = vsel %vm610, %v1042, 0
        %1058 = vmatpush.bf16.msra.mxu0 0
        %1059 = vmatpush.bf16.msra.mxu0 0
        %1060 = vmatpush.bf16.msra.mxu0 0
        %1061 = vmatpush.bf16.msra.mxu0 0
        %1062 = vmatpush.bf16.msra.mxu0 0
        %1063 = vmatpush.bf16.msra.mxu0 0
        %1064 = vmatpush.bf16.msra.mxu0 0
        %1065 = vmatpush.bf16.msra.mxu0 %v1053
        %1066 = vmatmul.bf16.gmra.mxu0 %v1056
        %v1067 = vpop.f32.mrf.mxu0
        %v1068 = vadd.f32 %v1047, %v1067
        %v1069 = vpop.f32.mrf.mxu0
        %v1070 = vadd.f32 %v1047, %v1069
        %1071 = vdwg.mxu0
        %v1072 = vmul.f32 %v1068, 0.5
        %v1073 = vmul.f32 %v1070, 0.5
        %v1074 = vmul.f32 %v1068, 0.70710677
        %v1075 = vmul.f32 %v1070, 0.70710677
        %vm1076 = vcmp.lt.f32.partialorder %v1074, 0.0
        %vm1077 = vcmp.lt.f32.partialorder %v1075, 0.0
        %v1078 = vsel %vm1076, -1.0, 1.0
        %v1079 = vsel %vm1077, -1.0, 1.0
        %v1080 = vand.u32 2147483647, %v1074
        %v1081 = vand.u32 2147483647, %v1075
        %v1082 = vmul.f32 %v1080, 0.3275911
        %v1083 = vmul.f32 %v1081, 0.3275911
        %v1084 = vadd.f32 %v1082, 1.0
        %v1085 = vadd.f32 %v1083, 1.0
        %v1086 = vrcp.pop %v1084
        %v1087 = vmul.f32 %v1084, %v1086
        %v1088 = vsub.f32 1.0, %v1087
        %v1089 = vmul.f32 %v1086, %v1088
        %v1090 = vadd.f32 %v1086, %v1089
        %vm1091 = vweird.f32 %v1084
        %vm1092 = vweird.f32 %v1086
        %vm1093 = vmor %vm1091, %vm1092
        %v1094 = vsel %vm1093, %v1086, %v1090
        %v1095 = vand.u32 2147483647, %v1084
        %vm1096 = vcmp.eq.f32.partialorder %v1095, 8.507059e+37
        %v1097 = vand.u32 %v1084, 2147483648
        %v1098 = vor.u32 1.1754944e-38, %v1097
        %v1099 = vsel %vm1096, %v1098, %v1094
        %v1100 = vmul.f32 1.0, %v1099
        %v1101 = vrcp.pop %v1085
        %v1102 = vmul.f32 %v1085, %v1101
        %v1103 = vsub.f32 1.0, %v1102
        %v1104 = vmul.f32 %v1101, %v1103
        %v1105 = vadd.f32 %v1101, %v1104
        %vm1106 = vweird.f32 %v1085
        %vm1107 = vweird.f32 %v1101
        %vm1108 = vmor %vm1106, %vm1107
        %v1109 = vsel %vm1108, %v1101, %v1105
        %v1110 = vand.u32 2147483647, %v1085
        %vm1111 = vcmp.eq.f32.partialorder %v1110, 8.507059e+37
        %v1112 = vand.u32 %v1085, 2147483648
        %v1113 = vor.u32 1.1754944e-38, %v1112
        %v1114 = vsel %vm1111, %v1113, %v1109
        %v1115 = vmul.f32 1.0, %v1114
        %v1116 = vmul.f32 %v1100, 1.0614054
        %v1117 = vmul.f32 %v1115, 1.0614054
        %v1118 = vadd.f32 %v1116, -1.4531521
        %v1119 = vadd.f32 %v1117, -1.4531521
        %v1120 = vmul.f32 %v1118, %v1100
        %v1121 = vmul.f32 %v1119, %v1115
        %v1122 = vadd.f32 %v1120, 1.4214138
        %v1123 = vadd.f32 %v1121, 1.4214138
        %v1124 = vmul.f32 %v1122, %v1100
        %v1125 = vmul.f32 %v1123, %v1115
        %v1126 = vadd.f32 %v1124, -0.28449672
        %v1127 = vadd.f32 %v1125, -0.28449672
        %v1128 = vmul.f32 %v1126, %v1100
        %v1129 = vmul.f32 %v1127, %v1115
        %v1130 = vadd.f32 %v1128, 0.2548296
        %v1131 = vadd.f32 %v1129, 0.2548296
        %v1132 = vmul.f32 %v1130, %v1100
        %v1133 = vmul.f32 %v1131, %v1115
        %v1134 = vsub.f32 0.0, %v1080
        %v1135 = vsub.f32 0.0, %v1081
        %v1136 = vmul.f32 %v1134, %v1080
        %v1137 = vmul.f32 %v1135, %v1081
        %v1138 = vmul.f32 %v1136, 1.442695
        %v1139 = vpow.pop %v1138
        %v1140 = vmul.f32 %v1137, 1.442695
        %v1141 = vpow.pop %v1140
        %v1142 = vmul.f32 %v1132, %v1139
        %v1143 = vmul.f32 %v1133, %v1141
        %v1144 = vsub.f32 1.0, %v1142
        %v1145 = vsub.f32 1.0, %v1143
        %v1146 = vmul.f32 %v1078, %v1144
        %v1147 = vmul.f32 %v1079, %v1145
        %v1148 = vadd.f32 %v1146, 1.0
        %v1149 = vadd.f32 %v1147, 1.0
        %v1150 = vmul.f32 %v1072, %v1148
        %v1151 = vmul.f32 %v1073, %v1149
        %v1152 = vpack.c.bf16 %v1151, %v1150
        %v1153 = vld [vmem:[%s12] sm:$0xf]
        %v1154 = vld [vmem:[%s12 + $0x4] sm:$0xf]
        %v1155 = vld [vmem:[%s12 + $0x8] sm:$0xf]
        %v1156 = vld [vmem:[%s12 + $0xc] sm:$0xf]
        %v1157 = vld [vmem:[%s12 + $0x10] sm:$0xf]
        %v1158 = vld [vmem:[%s12 + $0x14] sm:$0xf]
        %v1159 = vld [vmem:[%s12 + $0x18] sm:$0xf]
        %v1160 = vld [vmem:[%s12 + $0x1c] sm:$0xf]
        %v1169 = vunpack.c.l.b16 %v1153
        %v1170 = vunpack.c.l.b16 %v1154
        %v1171 = vunpack.c.l.b16 %v1155
        %v1172 = vunpack.c.l.b16 %v1156
        %v1173 = vunpack.c.l.b16 %v1157
        %v1174 = vunpack.c.l.b16 %v1158
        %v1175 = vunpack.c.l.b16 %v1159
        %v1176 = vunpack.c.l.b16 %v1160
        %v1177 = vpack.c.b16 %v1170, %v1169
        %v1178 = vpack.c.b16 %v1172, %v1171
        %v1179 = vpack.c.b16 %v1174, %v1173
        %v1180 = vpack.c.b16 %v1176, %v1175
        %vm1185 = vcmask 523264
        %v1187 = vsel %vm1185, %v1152, 0
        %1189 = vmatpush.bf16.msra.mxu0 0
        %1190 = vmatpush.bf16.msra.mxu0 0
        %1191 = vmatpush.bf16.msra.mxu0 0
        %1192 = vmatpush.bf16.msra.mxu0 0
        %1193 = vmatpush.bf16.msra.mxu0 %v1180
        %1194 = vmatpush.bf16.msra.mxu0 %v1179
        %1195 = vmatpush.bf16.msra.mxu0 %v1178
        %1196 = vmatpush.bf16.msra.mxu0 %v1177
        %1197 = vmatmul.bf16.gmra.mxu0 %v1187
        %v1198 = vpop.f32.mrf.mxu0
        %v1199 = vadd.f32 0.0, %v1198
        %v1200 = vpop.f32.mrf.mxu0
        %v1201 = vadd.f32 0.0, %v1200
        %1202 = vdwg.mxu0
        %v1203 = vadd.f32 %v984, %v1199
        %v1204 = vadd.f32 %v985, %v1201
        %v1205 = vld [vmem:[%s13] sm:$0x1]
        %v1207 = vperm.slane %v1205, 0
        %v1209 = vadd.f32 %v1203, %v1207
        %v1210 = vadd.f32 %v1204, %v1207
        %1211 = vst.msk [vmem:[%s593] sm:$0xff] %vm610, %v1209
        %1212 = vst.msk [vmem:[%s593 + $0x8] sm:$0xff] %vm610, %v1210
        %s1213 = sand.u32 %s355, 1
        %s1214 = scalar_lea.sflag [#allocation4], %s1213
        %s1215 = sand.u32 %s355, 1
        %s1216 = smul.addr %s1215, 16
        %s1217 = scalar_lea.vmem [#allocation14], %s1216
        // Predicated region
        $region105: #{tpu_custom_call.1} parent=75 // pred_check
          %p1218 = pneg %p365
        $region106: #{tpu_custom_call.1} parent=75 // pred_check_branch
          %1220 = sbr.rel (%p1218) target = $region108
        $region107: #{tpu_custom_call.1} parent=75 // pred_region
          %s1221 = smul.u32 2, %s37
          %1223 = vsyncadd %s1214, 0
          %s1224 = smul.addr %s36, 2
          %s1225 = sadd.s32 %s1221, %s1224
          %s1226 = smul.addr %s1225, 8
          %s1227 = scalar_lea.hbm %s14, %s1226
          %s1228 = sshll.u32 %s1217, 4
          %s1229 = int_to_ptr.vmem [resolvable:$true] %s1228
          %s1230 = sshll.u32 %s1227, 4
          %s1231 = int_to_ptr.hbm [resolvable:$true] %s1230
          %1236 = dma.vmem_to_hbm [thread:$0]  %s1229, 256, %s1231, %s1214, 128, 128, 8
        $region108: #{tpu_custom_call.1} parent=75 // pred_fallthru
          _
      $region76: #{tpu_custom_call.1} parent=5 // pred_fallthru
        _
      %p1237 = scmp.le.s32.totalorder 2, %s27
      // Predicated region
      $region109: #{tpu_custom_call.1} parent=5 // pred_check
        %p1238 = pneg %p1237
      $region110: #{tpu_custom_call.1} parent=5 // pred_check_branch
        %1240 = sbr.rel (%p1238) target = $region112
      $region111: #{tpu_custom_call.1} parent=5 // pred_region
        %s1241 = ssub.s32 %s27, 2
        // Predicated region
        $region113: #{tpu_custom_call.1} parent=111 // pred_check
          %p1242 = pneg %p371
        $region114: #{tpu_custom_call.1} parent=111 // pred_check_branch
          %1244 = sbr.rel (%p1242) target = $region116
        $region115: #{tpu_custom_call.1} parent=111 // pred_region
          %s1245 = sand.u32 %s356, 1
          %s1246 = scalar_lea.sflag [#allocation4], %s1245
          %s1247 = sand.u32 %s356, 1
          %s1248 = smul.addr %s1247, 16
          %s1249 = scalar_lea.vmem [#allocation14], %s1248
          %1251 = dma.done %s1246, 256
        $region116: #{tpu_custom_call.1} parent=111 // pred_fallthru
          _
      $region112: #{tpu_custom_call.1} parent=5 // pred_fallthru
        _
    $region6: #{tpu_custom_call.1} parent=1 // loop_footer
      %s31 = sadd.s32 1, %s27
    $region7: #{tpu_custom_call.1} parent=1 // loop_footer_branch
      %26 = sbr.rel target = $region3
    $region8: #{tpu_custom_call.1} parent=1 // loop_exit
      _
    %1252 = vsyncpa [#allocation3], 1
    %s1253 = scalar_lea.sflag [#allocation3], 1
    %1254 = vsyncpa %s1253, 1
    %1255 = vsyncpa [#allocation6], 1
    %1256 = vsyncpa [#allocation9], 1
    %1257 = vsyncpa [#allocation12], 1
    %1258 = vsyncpa [#allocation4], 1
    %s1259 = scalar_lea.sflag [#allocation4], 1
    %1260 = vsyncpa %s1259, 1

</llo_original>
